<compile_context>
chip_gen: v5e
topology: v5e:2x2
jax: 0.10.0
libtpu: 0.0.40
codegen_flags: <defaults>
</compile_context>

<pallas_src>
import functools

import jax
import jax.numpy as jnp
import numpy as np
from jax import lax
from jax.experimental import pallas as pl
from jax.experimental.pallas import tpu as pltpu

EXPANSION = 4
BN_EPS = 1e-5
LANES = 128


# ------------------------------- small helpers ------------------------------ #

def _round_up(x, m):
    return (x + m - 1) // m * m


def _vmem_limit_bytes():
    """Generation-aware VMEM budget (v5e/v6e: 128 MiB physical, v7x: 64 MiB)."""
    cap = 64 * 1024 * 1024
    try:
        cap = int(getattr(pltpu.get_tpu_info(), "vmem_capacity_bytes", cap))
    except Exception:
        pass
    return int(min(max(cap * 3 // 4, 32 * 1024 * 1024), 100 * 1024 * 1024))


def _pad_weight(w, cin_p, cout_p):
    ci, co = w.shape[-2], w.shape[-1]
    pad = [(0, 0)] * (w.ndim - 2) + [(0, cin_p - ci), (0, cout_p - co)]
    return jnp.pad(w, pad).astype(jnp.bfloat16)


def _fold_bn(bn, c_pad=None):
    scale = bn["gamma"] / jnp.sqrt(bn["var"] + BN_EPS)
    bias = bn["beta"] - bn["mean"] * scale
    if c_pad is not None and c_pad > scale.shape[0]:
        scale = jnp.pad(scale, (0, c_pad - scale.shape[0]))
        bias = jnp.pad(bias, (0, c_pad - bias.shape[0]))
    return (scale.reshape(1, -1).astype(jnp.float32),
            bias.reshape(1, -1).astype(jnp.float32))


# ------------------------------ fused kernel body ---------------------------- #

def _bottleneck_kernel(xp_ref, mask_ref, w1_ref, s1_ref, b1_ref,
                       w2_ref, s2_ref, b2_ref, w3_ref, s3_ref, b3_ref,
                       *rest, rs, h_img, has_proj):
    if has_proj:
        wsc_ref, ssc_ref, bsc_ref, o_ref = rest
    else:
        (o_ref,) = rest

    qlen = h_img * rs          # output rows (dense, incl. garbage pad columns)
    q0 = 2 * rs                # first output row inside the padded flat plane

    xp = xp_ref[...]           # (Pflat, Cin_p) bf16, zero spatial halo

    # ---- conv1 (1x1) + bn1 + relu over the whole padded plane ----
    h1 = jnp.dot(xp, w1_ref[...], preferred_element_type=jnp.float32)
    h1 = jnp.maximum(h1 * s1_ref[...] + b1_ref[...], 0.0)
    h1 = (h1 * mask_ref[...]).astype(jnp.bfloat16)   # zero the halo ring again

    # ---- conv2 (3x3, padding=1) as 9 shifted matmuls ----
    # Accumulate in a value (no scratch RMW).  Only the dx=0 / dx=2 column
    # windows are sublane-unaligned (2 relayouts); the per-dy taps inside a
    # window start at multiples of rs (8-aligned) and are free slices.
    acc = None
    for dx in range(3):
        win = h1[rs + dx - 1: rs + dx - 1 + (h_img + 2) * rs, :]
        for dy in range(3):
            tap = win[dy * rs: dy * rs + qlen, :]
            part = jnp.dot(tap, w2_ref[dy * 3 + dx],
                           preferred_element_type=jnp.float32)
            acc = part if acc is None else acc + part
    h2 = jnp.maximum(acc * s2_ref[...] + b2_ref[...], 0.0).astype(jnp.bfloat16)

    # ---- conv3 (1x1) + bn3, shortcut, add, relu ----
    main = jnp.dot(h2, w3_ref[...], preferred_element_type=jnp.float32)
    main = main * s3_ref[...] + b3_ref[...]
    x_sc = xp[q0: q0 + qlen, :]
    if has_proj:
        sc = jnp.dot(x_sc, wsc_ref[...], preferred_element_type=jnp.float32)
        sc = sc * ssc_ref[...] + bsc_ref[...]
    else:
        sc = x_sc.astype(jnp.float32)                 # identity shortcut
    o_ref[...] = jnp.maximum(main + sc, 0.0).astype(o_ref.dtype)


# ----------------------------- parameters / glue ---------------------------- #

def init_params(key, in_planes, planes, stride=1):
    out_planes = EXPANSION * planes
    ks = jax.random.split(key, 8)

    def conv_w(k, shape, fan_in):
        return jax.random.normal(k, shape, jnp.float32) * (1.0 / np.sqrt(fan_in))

    def bn_params(k, c):
        k1, k2, k3, k4 = jax.random.split(k, 4)
        return dict(
            gamma=1.0 + 0.1 * jax.random.normal(k1, (c,), jnp.float32),
            beta=0.1 * jax.random.normal(k2, (c,), jnp.float32),
            mean=0.1 * jax.random.normal(k3, (c,), jnp.float32),
            var=1.0 + 0.1 * jax.random.uniform(k4, (c,), jnp.float32),
        )

    params = dict(
        w1=conv_w(ks[0], (in_planes, planes), in_planes),          # 1x1: (Cin, Cout)
        bn1=bn_params(ks[1], planes),
        w2=conv_w(ks[2], (3, 3, planes, planes), 9 * planes),      # 3x3: HWIO
        bn2=bn_params(ks[3], planes),
        w3=conv_w(ks[4], (planes, out_planes), planes),            # 1x1: (Cin, Cout)
        bn3=bn_params(ks[5], out_planes),
    )
    if stride != 1 or in_planes != out_planes:
        params["w_sc"] = conv_w(ks[6], (in_planes, out_planes), in_planes)
        params["bn_sc"] = bn_params(ks[7], out_planes)
    return params


def bottleneck_forward(params, x_nchw, stride=1):
    n, cin, h, w = x_nchw.shape
    planes = params["w1"].shape[1]
    out_planes = EXPANSION * planes
    cin_p = _round_up(cin, LANES)
    cmid_p = _round_up(planes, LANES)
    cout_p = _round_up(out_planes, LANES)

    rs = _round_up(w + 2, 8)          # padded flat row stride (sublane aligned)
    pflat = (h + 4) * rs              # 2 halo rows top & bottom
    qlen = h * rs                     # dense output rows per image

    # bf16 *before* any layout transform (halves transpose/pad HBM traffic).
    x_nhwc = jnp.transpose(x_nchw.astype(jnp.bfloat16), (0, 2, 3, 1))
    xp = jnp.pad(x_nhwc, ((0, 0), (2, 2), (1, rs - w - 1), (0, cin_p - cin)))
    xp_flat = xp.reshape(n, pflat, cin_p)

    # Interior mask: 1 on real pixels, 0 on the zero halo (kills relu(b1)).
    idx = jnp.arange(pflat, dtype=jnp.int32)
    hh, ww = idx // rs, idx % rs
    mask = ((hh >= 2) & (hh < h + 2) & (ww >= 1) & (ww < w + 1))
    mask = mask.astype(jnp.float32).reshape(pflat, 1)

    w1 = _pad_weight(params["w1"], cin_p, cmid_p)
    s1, b1 = _fold_bn(params["bn1"], cmid_p)
    w2 = _pad_weight(params["w2"], cmid_p, cmid_p).reshape(9, cmid_p, cmid_p)
    s2, b2 = _fold_bn(params["bn2"], cmid_p)
    w3 = _pad_weight(params["w3"], cmid_p, cout_p)
    s3, b3 = _fold_bn(params["bn3"], cout_p)

    has_proj = "w_sc" in params
    args = [xp_flat, mask, w1, s1, b1, w2, s2, b2, w3, s3, b3]
    in_specs = [
        pl.BlockSpec((None, pflat, cin_p), lambda b: (b, 0, 0)),
        pl.BlockSpec((pflat, 1), lambda b: (0, 0)),
        pl.BlockSpec((cin_p, cmid_p), lambda b: (0, 0)),
        pl.BlockSpec((1, cmid_p), lambda b: (0, 0)),
        pl.BlockSpec((1, cmid_p), lambda b: (0, 0)),
        pl.BlockSpec((9, cmid_p, cmid_p), lambda b: (0, 0, 0)),
        pl.BlockSpec((1, cmid_p), lambda b: (0, 0)),
        pl.BlockSpec((1, cmid_p), lambda b: (0, 0)),
        pl.BlockSpec((cmid_p, cout_p), lambda b: (0, 0)),
        pl.BlockSpec((1, cout_p), lambda b: (0, 0)),
        pl.BlockSpec((1, cout_p), lambda b: (0, 0)),
    ]
    flops = 2 * (pflat * cin_p * cmid_p + 9 * qlen * cmid_p * cmid_p
                 + qlen * cmid_p * cout_p)
    if has_proj:
        wsc = _pad_weight(params["w_sc"], cin_p, cout_p)
        ssc, bsc = _fold_bn(params["bn_sc"], cout_p)
        args += [wsc, ssc, bsc]
        in_specs += [
            pl.BlockSpec((cin_p, cout_p), lambda b: (0, 0)),
            pl.BlockSpec((1, cout_p), lambda b: (0, 0)),
            pl.BlockSpec((1, cout_p), lambda b: (0, 0)),
        ]
        flops += 2 * qlen * cin_p * cout_p

    bytes_accessed = int(xp_flat.size * 2 + n * qlen * cout_p * 2
                         + sum(int(a.size) * a.dtype.itemsize for a in args[1:]))

    kern = functools.partial(_bottleneck_kernel, rs=rs, h_img=h,
                             has_proj=has_proj)
    out_flat = pl.pallas_call(
        kern,
        out_shape=jax.ShapeDtypeStruct((n, qlen, cout_p), jnp.bfloat16),
        grid=(n,),
        in_specs=in_specs,
        out_specs=pl.BlockSpec((None, qlen, cout_p), lambda b: (b, 0, 0)),
        compiler_params=pltpu.CompilerParams(
            dimension_semantics=("parallel",),
            vmem_limit_bytes=_vmem_limit_bytes()),
        cost_estimate=pl.CostEstimate(flops=n * flops, transcendentals=0,
                                      bytes_accessed=bytes_accessed),
    )(*args)

    # Valid pixel (h, w) lives at flat row h*rs + (w + 1); a strided block just
    # subsamples the dense result (conv/BN commute with the subsampling).
    out = out_flat.reshape(n, h, rs, cout_p)
    out = out[:, ::stride, 1:1 + w:stride, :out_planes]
    return jnp.transpose(out, (0, 3, 1, 2)).astype(jnp.float32)   # back to NCHW


# --------------------------- pure-JAX reference ----------------------------- #

def reference_forward(params, x_nchw, stride=1):
    dn = ("NHWC", "HWIO", "NHWC")
    x = jnp.transpose(x_nchw, (0, 2, 3, 1)).astype(jnp.float32)

    def bn_apply(y, bn):
        s, b = _fold_bn(bn)
        return y * s.reshape(1, 1, 1, -1) + b.reshape(1, 1, 1, -1)

    y = lax.conv_general_dilated(x, params["w1"][None, None], (1, 1), "VALID",
                                 dimension_numbers=dn)
    y = jax.nn.relu(bn_apply(y, params["bn1"]))
    y = lax.conv_general_dilated(y, params["w2"], (stride, stride),
                                 ((1, 1), (1, 1)), dimension_numbers=dn)
    y = jax.nn.relu(bn_apply(y, params["bn2"]))
    y = lax.conv_general_dilated(y, params["w3"][None, None], (1, 1), "VALID",
                                 dimension_numbers=dn)
    y = bn_apply(y, params["bn3"])
    if "w_sc" in params:
        sc = lax.conv_general_dilated(x, params["w_sc"][None, None],
                                      (stride, stride), "VALID",
                                      dimension_numbers=dn)
        sc = bn_apply(sc, params["bn_sc"])
    else:
        sc = x
    out = jax.nn.relu(y + sc)
    return jnp.transpose(out, (0, 3, 1, 2))


# ----------------------------------- main ----------------------------------- #

if __name__ == "__main__":
    base_key = jax.random.PRNGKey(0)

    def check(name, n, in_planes, planes, stride, hh, ww, idx):
        kx, kp = jax.random.split(jax.random.fold_in(base_key, idx))
        x = jax.random.normal(kx, (n, in_planes, hh, ww), jnp.float32)
        params = init_params(kp, in_planes, planes, stride)
        out = jax.block_until_ready(bottleneck_forward(params, x, stride))
        ref = reference_forward(params, x, stride)
        # bf16 matmuls / writeback vs. f32 reference -> loosened tolerance.
        np.testing.assert_allclose(np.asarray(out), np.asarray(ref),
                                   rtol=5e-2, atol=5e-2, err_msg=name)
        ho = (hh - 1) // stride + 1
        wo = (ww - 1) // stride + 1
        assert out.shape == (n, EXPANSION * planes, ho, wo), name

    # main case: projection shortcut, stride 1, x = (2, 4, 16, 16)
    check("proj_s1", 2, 4, 4, 1, 16, 16, 0)
    # identity shortcut (in_planes == expansion * planes), stride 1
    check("identity_s1", 2, 16, 4, 1, 16, 16, 1)
    # downsampling block: projection shortcut, stride 2
    check("proj_s2", 2, 4, 4, 2, 16, 16, 2)

    print("KERNEL_OK")
</pallas_src>

<mosaic_0001>
module attributes {stable_mosaic.version = 11 : i64} {
  func.func @_bottleneck_kernel(%arg0: i32, %arg1: memref<1x480x128xbf16, #tpu.memory_space<vmem>>, %arg2: memref<480x1xf32, #tpu.memory_space<vmem>>, %arg3: memref<128x128xbf16, #tpu.memory_space<vmem>>, %arg4: memref<1x128xf32, #tpu.memory_space<vmem>>, %arg5: memref<1x128xf32, #tpu.memory_space<vmem>>, %arg6: memref<9x128x128xbf16, #tpu.memory_space<vmem>>, %arg7: memref<1x128xf32, #tpu.memory_space<vmem>>, %arg8: memref<1x128xf32, #tpu.memory_space<vmem>>, %arg9: memref<128x128xbf16, #tpu.memory_space<vmem>>, %arg10: memref<1x128xf32, #tpu.memory_space<vmem>>, %arg11: memref<1x128xf32, #tpu.memory_space<vmem>>, %arg12: memref<128x128xbf16, #tpu.memory_space<vmem>>, %arg13: memref<1x128xf32, #tpu.memory_space<vmem>>, %arg14: memref<1x128xf32, #tpu.memory_space<vmem>>, %arg15: memref<1x384x128xbf16, #tpu.memory_space<vmem>>) attributes {dimension_semantics = [#tpu.dimension_semantics<parallel>], iteration_bounds = array<i64: 2>, scalar_prefetch = 0 : i64, scratch_operands = 0 : i64, tpu.core_type = #tpu.core_type<tc>, window_params = [{transform_indices = @transform_0, window_bounds = array<i64: 1, 480, 128>}, {pipeline_mode = #tpu.pipeline_mode<synchronous>, transform_indices = @transform_1, window_bounds = array<i64: 480, 1>}, {pipeline_mode = #tpu.pipeline_mode<synchronous>, transform_indices = @transform_2, window_bounds = array<i64: 128, 128>}, {pipeline_mode = #tpu.pipeline_mode<synchronous>, transform_indices = @transform_3, window_bounds = array<i64: 1, 128>}, {pipeline_mode = #tpu.pipeline_mode<synchronous>, transform_indices = @transform_4, window_bounds = array<i64: 1, 128>}, {pipeline_mode = #tpu.pipeline_mode<synchronous>, transform_indices = @transform_5, window_bounds = array<i64: 9, 128, 128>}, {pipeline_mode = #tpu.pipeline_mode<synchronous>, transform_indices = @transform_6, window_bounds = array<i64: 1, 128>}, {pipeline_mode = #tpu.pipeline_mode<synchronous>, transform_indices = @transform_7, window_bounds = array<i64: 1, 128>}, {pipeline_mode = #tpu.pipeline_mode<synchronous>, transform_indices = @transform_8, window_bounds = array<i64: 128, 128>}, {pipeline_mode = #tpu.pipeline_mode<synchronous>, transform_indices = @transform_9, window_bounds = array<i64: 1, 128>}, {pipeline_mode = #tpu.pipeline_mode<synchronous>, transform_indices = @transform_10, window_bounds = array<i64: 1, 128>}, {pipeline_mode = #tpu.pipeline_mode<synchronous>, transform_indices = @transform_11, window_bounds = array<i64: 128, 128>}, {pipeline_mode = #tpu.pipeline_mode<synchronous>, transform_indices = @transform_12, window_bounds = array<i64: 1, 128>}, {pipeline_mode = #tpu.pipeline_mode<synchronous>, transform_indices = @transform_13, window_bounds = array<i64: 1, 128>}, {transform_indices = @transform_14, window_bounds = array<i64: 1, 384, 128>}]} {
    %c0 = arith.constant 0 : index
    %c0_0 = arith.constant 0 : index
    %c0_1 = arith.constant 0 : index
    %0 = vector.load %arg1[%c0, %c0_0, %c0_1] : memref<1x480x128xbf16, #tpu.memory_space<vmem>>, vector<1x480x128xbf16>
    %1 = vector.shape_cast %0 : vector<1x480x128xbf16> to vector<480x128xbf16>
    %c0_2 = arith.constant 0 : index
    %c0_3 = arith.constant 0 : index
    %2 = vector.load %arg3[%c0_2, %c0_3] : memref<128x128xbf16, #tpu.memory_space<vmem>>, vector<128x128xbf16>
    %cst = arith.constant dense<0.000000e+00> : vector<480x128xf32>
    %3 = tpu.matmul %1, %2, %cst {dimension_numbers = #tpu.dot_dimension_numbers<[1], [0], [0], [1], [0, 0, 1, 1], [], []>} : vector<480x128xbf16>, vector<128x128xbf16>, vector<480x128xf32> -> vector<480x128xf32>
    %c0_4 = arith.constant 0 : index
    %c0_5 = arith.constant 0 : index
    %4 = vector.load %arg4[%c0_4, %c0_5] : memref<1x128xf32, #tpu.memory_space<vmem>>, vector<1x128xf32>
    %5 = vector.broadcast %4 : vector<1x128xf32> to vector<480x128xf32>
    %6 = arith.mulf %3, %5 : vector<480x128xf32>
    %c0_6 = arith.constant 0 : index
    %c0_7 = arith.constant 0 : index
    %7 = vector.load %arg5[%c0_6, %c0_7] : memref<1x128xf32, #tpu.memory_space<vmem>>, vector<1x128xf32>
    %8 = vector.broadcast %7 : vector<1x128xf32> to vector<480x128xf32>
    %9 = arith.addf %6, %8 : vector<480x128xf32>
    %cst_8 = arith.constant 0.000000e+00 : f32
    %10 = vector.broadcast %cst_8 : f32 to vector<480x128xf32>
    %11 = arith.maximumf %9, %10 : vector<480x128xf32>
    %c0_9 = arith.constant 0 : index
    %c0_10 = arith.constant 0 : index
    %12 = vector.load %arg2[%c0_9, %c0_10] : memref<480x1xf32, #tpu.memory_space<vmem>>, vector<480x1xf32>
    %13 = vector.broadcast %12 : vector<480x1xf32> to vector<480x128xf32>
    %14 = arith.mulf %11, %13 : vector<480x128xf32>
    %15 = arith.truncf %14 : vector<480x128xf32> to vector<480x128xbf16>
    %16 = vector.extract_strided_slice %15 {offsets = [23, 0], sizes = [432, 128], strides = [1, 1]} : vector<480x128xbf16> to vector<432x128xbf16>
    %17 = vector.extract_strided_slice %16 {offsets = [0, 0], sizes = [384, 128], strides = [1, 1]} : vector<432x128xbf16> to vector<384x128xbf16>
    %c0_11 = arith.constant 0 : index
    %c0_12 = arith.constant 0 : index
    %c0_13 = arith.constant 0 : index
    %18 = vector.load %arg6[%c0_11, %c0_12, %c0_13] : memref<9x128x128xbf16, #tpu.memory_space<vmem>>, vector<1x128x128xbf16>
    %19 = vector.shape_cast %18 : vector<1x128x128xbf16> to vector<128x128xbf16>
    %cst_14 = arith.constant dense<0.000000e+00> : vector<384x128xf32>
    %20 = tpu.matmul %17, %19, %cst_14 {dimension_numbers = #tpu.dot_dimension_numbers<[1], [0], [0], [1], [0, 0, 1, 1], [], []>} : vector<384x128xbf16>, vector<128x128xbf16>, vector<384x128xf32> -> vector<384x128xf32>
    %21 = vector.extract_strided_slice %16 {offsets = [24, 0], sizes = [384, 128], strides = [1, 1]} : vector<432x128xbf16> to vector<384x128xbf16>
    %c3 = arith.constant 3 : index
    %c0_15 = arith.constant 0 : index
    %c0_16 = arith.constant 0 : index
    %22 = vector.load %arg6[%c3, %c0_15, %c0_16] : memref<9x128x128xbf16, #tpu.memory_space<vmem>>, vector<1x128x128xbf16>
    %23 = vector.shape_cast %22 : vector<1x128x128xbf16> to vector<128x128xbf16>
    %cst_17 = arith.constant dense<0.000000e+00> : vector<384x128xf32>
    %24 = tpu.matmul %21, %23, %cst_17 {dimension_numbers = #tpu.dot_dimension_numbers<[1], [0], [0], [1], [0, 0, 1, 1], [], []>} : vector<384x128xbf16>, vector<128x128xbf16>, vector<384x128xf32> -> vector<384x128xf32>
    %25 = arith.addf %20, %24 : vector<384x128xf32>
    %26 = vector.extract_strided_slice %16 {offsets = [48, 0], sizes = [384, 128], strides = [1, 1]} : vector<432x128xbf16> to vector<384x128xbf16>
    %c6 = arith.constant 6 : index
    %c0_18 = arith.constant 0 : index
    %c0_19 = arith.constant 0 : index
    %27 = vector.load %arg6[%c6, %c0_18, %c0_19] : memref<9x128x128xbf16, #tpu.memory_space<vmem>>, vector<1x128x128xbf16>
    %28 = vector.shape_cast %27 : vector<1x128x128xbf16> to vector<128x128xbf16>
    %cst_20 = arith.constant dense<0.000000e+00> : vector<384x128xf32>
    %29 = tpu.matmul %26, %28, %cst_20 {dimension_numbers = #tpu.dot_dimension_numbers<[1], [0], [0], [1], [0, 0, 1, 1], [], []>} : vector<384x128xbf16>, vector<128x128xbf16>, vector<384x128xf32> -> vector<384x128xf32>
    %30 = arith.addf %25, %29 : vector<384x128xf32>
    %31 = vector.extract_strided_slice %15 {offsets = [24, 0], sizes = [432, 128], strides = [1, 1]} : vector<480x128xbf16> to vector<432x128xbf16>
    %32 = vector.extract_strided_slice %31 {offsets = [0, 0], sizes = [384, 128], strides = [1, 1]} : vector<432x128xbf16> to vector<384x128xbf16>
    %c1 = arith.constant 1 : index
    %c0_21 = arith.constant 0 : index
    %c0_22 = arith.constant 0 : index
    %33 = vector.load %arg6[%c1, %c0_21, %c0_22] : memref<9x128x128xbf16, #tpu.memory_space<vmem>>, vector<1x128x128xbf16>
    %34 = vector.shape_cast %33 : vector<1x128x128xbf16> to vector<128x128xbf16>
    %cst_23 = arith.constant dense<0.000000e+00> : vector<384x128xf32>
    %35 = tpu.matmul %32, %34, %cst_23 {dimension_numbers = #tpu.dot_dimension_numbers<[1], [0], [0], [1], [0, 0, 1, 1], [], []>} : vector<384x128xbf16>, vector<128x128xbf16>, vector<384x128xf32> -> vector<384x128xf32>
    %36 = arith.addf %30, %35 : vector<384x128xf32>
    %37 = vector.extract_strided_slice %31 {offsets = [24, 0], sizes = [384, 128], strides = [1, 1]} : vector<432x128xbf16> to vector<384x128xbf16>
    %c4 = arith.constant 4 : index
    %c0_24 = arith.constant 0 : index
    %c0_25 = arith.constant 0 : index
    %38 = vector.load %arg6[%c4, %c0_24, %c0_25] : memref<9x128x128xbf16, #tpu.memory_space<vmem>>, vector<1x128x128xbf16>
    %39 = vector.shape_cast %38 : vector<1x128x128xbf16> to vector<128x128xbf16>
    %cst_26 = arith.constant dense<0.000000e+00> : vector<384x128xf32>
    %40 = tpu.matmul %37, %39, %cst_26 {dimension_numbers = #tpu.dot_dimension_numbers<[1], [0], [0], [1], [0, 0, 1, 1], [], []>} : vector<384x128xbf16>, vector<128x128xbf16>, vector<384x128xf32> -> vector<384x128xf32>
    %41 = arith.addf %36, %40 : vector<384x128xf32>
    %42 = vector.extract_strided_slice %31 {offsets = [48, 0], sizes = [384, 128], strides = [1, 1]} : vector<432x128xbf16> to vector<384x128xbf16>
    %c7 = arith.constant 7 : index
    %c0_27 = arith.constant 0 : index
    %c0_28 = arith.constant 0 : index
    %43 = vector.load %arg6[%c7, %c0_27, %c0_28] : memref<9x128x128xbf16, #tpu.memory_space<vmem>>, vector<1x128x128xbf16>
    %44 = vector.shape_cast %43 : vector<1x128x128xbf16> to vector<128x128xbf16>
    %cst_29 = arith.constant dense<0.000000e+00> : vector<384x128xf32>
    %45 = tpu.matmul %42, %44, %cst_29 {dimension_numbers = #tpu.dot_dimension_numbers<[1], [0], [0], [1], [0, 0, 1, 1], [], []>} : vector<384x128xbf16>, vector<128x128xbf16>, vector<384x128xf32> -> vector<384x128xf32>
    %46 = arith.addf %41, %45 : vector<384x128xf32>
    %47 = vector.extract_strided_slice %15 {offsets = [25, 0], sizes = [432, 128], strides = [1, 1]} : vector<480x128xbf16> to vector<432x128xbf16>
    %48 = vector.extract_strided_slice %47 {offsets = [0, 0], sizes = [384, 128], strides = [1, 1]} : vector<432x128xbf16> to vector<384x128xbf16>
    %c2 = arith.constant 2 : index
    %c0_30 = arith.constant 0 : index
    %c0_31 = arith.constant 0 : index
    %49 = vector.load %arg6[%c2, %c0_30, %c0_31] : memref<9x128x128xbf16, #tpu.memory_space<vmem>>, vector<1x128x128xbf16>
    %50 = vector.shape_cast %49 : vector<1x128x128xbf16> to vector<128x128xbf16>
    %cst_32 = arith.constant dense<0.000000e+00> : vector<384x128xf32>
    %51 = tpu.matmul %48, %50, %cst_32 {dimension_numbers = #tpu.dot_dimension_numbers<[1], [0], [0], [1], [0, 0, 1, 1], [], []>} : vector<384x128xbf16>, vector<128x128xbf16>, vector<384x128xf32> -> vector<384x128xf32>
    %52 = arith.addf %46, %51 : vector<384x128xf32>
    %53 = vector.extract_strided_slice %47 {offsets = [24, 0], sizes = [384, 128], strides = [1, 1]} : vector<432x128xbf16> to vector<384x128xbf16>
    %c5 = arith.constant 5 : index
    %c0_33 = arith.constant 0 : index
    %c0_34 = arith.constant 0 : index
    %54 = vector.load %arg6[%c5, %c0_33, %c0_34] : memref<9x128x128xbf16, #tpu.memory_space<vmem>>, vector<1x128x128xbf16>
    %55 = vector.shape_cast %54 : vector<1x128x128xbf16> to vector<128x128xbf16>
    %cst_35 = arith.constant dense<0.000000e+00> : vector<384x128xf32>
    %56 = tpu.matmul %53, %55, %cst_35 {dimension_numbers = #tpu.dot_dimension_numbers<[1], [0], [0], [1], [0, 0, 1, 1], [], []>} : vector<384x128xbf16>, vector<128x128xbf16>, vector<384x128xf32> -> vector<384x128xf32>
    %57 = arith.addf %52, %56 : vector<384x128xf32>
    %58 = vector.extract_strided_slice %47 {offsets = [48, 0], sizes = [384, 128], strides = [1, 1]} : vector<432x128xbf16> to vector<384x128xbf16>
    %c8 = arith.constant 8 : index
    %c0_36 = arith.constant 0 : index
    %c0_37 = arith.constant 0 : index
    %59 = vector.load %arg6[%c8, %c0_36, %c0_37] : memref<9x128x128xbf16, #tpu.memory_space<vmem>>, vector<1x128x128xbf16>
    %60 = vector.shape_cast %59 : vector<1x128x128xbf16> to vector<128x128xbf16>
    %cst_38 = arith.constant dense<0.000000e+00> : vector<384x128xf32>
    %61 = tpu.matmul %58, %60, %cst_38 {dimension_numbers = #tpu.dot_dimension_numbers<[1], [0], [0], [1], [0, 0, 1, 1], [], []>} : vector<384x128xbf16>, vector<128x128xbf16>, vector<384x128xf32> -> vector<384x128xf32>
    %62 = arith.addf %57, %61 : vector<384x128xf32>
    %c0_39 = arith.constant 0 : index
    %c0_40 = arith.constant 0 : index
    %63 = vector.load %arg7[%c0_39, %c0_40] : memref<1x128xf32, #tpu.memory_space<vmem>>, vector<1x128xf32>
    %64 = vector.broadcast %63 : vector<1x128xf32> to vector<384x128xf32>
    %65 = arith.mulf %62, %64 : vector<384x128xf32>
    %c0_41 = arith.constant 0 : index
    %c0_42 = arith.constant 0 : index
    %66 = vector.load %arg8[%c0_41, %c0_42] : memref<1x128xf32, #tpu.memory_space<vmem>>, vector<1x128xf32>
    %67 = vector.broadcast %66 : vector<1x128xf32> to vector<384x128xf32>
    %68 = arith.addf %65, %67 : vector<384x128xf32>
    %cst_43 = arith.constant 0.000000e+00 : f32
    %69 = vector.broadcast %cst_43 : f32 to vector<384x128xf32>
    %70 = arith.maximumf %68, %69 : vector<384x128xf32>
    %71 = arith.truncf %70 : vector<384x128xf32> to vector<384x128xbf16>
    %c0_44 = arith.constant 0 : index
    %c0_45 = arith.constant 0 : index
    %72 = vector.load %arg9[%c0_44, %c0_45] : memref<128x128xbf16, #tpu.memory_space<vmem>>, vector<128x128xbf16>
    %cst_46 = arith.constant dense<0.000000e+00> : vector<384x128xf32>
    %73 = tpu.matmul %71, %72, %cst_46 {dimension_numbers = #tpu.dot_dimension_numbers<[1], [0], [0], [1], [0, 0, 1, 1], [], []>} : vector<384x128xbf16>, vector<128x128xbf16>, vector<384x128xf32> -> vector<384x128xf32>
    %c0_47 = arith.constant 0 : index
    %c0_48 = arith.constant 0 : index
    %74 = vector.load %arg10[%c0_47, %c0_48] : memref<1x128xf32, #tpu.memory_space<vmem>>, vector<1x128xf32>
    %75 = vector.broadcast %74 : vector<1x128xf32> to vector<384x128xf32>
    %76 = arith.mulf %73, %75 : vector<384x128xf32>
    %c0_49 = arith.constant 0 : index
    %c0_50 = arith.constant 0 : index
    %77 = vector.load %arg11[%c0_49, %c0_50] : memref<1x128xf32, #tpu.memory_space<vmem>>, vector<1x128xf32>
    %78 = vector.broadcast %77 : vector<1x128xf32> to vector<384x128xf32>
    %79 = arith.addf %76, %78 : vector<384x128xf32>
    %80 = vector.extract_strided_slice %1 {offsets = [48, 0], sizes = [384, 128], strides = [1, 1]} : vector<480x128xbf16> to vector<384x128xbf16>
    %c0_51 = arith.constant 0 : index
    %c0_52 = arith.constant 0 : index
    %81 = vector.load %arg12[%c0_51, %c0_52] : memref<128x128xbf16, #tpu.memory_space<vmem>>, vector<128x128xbf16>
    %cst_53 = arith.constant dense<0.000000e+00> : vector<384x128xf32>
    %82 = tpu.matmul %80, %81, %cst_53 {dimension_numbers = #tpu.dot_dimension_numbers<[1], [0], [0], [1], [0, 0, 1, 1], [], []>} : vector<384x128xbf16>, vector<128x128xbf16>, vector<384x128xf32> -> vector<384x128xf32>
    %c0_54 = arith.constant 0 : index
    %c0_55 = arith.constant 0 : index
    %83 = vector.load %arg13[%c0_54, %c0_55] : memref<1x128xf32, #tpu.memory_space<vmem>>, vector<1x128xf32>
    %84 = vector.broadcast %83 : vector<1x128xf32> to vector<384x128xf32>
    %85 = arith.mulf %82, %84 : vector<384x128xf32>
    %c0_56 = arith.constant 0 : index
    %c0_57 = arith.constant 0 : index
    %86 = vector.load %arg14[%c0_56, %c0_57] : memref<1x128xf32, #tpu.memory_space<vmem>>, vector<1x128xf32>
    %87 = vector.broadcast %86 : vector<1x128xf32> to vector<384x128xf32>
    %88 = arith.addf %85, %87 : vector<384x128xf32>
    %89 = arith.addf %79, %88 : vector<384x128xf32>
    %cst_58 = arith.constant 0.000000e+00 : f32
    %90 = vector.broadcast %cst_58 : f32 to vector<384x128xf32>
    %91 = arith.maximumf %89, %90 : vector<384x128xf32>
    %92 = arith.truncf %91 : vector<384x128xf32> to vector<384x128xbf16>
    %c0_59 = arith.constant 0 : index
    %c0_60 = arith.constant 0 : index
    %c0_61 = arith.constant 0 : index
    %93 = vector.load %arg15[%c0_59, %c0_60, %c0_61] : memref<1x384x128xbf16, #tpu.memory_space<vmem>>, vector<1x384x128xbf16>
    %94 = vector.shape_cast %93 : vector<1x384x128xbf16> to vector<384x128xbf16>
    %95 = vector.shape_cast %92 : vector<384x128xbf16> to vector<1x384x128xbf16>
    tpu.vector_store %arg15[%c0_59, %c0_60, %c0_61], %95 {strides = array<i32>} : memref<1x384x128xbf16, #tpu.memory_space<vmem>>, vector<1x384x128xbf16>,
    return
  }
  func.func @transform_0(%arg0: i32) -> (i32, i32, i32) {
    %c0_i32 = arith.constant 0 : i32
    %c0_i32_0 = arith.constant 0 : i32
    %c0_i32_1 = arith.constant 0 : i32
    return %arg0, %c0_i32, %c0_i32_0 : i32, i32, i32
  }
  func.func @transform_1(%arg0: i32) -> (i32, i32) {
    %c0_i32 = arith.constant 0 : i32
    %c0_i32_0 = arith.constant 0 : i32
    %c0_i32_1 = arith.constant 0 : i32
    return %c0_i32, %c0_i32_0 : i32, i32
  }
  func.func @transform_2(%arg0: i32) -> (i32, i32) {
    %c0_i32 = arith.constant 0 : i32
    %c0_i32_0 = arith.constant 0 : i32
    %c0_i32_1 = arith.constant 0 : i32
    return %c0_i32, %c0_i32_0 : i32, i32
  }
  func.func @transform_3(%arg0: i32) -> (i32, i32) {
    %c0_i32 = arith.constant 0 : i32
    %c0_i32_0 = arith.constant 0 : i32
    %c0_i32_1 = arith.constant 0 : i32
    return %c0_i32, %c0_i32_0 : i32, i32
  }
  func.func @transform_4(%arg0: i32) -> (i32, i32) {
    %c0_i32 = arith.constant 0 : i32
    %c0_i32_0 = arith.constant 0 : i32
    %c0_i32_1 = arith.constant 0 : i32
    return %c0_i32, %c0_i32_0 : i32, i32
  }
  func.func @transform_5(%arg0: i32) -> (i32, i32, i32) {
    %c0_i32 = arith.constant 0 : i32
    %c0_i32_0 = arith.constant 0 : i32
    %c0_i32_1 = arith.constant 0 : i32
    %c0_i32_2 = arith.constant 0 : i32
    return %c0_i32, %c0_i32_0, %c0_i32_1 : i32, i32, i32
  }
  func.func @transform_6(%arg0: i32) -> (i32, i32) {
    %c0_i32 = arith.constant 0 : i32
    %c0_i32_0 = arith.constant 0 : i32
    %c0_i32_1 = arith.constant 0 : i32
    return %c0_i32, %c0_i32_0 : i32, i32
  }
  func.func @transform_7(%arg0: i32) -> (i32, i32) {
    %c0_i32 = arith.constant 0 : i32
    %c0_i32_0 = arith.constant 0 : i32
    %c0_i32_1 = arith.constant 0 : i32
    return %c0_i32, %c0_i32_0 : i32, i32
  }
  func.func @transform_8(%arg0: i32) -> (i32, i32) {
    %c0_i32 = arith.constant 0 : i32
    %c0_i32_0 = arith.constant 0 : i32
    %c0_i32_1 = arith.constant 0 : i32
    return %c0_i32, %c0_i32_0 : i32, i32
  }
  func.func @transform_9(%arg0: i32) -> (i32, i32) {
    %c0_i32 = arith.constant 0 : i32
    %c0_i32_0 = arith.constant 0 : i32
    %c0_i32_1 = arith.constant 0 : i32
    return %c0_i32, %c0_i32_0 : i32, i32
  }
  func.func @transform_10(%arg0: i32) -> (i32, i32) {
    %c0_i32 = arith.constant 0 : i32
    %c0_i32_0 = arith.constant 0 : i32
    %c0_i32_1 = arith.constant 0 : i32
    return %c0_i32, %c0_i32_0 : i32, i32
  }
  func.func @transform_11(%arg0: i32) -> (i32, i32) {
    %c0_i32 = arith.constant 0 : i32
    %c0_i32_0 = arith.constant 0 : i32
    %c0_i32_1 = arith.constant 0 : i32
    return %c0_i32, %c0_i32_0 : i32, i32
  }
  func.func @transform_12(%arg0: i32) -> (i32, i32) {
    %c0_i32 = arith.constant 0 : i32
    %c0_i32_0 = arith.constant 0 : i32
    %c0_i32_1 = arith.constant 0 : i32
    return %c0_i32, %c0_i32_0 : i32, i32
  }
  func.func @transform_13(%arg0: i32) -> (i32, i32) {
    %c0_i32 = arith.constant 0 : i32
    %c0_i32_0 = arith.constant 0 : i32
    %c0_i32_1 = arith.constant 0 : i32
    return %c0_i32, %c0_i32_0 : i32, i32
  }
  func.func @transform_14(%arg0: i32) -> (i32, i32, i32) {
    %c0_i32 = arith.constant 0 : i32
    %c0_i32_0 = arith.constant 0 : i32
    %c0_i32_1 = arith.constant 0 : i32
    return %arg0, %c0_i32, %c0_i32_0 : i32, i32, i32
  }
}

</mosaic_0001>

<llo_original>
// kernel: tpu_custom_call.1
$region0: #{tpu_custom_call.1}
  #allocation0 [shape = 'u32[]', space=smem, size = 0x4, offset = 0x4, fixed_abs, tag = 'smem constant byte address 0x4 - core index']
  #allocation1 [shape = 'u32[72,128]{1,0:T(1,128)}', space=vmem, size = 0x9000, scoped, tag = 'internal scratch']
  %s0 = inlined_call_operand.vmem [shape: bf16[2,480,128], index: 0, kind: input, shape index: {}]
  %s1 = inlined_call_operand.vmem [shape: f32[480,1], index: 1, kind: input, shape index: {}]
  %s2 = inlined_call_operand.hbm [shape: bf16[128,128], index: 2, kind: input, shape index: {}]
  %s3 = inlined_call_operand.vmem [shape: f32[1,128], index: 3, kind: input, shape index: {}]
  %s4 = inlined_call_operand.vmem [shape: f32[1,128], index: 4, kind: input, shape index: {}]
  %s5 = inlined_call_operand.hbm [shape: bf16[9,128,128], index: 5, kind: input, shape index: {}]
  %s6 = inlined_call_operand.vmem [shape: f32[1,128], index: 6, kind: input, shape index: {}]
  %s7 = inlined_call_operand.vmem [shape: f32[1,128], index: 7, kind: input, shape index: {}]
  %s8 = inlined_call_operand.hbm [shape: bf16[128,128], index: 8, kind: input, shape index: {}]
  %s9 = inlined_call_operand.vmem [shape: f32[1,128], index: 9, kind: input, shape index: {}]
  %s10 = inlined_call_operand.vmem [shape: f32[1,128], index: 10, kind: input, shape index: {}]
  %s11 = inlined_call_operand.hbm [shape: bf16[128,128], index: 11, kind: input, shape index: {}]
  %s12 = inlined_call_operand.vmem [shape: f32[1,128], index: 12, kind: input, shape index: {}]
  %s13 = inlined_call_operand.vmem [shape: f32[1,128], index: 13, kind: input, shape index: {}]
  %s14 = inlined_call_operand.hbm [shape: bf16[2,384,128], index: 14, kind: output, shape index: {}]
  %s15 = sld [smem:[#allocation0]]
  $region105: #{tpu_custom_call.1} parent=0
    _
  %s17 = ssub.s32 1, %s15
  %s18 = scalar_select 0, %s17, %s15
  $region1: #{tpu_custom_call.1} parent=0
    #allocation2 [shape = 'u8[32768]{0}', space=vmem, size = 0x8000, scoped, tag = 'input window, operand 2, single buffered']
    #allocation3 [shape = 's32[2]{0}', space=sflag, size = 0x8, scoped, tag = 'scoped memory for tpu_custom_call.1']
    #allocation4 [shape = 's32[2]{0}', space=sflag, size = 0x8, scoped, tag = 'scoped memory for tpu_custom_call.1']
    #allocation5 [shape = 'u8[294912]{0}', space=vmem, size = 0x48000, scoped, tag = 'input window, operand 5, single buffered']
    #allocation6 [shape = 's32[1]{0}', space=sflag, size = 0x4, scoped, tag = 'scoped memory for tpu_custom_call.1']
    #allocation7 [shape = 'u8[32768]{0}', space=vmem, size = 0x8000, scoped, tag = 'input window, operand 8, single buffered']
    #allocation8 [shape = 'u8[32768]{0}', space=vmem, size = 0x8000, scoped, tag = 'input window, operand 11, single buffered']
    #allocation9 [shape = 's32[1]{0}', space=sflag, size = 0x4, scoped, tag = 'scoped memory for tpu_custom_call.1']
    #allocation10 [shape = 'u8[196608]{0}', space=vmem, size = 0x30000, scoped, tag = 'output window, operand 0']
    %19 = vsyncpa [#allocation3], 0
    %20 = vsyncpa [#allocation6], 0
    %21 = vsyncpa [#allocation9], 0
    %22 = vsyncpa [#allocation4], 0
    %s23 = scalar_lea.sflag [#allocation4], 1
    %24 = vsyncpa %s23, 0
    loop: start=0, step=1, limit=4
    $region2: #{tpu_custom_call.1} parent=1 // loop_pre_header
      _
    $region3: #{tpu_custom_call.1} parent=1 // loop_header
      %s26 = sphi 0, %s30
      %p27 = scmp.ge.s32.totalorder %s26, 4
      %s36 = sphi 0, %s38
      %s39 = sphi 0, %s36
      %s40 = sphi 0, %s39
      %s56 = sphi 0, %s40
      %s60 = sphi 0, %s60
      %s62 = sphi 0, %s60
      %s63 = sphi 0, %s62
      %s77 = sphi 0, %s63
      %s81 = sphi 0, %s81
      %s83 = sphi 0, %s81
      %s84 = sphi 0, %s83
      %s98 = sphi 0, %s84
      %s102 = sphi 0, %s102
      %s104 = sphi 0, %s102
      %s105 = sphi 0, %s104
      %s119 = sphi 0, %s105
      %s123 = sphi 0, %s123
      %s125 = sphi 0, %s123
      %s126 = sphi 0, %s125
      %s140 = sphi 0, %s126
      %s144 = sphi 0, %s144
      %s146 = sphi 0, %s144
      %s147 = sphi 0, %s146
      %s161 = sphi 0, %s147
      %s165 = sphi 0, %s165
      %s167 = sphi 0, %s165
      %s168 = sphi 0, %s167
      %s182 = sphi 0, %s168
      %s186 = sphi 0, %s186
      %s188 = sphi 0, %s186
      %s189 = sphi 0, %s188
      %s203 = sphi 0, %s189
      %s207 = sphi 0, %s207
      %s209 = sphi 0, %s207
      %s210 = sphi 0, %s209
      %s224 = sphi 0, %s210
      %s228 = sphi 0, %s228
      %s230 = sphi 0, %s228
      %s231 = sphi 0, %s230
      %s245 = sphi 0, %s231
      %s249 = sphi 0, %s249
      %s251 = sphi 0, %s249
      %s252 = sphi 0, %s251
      %s266 = sphi 0, %s252
      %s270 = sphi 0, %s270
      %s272 = sphi 0, %s270
      %s273 = sphi 0, %s272
      %s287 = sphi 0, %s273
      %s291 = sphi 0, %s291
      %s293 = sphi 0, %s291
      %s294 = sphi 0, %s293
      %s308 = sphi 0, %s294
      %s312 = sphi 0, %s312
      %s314 = sphi 0, %s312
      %s315 = sphi 0, %s314
      %s329 = sphi 0, %s315
      %s335 = sphi 0, %s337
      %s338 = sphi 0, %s335
      %s339 = sphi 0, %s338
      %s355 = sphi 0, %s339
    $region4: #{tpu_custom_call.1} parent=1 // loop_header_branch
      %29 = sbr.rel (%p27) target = $region8
    $region5: #{tpu_custom_call.1} parent=1 // loop_body
      %s31 = ssub.s32 %s26, 1
      %s32 = ssub.s32 %s26, 2
      %s33 = sadd.s32 %s26, 1
      %s34 = ssub.s32 %s26, %s33
      %p35 = scmp.eq.s32.totalorder %s34, 0
      %s37 = sadd.s32 %s36, 1
      %s38 = scalar_select %p35, %s36, %s37
      %p41 = pneg %p35
      %p42 = scmp.eq.s32.totalorder %s26, 1
      %p43 = por %p41, %p42
      %p44 = scmp.ne.s32.totalorder %s36, %s39
      %p45 = scmp.eq.s32.totalorder %s26, 0
      %p46 = por %p44, %p45
      %p47 = scmp.ne.s32.totalorder %s36, %s39
      %p48 = scmp.eq.s32.totalorder %s31, 1
      %p49 = por %p47, %p48
      %p50 = scmp.ne.s32.totalorder %s39, %s40
      %p51 = scmp.eq.s32.totalorder %s31, 0
      %p52 = por %p50, %p51
      %p53 = scmp.ne.s32.totalorder %s39, %s40
      %p54 = scmp.eq.s32.totalorder %s32, 1
      %p55 = por %p53, %p54
      %p57 = scmp.ne.s32.totalorder %s40, %s56
      %p58 = scmp.eq.s32.totalorder %s32, 0
      %p59 = por %p57, %p58
      %s61 = sadd.s32 %s60, 1
      %p64 = scmp.eq.s32.totalorder %s26, 1
      %p65 = scmp.ne.s32.totalorder %s60, %s62
      %p66 = scmp.eq.s32.totalorder %s26, 0
      %p67 = por %p65, %p66
      %p68 = scmp.ne.s32.totalorder %s60, %s62
      %p69 = scmp.eq.s32.totalorder %s31, 1
      %p70 = por %p68, %p69
      %p71 = scmp.ne.s32.totalorder %s62, %s63
      %p72 = scmp.eq.s32.totalorder %s31, 0
      %p73 = por %p71, %p72
      %p74 = scmp.ne.s32.totalorder %s62, %s63
      %p75 = scmp.eq.s32.totalorder %s32, 1
      %p76 = por %p74, %p75
      %p78 = scmp.ne.s32.totalorder %s63, %s77
      %p79 = scmp.eq.s32.totalorder %s32, 0
      %p80 = por %p78, %p79
      %s82 = sadd.s32 %s81, 1
      %p85 = scmp.eq.s32.totalorder %s26, 1
      %p86 = scmp.ne.s32.totalorder %s81, %s83
      %p87 = scmp.eq.s32.totalorder %s26, 0
      %p88 = por %p86, %p87
      %p89 = scmp.ne.s32.totalorder %s81, %s83
      %p90 = scmp.eq.s32.totalorder %s31, 1
      %p91 = por %p89, %p90
      %p92 = scmp.ne.s32.totalorder %s83, %s84
      %p93 = scmp.eq.s32.totalorder %s31, 0
      %p94 = por %p92, %p93
      %p95 = scmp.ne.s32.totalorder %s83, %s84
      %p96 = scmp.eq.s32.totalorder %s32, 1
      %p97 = por %p95, %p96
      %p99 = scmp.ne.s32.totalorder %s84, %s98
      %p100 = scmp.eq.s32.totalorder %s32, 0
      %p101 = por %p99, %p100
      %s103 = sadd.s32 %s102, 1
      %p106 = scmp.eq.s32.totalorder %s26, 1
      %p107 = scmp.ne.s32.totalorder %s102, %s104
      %p108 = scmp.eq.s32.totalorder %s26, 0
      %p109 = por %p107, %p108
      %p110 = scmp.ne.s32.totalorder %s102, %s104
      %p111 = scmp.eq.s32.totalorder %s31, 1
      %p112 = por %p110, %p111
      %p113 = scmp.ne.s32.totalorder %s104, %s105
      %p114 = scmp.eq.s32.totalorder %s31, 0
      %p115 = por %p113, %p114
      %p116 = scmp.ne.s32.totalorder %s104, %s105
      %p117 = scmp.eq.s32.totalorder %s32, 1
      %p118 = por %p116, %p117
      %p120 = scmp.ne.s32.totalorder %s105, %s119
      %p121 = scmp.eq.s32.totalorder %s32, 0
      %p122 = por %p120, %p121
      %s124 = sadd.s32 %s123, 1
      %p127 = scmp.eq.s32.totalorder %s26, 1
      %p128 = scmp.ne.s32.totalorder %s123, %s125
      %p129 = scmp.eq.s32.totalorder %s26, 0
      %p130 = por %p128, %p129
      %p131 = scmp.ne.s32.totalorder %s123, %s125
      %p132 = scmp.eq.s32.totalorder %s31, 1
      %p133 = por %p131, %p132
      %p134 = scmp.ne.s32.totalorder %s125, %s126
      %p135 = scmp.eq.s32.totalorder %s31, 0
      %p136 = por %p134, %p135
      %p137 = scmp.ne.s32.totalorder %s125, %s126
      %p138 = scmp.eq.s32.totalorder %s32, 1
      %p139 = por %p137, %p138
      %p141 = scmp.ne.s32.totalorder %s126, %s140
      %p142 = scmp.eq.s32.totalorder %s32, 0
      %p143 = por %p141, %p142
      %s145 = sadd.s32 %s144, 1
      %p148 = scmp.eq.s32.totalorder %s26, 1
      %p149 = scmp.ne.s32.totalorder %s144, %s146
      %p150 = scmp.eq.s32.totalorder %s26, 0
      %p151 = por %p149, %p150
      %p152 = scmp.ne.s32.totalorder %s144, %s146
      %p153 = scmp.eq.s32.totalorder %s31, 1
      %p154 = por %p152, %p153
      %p155 = scmp.ne.s32.totalorder %s146, %s147
      %p156 = scmp.eq.s32.totalorder %s31, 0
      %p157 = por %p155, %p156
      %p158 = scmp.ne.s32.totalorder %s146, %s147
      %p159 = scmp.eq.s32.totalorder %s32, 1
      %p160 = por %p158, %p159
      %p162 = scmp.ne.s32.totalorder %s147, %s161
      %p163 = scmp.eq.s32.totalorder %s32, 0
      %p164 = por %p162, %p163
      %s166 = sadd.s32 %s165, 1
      %p169 = scmp.eq.s32.totalorder %s26, 1
      %p170 = scmp.ne.s32.totalorder %s165, %s167
      %p171 = scmp.eq.s32.totalorder %s26, 0
      %p172 = por %p170, %p171
      %p173 = scmp.ne.s32.totalorder %s165, %s167
      %p174 = scmp.eq.s32.totalorder %s31, 1
      %p175 = por %p173, %p174
      %p176 = scmp.ne.s32.totalorder %s167, %s168
      %p177 = scmp.eq.s32.totalorder %s31, 0
      %p178 = por %p176, %p177
      %p179 = scmp.ne.s32.totalorder %s167, %s168
      %p180 = scmp.eq.s32.totalorder %s32, 1
      %p181 = por %p179, %p180
      %p183 = scmp.ne.s32.totalorder %s168, %s182
      %p184 = scmp.eq.s32.totalorder %s32, 0
      %p185 = por %p183, %p184
      %s187 = sadd.s32 %s186, 1
      %p190 = scmp.eq.s32.totalorder %s26, 1
      %p191 = scmp.ne.s32.totalorder %s186, %s188
      %p192 = scmp.eq.s32.totalorder %s26, 0
      %p193 = por %p191, %p192
      %p194 = scmp.ne.s32.totalorder %s186, %s188
      %p195 = scmp.eq.s32.totalorder %s31, 1
      %p196 = por %p194, %p195
      %p197 = scmp.ne.s32.totalorder %s188, %s189
      %p198 = scmp.eq.s32.totalorder %s31, 0
      %p199 = por %p197, %p198
      %p200 = scmp.ne.s32.totalorder %s188, %s189
      %p201 = scmp.eq.s32.totalorder %s32, 1
      %p202 = por %p200, %p201
      %p204 = scmp.ne.s32.totalorder %s189, %s203
      %p205 = scmp.eq.s32.totalorder %s32, 0
      %p206 = por %p204, %p205
      %s208 = sadd.s32 %s207, 1
      %p211 = scmp.eq.s32.totalorder %s26, 1
      %p212 = scmp.ne.s32.totalorder %s207, %s209
      %p213 = scmp.eq.s32.totalorder %s26, 0
      %p214 = por %p212, %p213
      %p215 = scmp.ne.s32.totalorder %s207, %s209
      %p216 = scmp.eq.s32.totalorder %s31, 1
      %p217 = por %p215, %p216
      %p218 = scmp.ne.s32.totalorder %s209, %s210
      %p219 = scmp.eq.s32.totalorder %s31, 0
      %p220 = por %p218, %p219
      %p221 = scmp.ne.s32.totalorder %s209, %s210
      %p222 = scmp.eq.s32.totalorder %s32, 1
      %p223 = por %p221, %p222
      %p225 = scmp.ne.s32.totalorder %s210, %s224
      %p226 = scmp.eq.s32.totalorder %s32, 0
      %p227 = por %p225, %p226
      %s229 = sadd.s32 %s228, 1
      %p232 = scmp.eq.s32.totalorder %s26, 1
      %p233 = scmp.ne.s32.totalorder %s228, %s230
      %p234 = scmp.eq.s32.totalorder %s26, 0
      %p235 = por %p233, %p234
      %p236 = scmp.ne.s32.totalorder %s228, %s230
      %p237 = scmp.eq.s32.totalorder %s31, 1
      %p238 = por %p236, %p237
      %p239 = scmp.ne.s32.totalorder %s230, %s231
      %p240 = scmp.eq.s32.totalorder %s31, 0
      %p241 = por %p239, %p240
      %p242 = scmp.ne.s32.totalorder %s230, %s231
      %p243 = scmp.eq.s32.totalorder %s32, 1
      %p244 = por %p242, %p243
      %p246 = scmp.ne.s32.totalorder %s231, %s245
      %p247 = scmp.eq.s32.totalorder %s32, 0
      %p248 = por %p246, %p247
      %s250 = sadd.s32 %s249, 1
      %p253 = scmp.eq.s32.totalorder %s26, 1
      %p254 = scmp.ne.s32.totalorder %s249, %s251
      %p255 = scmp.eq.s32.totalorder %s26, 0
      %p256 = por %p254, %p255
      %p257 = scmp.ne.s32.totalorder %s249, %s251
      %p258 = scmp.eq.s32.totalorder %s31, 1
      %p259 = por %p257, %p258
      %p260 = scmp.ne.s32.totalorder %s251, %s252
      %p261 = scmp.eq.s32.totalorder %s31, 0
      %p262 = por %p260, %p261
      %p263 = scmp.ne.s32.totalorder %s251, %s252
      %p264 = scmp.eq.s32.totalorder %s32, 1
      %p265 = por %p263, %p264
      %p267 = scmp.ne.s32.totalorder %s252, %s266
      %p268 = scmp.eq.s32.totalorder %s32, 0
      %p269 = por %p267, %p268
      %s271 = sadd.s32 %s270, 1
      %p274 = scmp.eq.s32.totalorder %s26, 1
      %p275 = scmp.ne.s32.totalorder %s270, %s272
      %p276 = scmp.eq.s32.totalorder %s26, 0
      %p277 = por %p275, %p276
      %p278 = scmp.ne.s32.totalorder %s270, %s272
      %p279 = scmp.eq.s32.totalorder %s31, 1
      %p280 = por %p278, %p279
      %p281 = scmp.ne.s32.totalorder %s272, %s273
      %p282 = scmp.eq.s32.totalorder %s31, 0
      %p283 = por %p281, %p282
      %p284 = scmp.ne.s32.totalorder %s272, %s273
      %p285 = scmp.eq.s32.totalorder %s32, 1
      %p286 = por %p284, %p285
      %p288 = scmp.ne.s32.totalorder %s273, %s287
      %p289 = scmp.eq.s32.totalorder %s32, 0
      %p290 = por %p288, %p289
      %s292 = sadd.s32 %s291, 1
      %p295 = scmp.eq.s32.totalorder %s26, 1
      %p296 = scmp.ne.s32.totalorder %s291, %s293
      %p297 = scmp.eq.s32.totalorder %s26, 0
      %p298 = por %p296, %p297
      %p299 = scmp.ne.s32.totalorder %s291, %s293
      %p300 = scmp.eq.s32.totalorder %s31, 1
      %p301 = por %p299, %p300
      %p302 = scmp.ne.s32.totalorder %s293, %s294
      %p303 = scmp.eq.s32.totalorder %s31, 0
      %p304 = por %p302, %p303
      %p305 = scmp.ne.s32.totalorder %s293, %s294
      %p306 = scmp.eq.s32.totalorder %s32, 1
      %p307 = por %p305, %p306
      %p309 = scmp.ne.s32.totalorder %s294, %s308
      %p310 = scmp.eq.s32.totalorder %s32, 0
      %p311 = por %p309, %p310
      %s313 = sadd.s32 %s312, 1
      %p316 = scmp.eq.s32.totalorder %s26, 1
      %p317 = scmp.ne.s32.totalorder %s312, %s314
      %p318 = scmp.eq.s32.totalorder %s26, 0
      %p319 = por %p317, %p318
      %p320 = scmp.ne.s32.totalorder %s312, %s314
      %p321 = scmp.eq.s32.totalorder %s31, 1
      %p322 = por %p320, %p321
      %p323 = scmp.ne.s32.totalorder %s314, %s315
      %p324 = scmp.eq.s32.totalorder %s31, 0
      %p325 = por %p323, %p324
      %p326 = scmp.ne.s32.totalorder %s314, %s315
      %p327 = scmp.eq.s32.totalorder %s32, 1
      %p328 = por %p326, %p327
      %p330 = scmp.ne.s32.totalorder %s315, %s329
      %p331 = scmp.eq.s32.totalorder %s32, 0
      %p332 = por %p330, %p331
      %s333 = ssub.s32 %s26, %s33
      %p334 = scmp.eq.s32.totalorder %s333, 0
      %s336 = sadd.s32 %s335, 1
      %s337 = scalar_select %p334, %s335, %s336
      %p340 = pneg %p334
      %p341 = scmp.eq.s32.totalorder %s26, 1
      %p342 = por %p340, %p341
      %p343 = scmp.ne.s32.totalorder %s335, %s338
      %p344 = scmp.eq.s32.totalorder %s26, 0
      %p345 = por %p343, %p344
      %p346 = scmp.ne.s32.totalorder %s335, %s338
      %p347 = scmp.eq.s32.totalorder %s31, 1
      %p348 = por %p346, %p347
      %p349 = scmp.ne.s32.totalorder %s338, %s339
      %p350 = scmp.eq.s32.totalorder %s31, 0
      %p351 = por %p349, %p350
      %p352 = scmp.ne.s32.totalorder %s338, %s339
      %p353 = scmp.eq.s32.totalorder %s32, 1
      %p354 = por %p352, %p353
      %p356 = scmp.ne.s32.totalorder %s339, %s355
      %p357 = scmp.eq.s32.totalorder %s32, 0
      %p358 = por %p356, %p357
      %p359 = scmp.le.s32.totalorder 1, %s26
      %p360 = scmp.lt.s32.totalorder %s26, 3
      %p361 = pnand %p359, %p360
      %p362 = pneg %p361
      // Predicated region
      $region9: #{tpu_custom_call.1} parent=5 // pred_check
        _
      $region10: #{tpu_custom_call.1} parent=5 // pred_check_branch
        %364 = sbr.rel (%p361) target = $region12
      $region11: #{tpu_custom_call.1} parent=5 // pred_region
        %s365 = ssub.s32 %s26, 1
        // Predicated region
        $region13: #{tpu_custom_call.1} parent=11 // pred_check
          %p366 = pneg %p73
        $region14: #{tpu_custom_call.1} parent=11 // pred_check_branch
          %368 = sbr.rel (%p366) target = $region16
        $region15: #{tpu_custom_call.1} parent=11 // pred_region
          _
        $region16: #{tpu_custom_call.1} parent=11 // pred_fallthru
          _
        // Predicated region
        $region17: #{tpu_custom_call.1} parent=11 // pred_check
          %p369 = pneg %p94
        $region18: #{tpu_custom_call.1} parent=11 // pred_check_branch
          %371 = sbr.rel (%p369) target = $region20
        $region19: #{tpu_custom_call.1} parent=11 // pred_region
          %373 = vsyncadd [#allocation3], 0
          %s374 = sshll.u32 %s2, 4
          %s375 = int_to_ptr.hbm [resolvable:$true] %s374
          %s376 = sshll.u32 [#allocation2], 4
          %s377 = int_to_ptr.vmem [resolvable:$true] %s376
          %382 = dma.hbm_to_vmem [thread:$0]  %s375, 1024, %s377, [#allocation3], 64, 64, 4
        $region20: #{tpu_custom_call.1} parent=11 // pred_fallthru
          _
        // Predicated region
        $region21: #{tpu_custom_call.1} parent=11 // pred_check
          %p383 = pneg %p115
        $region22: #{tpu_custom_call.1} parent=11 // pred_check_branch
          %385 = sbr.rel (%p383) target = $region24
        $region23: #{tpu_custom_call.1} parent=11 // pred_region
          _
        $region24: #{tpu_custom_call.1} parent=11 // pred_fallthru
          _
        // Predicated region
        $region25: #{tpu_custom_call.1} parent=11 // pred_check
          %p386 = pneg %p136
        $region26: #{tpu_custom_call.1} parent=11 // pred_check_branch
          %388 = sbr.rel (%p386) target = $region28
        $region27: #{tpu_custom_call.1} parent=11 // pred_region
          _
        $region28: #{tpu_custom_call.1} parent=11 // pred_fallthru
          _
        // Predicated region
        $region29: #{tpu_custom_call.1} parent=11 // pred_check
          %p389 = pneg %p157
        $region30: #{tpu_custom_call.1} parent=11 // pred_check_branch
          %391 = sbr.rel (%p389) target = $region32
        $region31: #{tpu_custom_call.1} parent=11 // pred_region
          %393 = vsyncadd [#allocation6], 0
          %s394 = sshll.u32 %s5, 4
          %s395 = int_to_ptr.hbm [resolvable:$true] %s394
          %s396 = sshll.u32 [#allocation5], 4
          %s397 = int_to_ptr.vmem [resolvable:$true] %s396
          %402 = dma.hbm_to_vmem [thread:$0]  %s395, 9216, %s397, [#allocation6], 64, 64, 4
        $region32: #{tpu_custom_call.1} parent=11 // pred_fallthru
          _
        // Predicated region
        $region33: #{tpu_custom_call.1} parent=11 // pred_check
          %p403 = pneg %p178
        $region34: #{tpu_custom_call.1} parent=11 // pred_check_branch
          %405 = sbr.rel (%p403) target = $region36
        $region35: #{tpu_custom_call.1} parent=11 // pred_region
          _
        $region36: #{tpu_custom_call.1} parent=11 // pred_fallthru
          _
        // Predicated region
        $region37: #{tpu_custom_call.1} parent=11 // pred_check
          %p406 = pneg %p199
        $region38: #{tpu_custom_call.1} parent=11 // pred_check_branch
          %408 = sbr.rel (%p406) target = $region40
        $region39: #{tpu_custom_call.1} parent=11 // pred_region
          _
        $region40: #{tpu_custom_call.1} parent=11 // pred_fallthru
          _
        // Predicated region
        $region41: #{tpu_custom_call.1} parent=11 // pred_check
          %p409 = pneg %p220
        $region42: #{tpu_custom_call.1} parent=11 // pred_check_branch
          %411 = sbr.rel (%p409) target = $region44
        $region43: #{tpu_custom_call.1} parent=11 // pred_region
          %413 = vsyncadd [#allocation6], 0
          %s414 = sshll.u32 %s8, 4
          %s415 = int_to_ptr.hbm [resolvable:$true] %s414
          %s416 = sshll.u32 [#allocation7], 4
          %s417 = int_to_ptr.vmem [resolvable:$true] %s416
          %422 = dma.hbm_to_vmem [thread:$0]  %s415, 1024, %s417, [#allocation6], 64, 64, 4
        $region44: #{tpu_custom_call.1} parent=11 // pred_fallthru
          _
        // Predicated region
        $region45: #{tpu_custom_call.1} parent=11 // pred_check
          %p423 = pneg %p241
        $region46: #{tpu_custom_call.1} parent=11 // pred_check_branch
          %425 = sbr.rel (%p423) target = $region48
        $region47: #{tpu_custom_call.1} parent=11 // pred_region
          _
        $region48: #{tpu_custom_call.1} parent=11 // pred_fallthru
          _
        // Predicated region
        $region49: #{tpu_custom_call.1} parent=11 // pred_check
          %p426 = pneg %p262
        $region50: #{tpu_custom_call.1} parent=11 // pred_check_branch
          %428 = sbr.rel (%p426) target = $region52
        $region51: #{tpu_custom_call.1} parent=11 // pred_region
          _
        $region52: #{tpu_custom_call.1} parent=11 // pred_fallthru
          _
        // Predicated region
        $region53: #{tpu_custom_call.1} parent=11 // pred_check
          %p429 = pneg %p283
        $region54: #{tpu_custom_call.1} parent=11 // pred_check_branch
          %431 = sbr.rel (%p429) target = $region56
        $region55: #{tpu_custom_call.1} parent=11 // pred_region
          %433 = vsyncadd [#allocation9], 0
          %s434 = sshll.u32 %s11, 4
          %s435 = int_to_ptr.hbm [resolvable:$true] %s434
          %s436 = sshll.u32 [#allocation8], 4
          %s437 = int_to_ptr.vmem [resolvable:$true] %s436
          %442 = dma.hbm_to_vmem [thread:$0]  %s435, 1024, %s437, [#allocation9], 64, 64, 4
        $region56: #{tpu_custom_call.1} parent=11 // pred_fallthru
          _
        // Predicated region
        $region57: #{tpu_custom_call.1} parent=11 // pred_check
          %p443 = pneg %p304
        $region58: #{tpu_custom_call.1} parent=11 // pred_check_branch
          %445 = sbr.rel (%p443) target = $region60
        $region59: #{tpu_custom_call.1} parent=11 // pred_region
          _
        $region60: #{tpu_custom_call.1} parent=11 // pred_fallthru
          _
        // Predicated region
        $region61: #{tpu_custom_call.1} parent=11 // pred_check
          %p446 = pneg %p325
        $region62: #{tpu_custom_call.1} parent=11 // pred_check_branch
          %448 = sbr.rel (%p446) target = $region64
        $region63: #{tpu_custom_call.1} parent=11 // pred_region
          _
        $region64: #{tpu_custom_call.1} parent=11 // pred_fallthru
          _
      $region12: #{tpu_custom_call.1} parent=5 // pred_fallthru
        _
      %p449 = scmp.lt.s32.totalorder %s26, 2
      // Predicated region
      $region65: #{tpu_custom_call.1} parent=5 // pred_check
        %p450 = pneg %p449
      $region66: #{tpu_custom_call.1} parent=5 // pred_check_branch
        %452 = sbr.rel (%p450) target = $region68
      $region67: #{tpu_custom_call.1} parent=5 // pred_region
        // Predicated region
        $region69: #{tpu_custom_call.1} parent=67 // pred_check
          %p453 = pneg %p46
        $region70: #{tpu_custom_call.1} parent=67 // pred_check_branch
          %455 = sbr.rel (%p453) target = $region72
        $region71: #{tpu_custom_call.1} parent=67 // pred_region
          %p456 = scmp.lt.s32.totalorder %s26, 1
          %s457 = scalar_select %p456, %s26, 1
          %s458 = smul.addr %s457, 60
          %s459 = smul.addr %s458, 4
          %s460 = scalar_lea.vmem %s0, %s459
        $region72: #{tpu_custom_call.1} parent=67 // pred_fallthru
          _
      $region68: #{tpu_custom_call.1} parent=5 // pred_fallthru
        _
      %p461 = scmp.le.s32.totalorder 1, %s26
      %p462 = scmp.lt.s32.totalorder %s26, 3
      %p463 = pnand %p461, %p462
      %p464 = pneg %p463
      // Predicated region
      $region73: #{tpu_custom_call.1} parent=5 // pred_check
        _
      $region74: #{tpu_custom_call.1} parent=5 // pred_check_branch
        %466 = sbr.rel (%p463) target = $region76
      $region75: #{tpu_custom_call.1} parent=5 // pred_region
        %s467 = ssub.s32 %s26, 1
        // Predicated region
        $region77: #{tpu_custom_call.1} parent=75 // pred_check
          %p468 = pneg %p94
        $region78: #{tpu_custom_call.1} parent=75 // pred_check_branch
          %470 = sbr.rel (%p468) target = $region80
        $region79: #{tpu_custom_call.1} parent=75 // pred_region
          %472 = dma.done [#allocation3], 1024
        $region80: #{tpu_custom_call.1} parent=75 // pred_fallthru
          _
        // Predicated region
        $region81: #{tpu_custom_call.1} parent=75 // pred_check
          %p473 = pneg %p157
        $region82: #{tpu_custom_call.1} parent=75 // pred_check_branch
          %475 = sbr.rel (%p473) target = $region84
        $region83: #{tpu_custom_call.1} parent=75 // pred_region
          %477 = dma.done [#allocation6], 9216
        $region84: #{tpu_custom_call.1} parent=75 // pred_fallthru
          _
        // Predicated region
        $region85: #{tpu_custom_call.1} parent=75 // pred_check
          %p478 = pneg %p220
        $region86: #{tpu_custom_call.1} parent=75 // pred_check_branch
          %480 = sbr.rel (%p478) target = $region88
        $region87: #{tpu_custom_call.1} parent=75 // pred_region
          %482 = dma.done [#allocation6], 1024
        $region88: #{tpu_custom_call.1} parent=75 // pred_fallthru
          _
        // Predicated region
        $region89: #{tpu_custom_call.1} parent=75 // pred_check
          %p483 = pneg %p283
        $region90: #{tpu_custom_call.1} parent=75 // pred_check_branch
          %485 = sbr.rel (%p483) target = $region92
        $region91: #{tpu_custom_call.1} parent=75 // pred_region
          %487 = dma.done [#allocation9], 1024
        $region92: #{tpu_custom_call.1} parent=75 // pred_fallthru
          _
        %p488 = scmp.lt.s32.totalorder %s31, 1
        %s489 = scalar_select %p488, %s31, 1
        %s490 = smul.addr %s489, 60
        %s491 = smul.addr %s490, 4
        %s492 = scalar_lea.vmem %s0, %s491
        %p493 = pneg %p52
        %p494 = pneg %p49
        %p495 = pneg %p73
        %p496 = pneg %p70
        %p497 = pneg %p94
        %p498 = pneg %p91
        %p499 = pneg %p115
        %p500 = pneg %p112
        %p501 = pneg %p136
        %p502 = pneg %p133
        %p503 = pneg %p157
        %p504 = pneg %p154
        %p505 = pneg %p178
        %p506 = pneg %p175
        %p507 = pneg %p199
        %p508 = pneg %p196
        %p509 = pneg %p220
        %p510 = pneg %p217
        %p511 = pneg %p241
        %p512 = pneg %p238
        %p513 = pneg %p262
        %p514 = pneg %p259
        %p515 = pneg %p283
        %p516 = pneg %p280
        %p517 = pneg %p304
        %p518 = pneg %p301
        %p519 = pneg %p325
        %p520 = pneg %p322
        %p521 = pneg %p351
        %p522 = pneg %p348
        %s523 = sand.u32 %s338, 1
        %s524 = scalar_lea.sflag [#allocation4], %s523
        %s525 = sand.u32 %s338, 1
        %s526 = smul.addr %s525, 192
        %s527 = scalar_lea.vmem [#allocation10], %s526
        %p528 = scmp.lt.s32.totalorder %s31, 1
        %s529 = scalar_select %p528, %s31, 1
        %s530 = smul.addr %s529, 60
        %s531 = smul.addr %s530, 4
        %s532 = scalar_lea.vmem %s0, %s531
        %v533 = vld [vmem:[%s532] sm:$0xf]
        %v534 = vld [vmem:[%s532 + $0x4] sm:$0xf]
        %v535 = vld [vmem:[%s532 + $0x8] sm:$0xf]
        %v536 = vld [vmem:[%s532 + $0xc] sm:$0xf]
        %v537 = vld [vmem:[%s532 + $0x10] sm:$0xf]
        %v538 = vld [vmem:[%s532 + $0x14] sm:$0xf]
        %v539 = vld [vmem:[%s532 + $0x18] sm:$0xf]
        %v540 = vld [vmem:[%s532 + $0x1c] sm:$0xf]
        %v541 = vld [vmem:[%s532 + $0x20] sm:$0xf]
        %v542 = vld [vmem:[%s532 + $0x24] sm:$0xf]
        %v543 = vld [vmem:[%s532 + $0x28] sm:$0xf]
        %v544 = vld [vmem:[%s532 + $0x2c] sm:$0xf]
        %v545 = vld [vmem:[%s532 + $0x30] sm:$0xf]
        %v546 = vld [vmem:[%s532 + $0x34] sm:$0xf]
        %v547 = vld [vmem:[%s532 + $0x38] sm:$0xf]
        %v548 = vld [vmem:[%s532 + $0x3c] sm:$0xf]
        %v549 = vld [vmem:[%s532 + $0x40] sm:$0xf]
        %v550 = vld [vmem:[%s532 + $0x44] sm:$0xf]
        %v551 = vld [vmem:[%s532 + $0x48] sm:$0xf]
        %v552 = vld [vmem:[%s532 + $0x4c] sm:$0xf]
        %v553 = vld [vmem:[%s532 + $0x50] sm:$0xf]
        %v554 = vld [vmem:[%s532 + $0x54] sm:$0xf]
        %v555 = vld [vmem:[%s532 + $0x58] sm:$0xf]
        %v556 = vld [vmem:[%s532 + $0x5c] sm:$0xf]
        %v557 = vld [vmem:[%s532 + $0x60] sm:$0xf]
        %v558 = vld [vmem:[%s532 + $0x64] sm:$0xf]
        %v559 = vld [vmem:[%s532 + $0x68] sm:$0xf]
        %v560 = vld [vmem:[%s532 + $0x6c] sm:$0xf]
        %v561 = vld [vmem:[%s532 + $0x70] sm:$0xf]
        %v562 = vld [vmem:[%s532 + $0x74] sm:$0xf]
        %v563 = vld [vmem:[%s532 + $0x78] sm:$0xf]
        %v564 = vld [vmem:[%s532 + $0x7c] sm:$0xf]
        %v565 = vld [vmem:[%s532 + $0x80] sm:$0xf]
        %v566 = vld [vmem:[%s532 + $0x84] sm:$0xf]
        %v567 = vld [vmem:[%s532 + $0x88] sm:$0xf]
        %v568 = vld [vmem:[%s532 + $0x8c] sm:$0xf]
        %v569 = vld [vmem:[%s532 + $0x90] sm:$0xf]
        %v570 = vld [vmem:[%s532 + $0x94] sm:$0xf]
        %v571 = vld [vmem:[%s532 + $0x98] sm:$0xf]
        %v572 = vld [vmem:[%s532 + $0x9c] sm:$0xf]
        %v573 = vld [vmem:[%s532 + $0xa0] sm:$0xf]
        %v574 = vld [vmem:[%s532 + $0xa4] sm:$0xf]
        %v575 = vld [vmem:[%s532 + $0xa8] sm:$0xf]
        %v576 = vld [vmem:[%s532 + $0xac] sm:$0xf]
        %v577 = vld [vmem:[%s532 + $0xb0] sm:$0xf]
        %v578 = vld [vmem:[%s532 + $0xb4] sm:$0xf]
        %v579 = vld [vmem:[%s532 + $0xb8] sm:$0xf]
        %v580 = vld [vmem:[%s532 + $0xbc] sm:$0xf]
        %v581 = vld [vmem:[%s532 + $0xc0] sm:$0xf]
        %v582 = vld [vmem:[%s532 + $0xc4] sm:$0xf]
        %v583 = vld [vmem:[%s532 + $0xc8] sm:$0xf]
        %v584 = vld [vmem:[%s532 + $0xcc] sm:$0xf]
        %v585 = vld [vmem:[%s532 + $0xd0] sm:$0xf]
        %v586 = vld [vmem:[%s532 + $0xd4] sm:$0xf]
        %v587 = vld [vmem:[%s532 + $0xd8] sm:$0xf]
        %v588 = vld [vmem:[%s532 + $0xdc] sm:$0xf]
        %v589 = vld [vmem:[%s532 + $0xe0] sm:$0xf]
        %v590 = vld [vmem:[%s532 + $0xe4] sm:$0xf]
        %v591 = vld [vmem:[%s532 + $0xe8] sm:$0xf]
        %v592 = vld [vmem:[%s532 + $0xec] sm:$0xf]
        %v593 = vld [vmem:[#allocation2] sm:$0xf]
        %v594 = vld [vmem:[#allocation2 + $0x4] sm:$0xf]
        %v595 = vld [vmem:[#allocation2 + $0x8] sm:$0xf]
        %v596 = vld [vmem:[#allocation2 + $0xc] sm:$0xf]
        %v597 = vld [vmem:[#allocation2 + $0x10] sm:$0xf]
        %v598 = vld [vmem:[#allocation2 + $0x14] sm:$0xf]
        %v599 = vld [vmem:[#allocation2 + $0x18] sm:$0xf]
        %v600 = vld [vmem:[#allocation2 + $0x1c] sm:$0xf]
        %v601 = vld [vmem:[#allocation2 + $0x20] sm:$0xf]
        %v602 = vld [vmem:[#allocation2 + $0x24] sm:$0xf]
        %v603 = vld [vmem:[#allocation2 + $0x28] sm:$0xf]
        %v604 = vld [vmem:[#allocation2 + $0x2c] sm:$0xf]
        %v605 = vld [vmem:[#allocation2 + $0x30] sm:$0xf]
        %v606 = vld [vmem:[#allocation2 + $0x34] sm:$0xf]
        %v607 = vld [vmem:[#allocation2 + $0x38] sm:$0xf]
        %v608 = vld [vmem:[#allocation2 + $0x3c] sm:$0xf]
        %v669 = vunpack.c.l.b16 %v533
        %v670 = vunpack.c.l.b16 %v534
        %v671 = vunpack.c.l.b16 %v535
        %v672 = vunpack.c.l.b16 %v536
        %v673 = vunpack.c.l.b16 %v537
        %v674 = vunpack.c.l.b16 %v538
        %v675 = vunpack.c.l.b16 %v539
        %v676 = vunpack.c.l.b16 %v540
        %v677 = vunpack.c.l.b16 %v541
        %v678 = vunpack.c.l.b16 %v542
        %v679 = vunpack.c.l.b16 %v543
        %v680 = vunpack.c.l.b16 %v544
        %v681 = vunpack.c.l.b16 %v545
        %v682 = vunpack.c.l.b16 %v546
        %v683 = vunpack.c.l.b16 %v547
        %v684 = vunpack.c.l.b16 %v548
        %v685 = vunpack.c.l.b16 %v549
        %v686 = vunpack.c.l.b16 %v550
        %v687 = vunpack.c.l.b16 %v551
        %v688 = vunpack.c.l.b16 %v552
        %v689 = vunpack.c.l.b16 %v553
        %v690 = vunpack.c.l.b16 %v554
        %v691 = vunpack.c.l.b16 %v555
        %v692 = vunpack.c.l.b16 %v556
        %v693 = vunpack.c.l.b16 %v557
        %v694 = vunpack.c.l.b16 %v558
        %v695 = vunpack.c.l.b16 %v559
        %v696 = vunpack.c.l.b16 %v560
        %v697 = vunpack.c.l.b16 %v561
        %v698 = vunpack.c.l.b16 %v562
        %v699 = vunpack.c.l.b16 %v563
        %v700 = vunpack.c.l.b16 %v564
        %v701 = vunpack.c.l.b16 %v565
        %v702 = vunpack.c.l.b16 %v566
        %v703 = vunpack.c.l.b16 %v567
        %v704 = vunpack.c.l.b16 %v568
        %v705 = vunpack.c.l.b16 %v569
        %v706 = vunpack.c.l.b16 %v570
        %v707 = vunpack.c.l.b16 %v571
        %v708 = vunpack.c.l.b16 %v572
        %v709 = vunpack.c.l.b16 %v573
        %v710 = vunpack.c.l.b16 %v574
        %v711 = vunpack.c.l.b16 %v575
        %v712 = vunpack.c.l.b16 %v576
        %v713 = vunpack.c.l.b16 %v577
        %v714 = vunpack.c.l.b16 %v578
        %v715 = vunpack.c.l.b16 %v579
        %v716 = vunpack.c.l.b16 %v580
        %v717 = vunpack.c.l.b16 %v581
        %v718 = vunpack.c.l.b16 %v582
        %v719 = vunpack.c.l.b16 %v583
        %v720 = vunpack.c.l.b16 %v584
        %v721 = vunpack.c.l.b16 %v585
        %v722 = vunpack.c.l.b16 %v586
        %v723 = vunpack.c.l.b16 %v587
        %v724 = vunpack.c.l.b16 %v588
        %v725 = vunpack.c.l.b16 %v589
        %v726 = vunpack.c.l.b16 %v590
        %v727 = vunpack.c.l.b16 %v591
        %v728 = vunpack.c.l.b16 %v592
        %v729 = vpack.c.b16 %v670, %v669
        %v730 = vpack.c.b16 %v672, %v671
        %v731 = vpack.c.b16 %v674, %v673
        %v732 = vpack.c.b16 %v676, %v675
        %v733 = vpack.c.b16 %v678, %v677
        %v734 = vpack.c.b16 %v680, %v679
        %v735 = vpack.c.b16 %v682, %v681
        %v736 = vpack.c.b16 %v684, %v683
        %v737 = vpack.c.b16 %v686, %v685
        %v738 = vpack.c.b16 %v688, %v687
        %v739 = vpack.c.b16 %v690, %v689
        %v740 = vpack.c.b16 %v692, %v691
        %v741 = vpack.c.b16 %v694, %v693
        %v742 = vpack.c.b16 %v696, %v695
        %v743 = vpack.c.b16 %v698, %v697
        %v744 = vpack.c.b16 %v700, %v699
        %v745 = vpack.c.b16 %v702, %v701
        %v746 = vpack.c.b16 %v704, %v703
        %v747 = vpack.c.b16 %v706, %v705
        %v748 = vpack.c.b16 %v708, %v707
        %v749 = vpack.c.b16 %v710, %v709
        %v750 = vpack.c.b16 %v712, %v711
        %v751 = vpack.c.b16 %v714, %v713
        %v752 = vpack.c.b16 %v716, %v715
        %v753 = vpack.c.b16 %v718, %v717
        %v754 = vpack.c.b16 %v720, %v719
        %v755 = vpack.c.b16 %v722, %v721
        %v756 = vpack.c.b16 %v724, %v723
        %v757 = vpack.c.b16 %v726, %v725
        %v758 = vpack.c.b16 %v728, %v727
        %v805 = vunpack.c.l.b16 %v593
        %v806 = vunpack.c.l.b16 %v594
        %v807 = vunpack.c.l.b16 %v595
        %v808 = vunpack.c.l.b16 %v596
        %v809 = vunpack.c.l.b16 %v597
        %v810 = vunpack.c.l.b16 %v598
        %v811 = vunpack.c.l.b16 %v599
        %v812 = vunpack.c.l.b16 %v600
        %v813 = vunpack.c.l.b16 %v601
        %v814 = vunpack.c.l.b16 %v602
        %v815 = vunpack.c.l.b16 %v603
        %v816 = vunpack.c.l.b16 %v604
        %v817 = vunpack.c.l.b16 %v605
        %v818 = vunpack.c.l.b16 %v606
        %v819 = vunpack.c.l.b16 %v607
        %v820 = vunpack.c.l.b16 %v608
        %v821 = vpack.c.b16 %v806, %v805
        %v822 = vpack.c.b16 %v808, %v807
        %v823 = vpack.c.b16 %v810, %v809
        %v824 = vpack.c.b16 %v812, %v811
        %v825 = vpack.c.b16 %v814, %v813
        %v826 = vpack.c.b16 %v816, %v815
        %v827 = vpack.c.b16 %v818, %v817
        %v828 = vpack.c.b16 %v820, %v819
        %837 = vmatpush.bf16.msra.mxu0 %v828
        %838 = vmatpush.bf16.msra.mxu0 %v827
        %839 = vmatpush.bf16.msra.mxu0 %v826
        %840 = vmatpush.bf16.msra.mxu0 %v825
        %841 = vmatpush.bf16.msra.mxu0 %v824
        %842 = vmatpush.bf16.msra.mxu0 %v823
        %843 = vmatpush.bf16.msra.mxu0 %v822
        %844 = vmatpush.bf16.msra.mxu0 %v821
        %845 = vmatmul.bf16.gmra.mxu0 %v729
        %v846 = vpop.f32.mrf.mxu0
        %v847 = vpop.f32.mrf.mxu0
        %848 = vmatmul.bf16.gmra.mxu0 %v730
        %v849 = vpop.f32.mrf.mxu0
        %v850 = vadd.f32 0.0, %v849
        %v851 = vpop.f32.mrf.mxu0
        %v852 = vadd.f32 0.0, %v851
        %853 = vmatmul.bf16.gmra.mxu0 %v731
        %v854 = vpop.f32.mrf.mxu0
        %v855 = vadd.f32 0.0, %v854
        %v856 = vpop.f32.mrf.mxu0
        %v857 = vadd.f32 0.0, %v856
        %858 = vmatmul.bf16.gmra.mxu0 %v732
        %v859 = vpop.f32.mrf.mxu0
        %v860 = vadd.f32 0.0, %v859
        %v861 = vpop.f32.mrf.mxu0
        %v862 = vadd.f32 0.0, %v861
        %863 = vmatmul.bf16.gmra.mxu0 %v733
        %v864 = vpop.f32.mrf.mxu0
        %v865 = vadd.f32 0.0, %v864
        %v866 = vpop.f32.mrf.mxu0
        %v867 = vadd.f32 0.0, %v866
        %868 = vmatmul.bf16.gmra.mxu0 %v734
        %v869 = vpop.f32.mrf.mxu0
        %v870 = vadd.f32 0.0, %v869
        %v871 = vpop.f32.mrf.mxu0
        %v872 = vadd.f32 0.0, %v871
        %873 = vmatmul.bf16.gmra.mxu0 %v735
        %v874 = vpop.f32.mrf.mxu0
        %v875 = vadd.f32 0.0, %v874
        %v876 = vpop.f32.mrf.mxu0
        %v877 = vadd.f32 0.0, %v876
        %878 = vmatmul.bf16.gmra.mxu0 %v736
        %v879 = vpop.f32.mrf.mxu0
        %v880 = vadd.f32 0.0, %v879
        %v881 = vpop.f32.mrf.mxu0
        %v882 = vadd.f32 0.0, %v881
        %883 = vmatmul.bf16.gmra.mxu0 %v737
        %v884 = vpop.f32.mrf.mxu0
        %v885 = vadd.f32 0.0, %v884
        %v886 = vpop.f32.mrf.mxu0
        %v887 = vadd.f32 0.0, %v886
        %888 = vmatmul.bf16.gmra.mxu0 %v738
        %v889 = vpop.f32.mrf.mxu0
        %v890 = vadd.f32 0.0, %v889
        %v891 = vpop.f32.mrf.mxu0
        %v892 = vadd.f32 0.0, %v891
        %893 = vmatmul.bf16.gmra.mxu0 %v739
        %v894 = vpop.f32.mrf.mxu0
        %v895 = vadd.f32 0.0, %v894
        %v896 = vpop.f32.mrf.mxu0
        %v897 = vadd.f32 0.0, %v896
        %898 = vmatmul.bf16.gmra.mxu0 %v740
        %v899 = vpop.f32.mrf.mxu0
        %v900 = vadd.f32 0.0, %v899
        %v901 = vpop.f32.mrf.mxu0
        %v902 = vadd.f32 0.0, %v901
        %903 = vmatmul.bf16.gmra.mxu0 %v741
        %v904 = vpop.f32.mrf.mxu0
        %v905 = vadd.f32 0.0, %v904
        %v906 = vpop.f32.mrf.mxu0
        %v907 = vadd.f32 0.0, %v906
        %908 = vmatmul.bf16.gmra.mxu0 %v742
        %v909 = vpop.f32.mrf.mxu0
        %v910 = vadd.f32 0.0, %v909
        %v911 = vpop.f32.mrf.mxu0
        %v912 = vadd.f32 0.0, %v911
        %913 = vmatmul.bf16.gmra.mxu0 %v743
        %v914 = vpop.f32.mrf.mxu0
        %v915 = vadd.f32 0.0, %v914
        %v916 = vpop.f32.mrf.mxu0
        %v917 = vadd.f32 0.0, %v916
        %918 = vmatmul.bf16.gmra.mxu0 %v744
        %v919 = vpop.f32.mrf.mxu0
        %v920 = vadd.f32 0.0, %v919
        %v921 = vpop.f32.mrf.mxu0
        %v922 = vadd.f32 0.0, %v921
        %923 = vmatmul.bf16.gmra.mxu0 %v745
        %v924 = vpop.f32.mrf.mxu0
        %v925 = vadd.f32 0.0, %v924
        %v926 = vpop.f32.mrf.mxu0
        %v927 = vadd.f32 0.0, %v926
        %928 = vmatmul.bf16.gmra.mxu0 %v746
        %v929 = vpop.f32.mrf.mxu0
        %v930 = vadd.f32 0.0, %v929
        %v931 = vpop.f32.mrf.mxu0
        %v932 = vadd.f32 0.0, %v931
        %933 = vmatmul.bf16.gmra.mxu0 %v747
        %v934 = vpop.f32.mrf.mxu0
        %v935 = vadd.f32 0.0, %v934
        %v936 = vpop.f32.mrf.mxu0
        %v937 = vadd.f32 0.0, %v936
        %938 = vmatmul.bf16.gmra.mxu0 %v748
        %v939 = vpop.f32.mrf.mxu0
        %v940 = vadd.f32 0.0, %v939
        %v941 = vpop.f32.mrf.mxu0
        %v942 = vadd.f32 0.0, %v941
        %943 = vmatmul.bf16.gmra.mxu0 %v749
        %v944 = vpop.f32.mrf.mxu0
        %v945 = vadd.f32 0.0, %v944
        %v946 = vpop.f32.mrf.mxu0
        %v947 = vadd.f32 0.0, %v946
        %948 = vmatmul.bf16.gmra.mxu0 %v750
        %v949 = vpop.f32.mrf.mxu0
        %v950 = vadd.f32 0.0, %v949
        %v951 = vpop.f32.mrf.mxu0
        %v952 = vadd.f32 0.0, %v951
        %953 = vmatmul.bf16.gmra.mxu0 %v751
        %v954 = vpop.f32.mrf.mxu0
        %v955 = vadd.f32 0.0, %v954
        %v956 = vpop.f32.mrf.mxu0
        %v957 = vadd.f32 0.0, %v956
        %958 = vmatmul.bf16.gmra.mxu0 %v752
        %v959 = vpop.f32.mrf.mxu0
        %v960 = vadd.f32 0.0, %v959
        %v961 = vpop.f32.mrf.mxu0
        %v962 = vadd.f32 0.0, %v961
        %963 = vmatmul.bf16.gmra.mxu0 %v753
        %v964 = vpop.f32.mrf.mxu0
        %v965 = vadd.f32 0.0, %v964
        %v966 = vpop.f32.mrf.mxu0
        %v967 = vadd.f32 0.0, %v966
        %968 = vmatmul.bf16.gmra.mxu0 %v754
        %v969 = vpop.f32.mrf.mxu0
        %v970 = vadd.f32 0.0, %v969
        %v971 = vpop.f32.mrf.mxu0
        %v972 = vadd.f32 0.0, %v971
        %973 = vmatmul.bf16.gmra.mxu0 %v755
        %v974 = vpop.f32.mrf.mxu0
        %v975 = vadd.f32 0.0, %v974
        %v976 = vpop.f32.mrf.mxu0
        %v977 = vadd.f32 0.0, %v976
        %978 = vmatmul.bf16.gmra.mxu0 %v756
        %v979 = vpop.f32.mrf.mxu0
        %v980 = vadd.f32 0.0, %v979
        %v981 = vpop.f32.mrf.mxu0
        %v982 = vadd.f32 0.0, %v981
        %983 = vmatmul.bf16.gmra.mxu0 %v757
        %v984 = vpop.f32.mrf.mxu0
        %v985 = vadd.f32 0.0, %v984
        %v986 = vpop.f32.mrf.mxu0
        %v987 = vadd.f32 0.0, %v986
        %988 = vmatmul.bf16.gmra.mxu0 %v758
        %v989 = vpop.f32.mrf.mxu0
        %v990 = vpop.f32.mrf.mxu0
        %991 = vdwg.mxu0
        %v992 = vld [vmem:[%s3] sm:$0x1]
        %v994 = vperm.slane %v992, 0
        %v996 = vmul.f32 %v850, %v994
        %v997 = vmul.f32 %v852, %v994
        %v998 = vmul.f32 %v855, %v994
        %v999 = vmul.f32 %v857, %v994
        %v1000 = vmul.f32 %v860, %v994
        %v1001 = vmul.f32 %v862, %v994
        %v1002 = vmul.f32 %v865, %v994
        %v1003 = vmul.f32 %v867, %v994
        %v1004 = vmul.f32 %v870, %v994
        %v1005 = vmul.f32 %v872, %v994
        %v1006 = vmul.f32 %v875, %v994
        %v1007 = vmul.f32 %v877, %v994
        %v1008 = vmul.f32 %v880, %v994
        %v1009 = vmul.f32 %v882, %v994
        %v1010 = vmul.f32 %v885, %v994
        %v1011 = vmul.f32 %v887, %v994
        %v1012 = vmul.f32 %v890, %v994
        %v1013 = vmul.f32 %v892, %v994
        %v1014 = vmul.f32 %v895, %v994
        %v1015 = vmul.f32 %v897, %v994
        %v1016 = vmul.f32 %v900, %v994
        %v1017 = vmul.f32 %v902, %v994
        %v1018 = vmul.f32 %v905, %v994
        %v1019 = vmul.f32 %v907, %v994
        %v1020 = vmul.f32 %v910, %v994
        %v1021 = vmul.f32 %v912, %v994
        %v1022 = vmul.f32 %v915, %v994
        %v1023 = vmul.f32 %v917, %v994
        %v1024 = vmul.f32 %v920, %v994
        %v1025 = vmul.f32 %v922, %v994
        %v1026 = vmul.f32 %v925, %v994
        %v1027 = vmul.f32 %v927, %v994
        %v1028 = vmul.f32 %v930, %v994
        %v1029 = vmul.f32 %v932, %v994
        %v1030 = vmul.f32 %v935, %v994
        %v1031 = vmul.f32 %v937, %v994
        %v1032 = vmul.f32 %v940, %v994
        %v1033 = vmul.f32 %v942, %v994
        %v1034 = vmul.f32 %v945, %v994
        %v1035 = vmul.f32 %v947, %v994
        %v1036 = vmul.f32 %v950, %v994
        %v1037 = vmul.f32 %v952, %v994
        %v1038 = vmul.f32 %v955, %v994
        %v1039 = vmul.f32 %v957, %v994
        %v1040 = vmul.f32 %v960, %v994
        %v1041 = vmul.f32 %v962, %v994
        %v1042 = vmul.f32 %v965, %v994
        %v1043 = vmul.f32 %v967, %v994
        %v1044 = vmul.f32 %v970, %v994
        %v1045 = vmul.f32 %v972, %v994
        %v1046 = vmul.f32 %v975, %v994
        %v1047 = vmul.f32 %v977, %v994
        %v1048 = vmul.f32 %v980, %v994
        %v1049 = vmul.f32 %v982, %v994
        %v1050 = vmul.f32 %v985, %v994
        %v1051 = vmul.f32 %v987, %v994
        %v1052 = vld [vmem:[%s4] sm:$0x1]
        %v1054 = vperm.slane %v1052, 0
        %v1056 = vadd.f32 %v996, %v1054
        %v1057 = vadd.f32 %v997, %v1054
        %v1058 = vadd.f32 %v998, %v1054
        %v1059 = vadd.f32 %v999, %v1054
        %v1060 = vadd.f32 %v1000, %v1054
        %v1061 = vadd.f32 %v1001, %v1054
        %v1062 = vadd.f32 %v1002, %v1054
        %v1063 = vadd.f32 %v1003, %v1054
        %v1064 = vadd.f32 %v1004, %v1054
        %v1065 = vadd.f32 %v1005, %v1054
        %v1066 = vadd.f32 %v1006, %v1054
        %v1067 = vadd.f32 %v1007, %v1054
        %v1068 = vadd.f32 %v1008, %v1054
        %v1069 = vadd.f32 %v1009, %v1054
        %v1070 = vadd.f32 %v1010, %v1054
        %v1071 = vadd.f32 %v1011, %v1054
        %v1072 = vadd.f32 %v1012, %v1054
        %v1073 = vadd.f32 %v1013, %v1054
        %v1074 = vadd.f32 %v1014, %v1054
        %v1075 = vadd.f32 %v1015, %v1054
        %v1076 = vadd.f32 %v1016, %v1054
        %v1077 = vadd.f32 %v1017, %v1054
        %v1078 = vadd.f32 %v1018, %v1054
        %v1079 = vadd.f32 %v1019, %v1054
        %v1080 = vadd.f32 %v1020, %v1054
        %v1081 = vadd.f32 %v1021, %v1054
        %v1082 = vadd.f32 %v1022, %v1054
        %v1083 = vadd.f32 %v1023, %v1054
        %v1084 = vadd.f32 %v1024, %v1054
        %v1085 = vadd.f32 %v1025, %v1054
        %v1086 = vadd.f32 %v1026, %v1054
        %v1087 = vadd.f32 %v1027, %v1054
        %v1088 = vadd.f32 %v1028, %v1054
        %v1089 = vadd.f32 %v1029, %v1054
        %v1090 = vadd.f32 %v1030, %v1054
        %v1091 = vadd.f32 %v1031, %v1054
        %v1092 = vadd.f32 %v1032, %v1054
        %v1093 = vadd.f32 %v1033, %v1054
        %v1094 = vadd.f32 %v1034, %v1054
        %v1095 = vadd.f32 %v1035, %v1054
        %v1096 = vadd.f32 %v1036, %v1054
        %v1097 = vadd.f32 %v1037, %v1054
        %v1098 = vadd.f32 %v1038, %v1054
        %v1099 = vadd.f32 %v1039, %v1054
        %v1100 = vadd.f32 %v1040, %v1054
        %v1101 = vadd.f32 %v1041, %v1054
        %v1102 = vadd.f32 %v1042, %v1054
        %v1103 = vadd.f32 %v1043, %v1054
        %v1104 = vadd.f32 %v1044, %v1054
        %v1105 = vadd.f32 %v1045, %v1054
        %v1106 = vadd.f32 %v1046, %v1054
        %v1107 = vadd.f32 %v1047, %v1054
        %v1108 = vadd.f32 %v1048, %v1054
        %v1109 = vadd.f32 %v1049, %v1054
        %v1110 = vadd.f32 %v1050, %v1054
        %v1111 = vadd.f32 %v1051, %v1054
        %v1112 = vmax.f32 %v1056, 0.0
        %v1113 = vmax.f32 %v1057, 0.0
        %v1114 = vmax.f32 %v1058, 0.0
        %v1115 = vmax.f32 %v1059, 0.0
        %v1116 = vmax.f32 %v1060, 0.0
        %v1117 = vmax.f32 %v1061, 0.0
        %v1118 = vmax.f32 %v1062, 0.0
        %v1119 = vmax.f32 %v1063, 0.0
        %v1120 = vmax.f32 %v1064, 0.0
        %v1121 = vmax.f32 %v1065, 0.0
        %v1122 = vmax.f32 %v1066, 0.0
        %v1123 = vmax.f32 %v1067, 0.0
        %v1124 = vmax.f32 %v1068, 0.0
        %v1125 = vmax.f32 %v1069, 0.0
        %v1126 = vmax.f32 %v1070, 0.0
        %v1127 = vmax.f32 %v1071, 0.0
        %v1128 = vmax.f32 %v1072, 0.0
        %v1129 = vmax.f32 %v1073, 0.0
        %v1130 = vmax.f32 %v1074, 0.0
        %v1131 = vmax.f32 %v1075, 0.0
        %v1132 = vmax.f32 %v1076, 0.0
        %v1133 = vmax.f32 %v1077, 0.0
        %v1134 = vmax.f32 %v1078, 0.0
        %v1135 = vmax.f32 %v1079, 0.0
        %v1136 = vmax.f32 %v1080, 0.0
        %v1137 = vmax.f32 %v1081, 0.0
        %v1138 = vmax.f32 %v1082, 0.0
        %v1139 = vmax.f32 %v1083, 0.0
        %v1140 = vmax.f32 %v1084, 0.0
        %v1141 = vmax.f32 %v1085, 0.0
        %v1142 = vmax.f32 %v1086, 0.0
        %v1143 = vmax.f32 %v1087, 0.0
        %v1144 = vmax.f32 %v1088, 0.0
        %v1145 = vmax.f32 %v1089, 0.0
        %v1146 = vmax.f32 %v1090, 0.0
        %v1147 = vmax.f32 %v1091, 0.0
        %v1148 = vmax.f32 %v1092, 0.0
        %v1149 = vmax.f32 %v1093, 0.0
        %v1150 = vmax.f32 %v1094, 0.0
        %v1151 = vmax.f32 %v1095, 0.0
        %v1152 = vmax.f32 %v1096, 0.0
        %v1153 = vmax.f32 %v1097, 0.0
        %v1154 = vmax.f32 %v1098, 0.0
        %v1155 = vmax.f32 %v1099, 0.0
        %v1156 = vmax.f32 %v1100, 0.0
        %v1157 = vmax.f32 %v1101, 0.0
        %v1158 = vmax.f32 %v1102, 0.0
        %v1159 = vmax.f32 %v1103, 0.0
        %v1160 = vmax.f32 %v1104, 0.0
        %v1161 = vmax.f32 %v1105, 0.0
        %v1162 = vmax.f32 %v1106, 0.0
        %v1163 = vmax.f32 %v1107, 0.0
        %v1164 = vmax.f32 %v1108, 0.0
        %v1165 = vmax.f32 %v1109, 0.0
        %v1166 = vmax.f32 %v1110, 0.0
        %v1167 = vmax.f32 %v1111, 0.0
        %v1168 = vld [vmem:[%s1 + $0x10] sm:$0xff]
        %v1169 = vld [vmem:[%s1 + $0x18] sm:$0xff]
        %v1170 = vld [vmem:[%s1 + $0x20] sm:$0xff]
        %v1171 = vld [vmem:[%s1 + $0x28] sm:$0xff]
        %v1172 = vld [vmem:[%s1 + $0x30] sm:$0xff]
        %v1173 = vld [vmem:[%s1 + $0x38] sm:$0xff]
        %v1174 = vld [vmem:[%s1 + $0x40] sm:$0xff]
        %v1175 = vld [vmem:[%s1 + $0x48] sm:$0xff]
        %v1176 = vld [vmem:[%s1 + $0x50] sm:$0xff]
        %v1177 = vld [vmem:[%s1 + $0x58] sm:$0xff]
        %v1178 = vld [vmem:[%s1 + $0x60] sm:$0xff]
        %v1179 = vld [vmem:[%s1 + $0x68] sm:$0xff]
        %v1180 = vld [vmem:[%s1 + $0x70] sm:$0xff]
        %v1181 = vld [vmem:[%s1 + $0x78] sm:$0xff]
        %v1182 = vld [vmem:[%s1 + $0x80] sm:$0xff]
        %v1183 = vld [vmem:[%s1 + $0x88] sm:$0xff]
        %v1184 = vld [vmem:[%s1 + $0x90] sm:$0xff]
        %v1185 = vld [vmem:[%s1 + $0x98] sm:$0xff]
        %v1186 = vld [vmem:[%s1 + $0xa0] sm:$0xff]
        %v1187 = vld [vmem:[%s1 + $0xa8] sm:$0xff]
        %v1188 = vld [vmem:[%s1 + $0xb0] sm:$0xff]
        %v1189 = vld [vmem:[%s1 + $0xb8] sm:$0xff]
        %v1190 = vld [vmem:[%s1 + $0xc0] sm:$0xff]
        %v1191 = vld [vmem:[%s1 + $0xc8] sm:$0xff]
        %v1192 = vld [vmem:[%s1 + $0xd0] sm:$0xff]
        %v1193 = vld [vmem:[%s1 + $0xd8] sm:$0xff]
        %v1194 = vld [vmem:[%s1 + $0xe0] sm:$0xff]
        %v1195 = vld [vmem:[%s1 + $0xe8] sm:$0xff]
        %v1196 = vld [vmem:[%s1 + $0xf0] sm:$0xff]
        %v1197 = vld [vmem:[%s1 + $0xf8] sm:$0xff]
        %v1198 = vld [vmem:[%s1 + $0x100] sm:$0xff]
        %v1199 = vld [vmem:[%s1 + $0x108] sm:$0xff]
        %v1200 = vld [vmem:[%s1 + $0x110] sm:$0xff]
        %v1201 = vld [vmem:[%s1 + $0x118] sm:$0xff]
        %v1202 = vld [vmem:[%s1 + $0x120] sm:$0xff]
        %v1203 = vld [vmem:[%s1 + $0x128] sm:$0xff]
        %v1204 = vld [vmem:[%s1 + $0x130] sm:$0xff]
        %v1205 = vld [vmem:[%s1 + $0x138] sm:$0xff]
        %v1206 = vld [vmem:[%s1 + $0x140] sm:$0xff]
        %v1207 = vld [vmem:[%s1 + $0x148] sm:$0xff]
        %v1208 = vld [vmem:[%s1 + $0x150] sm:$0xff]
        %v1209 = vld [vmem:[%s1 + $0x158] sm:$0xff]
        %v1210 = vld [vmem:[%s1 + $0x160] sm:$0xff]
        %v1211 = vld [vmem:[%s1 + $0x168] sm:$0xff]
        %v1212 = vld [vmem:[%s1 + $0x170] sm:$0xff]
        %v1213 = vld [vmem:[%s1 + $0x178] sm:$0xff]
        %v1214 = vld [vmem:[%s1 + $0x180] sm:$0xff]
        %v1215 = vld [vmem:[%s1 + $0x188] sm:$0xff]
        %v1216 = vld [vmem:[%s1 + $0x190] sm:$0xff]
        %v1217 = vld [vmem:[%s1 + $0x198] sm:$0xff]
        %v1218 = vld [vmem:[%s1 + $0x1a0] sm:$0xff]
        %v1219 = vld [vmem:[%s1 + $0x1a8] sm:$0xff]
        %v1220 = vld [vmem:[%s1 + $0x1b0] sm:$0xff]
        %v1221 = vld [vmem:[%s1 + $0x1b8] sm:$0xff]
        %v1222 = vld [vmem:[%s1 + $0x1c0] sm:$0xff]
        %v1223 = vld [vmem:[%s1 + $0x1c8] sm:$0xff]
        %1225 = vset.pattern.permute.xlu0 0
        %1226 = vperm.xlu0 %1225, %v1168
        %v1227 = vpop.permute.xlu0 %1226
        %1230 = vset.pattern.permute.xlu0 0
        %1231 = vperm.xlu0 %1230, %v1169
        %v1232 = vpop.permute.xlu0 %1231
        %1235 = vset.pattern.permute.xlu0 0
        %1236 = vperm.xlu0 %1235, %v1170
        %v1237 = vpop.permute.xlu0 %1236
        %1240 = vset.pattern.permute.xlu0 0
        %1241 = vperm.xlu0 %1240, %v1171
        %v1242 = vpop.permute.xlu0 %1241
        %1245 = vset.pattern.permute.xlu0 0
        %1246 = vperm.xlu0 %1245, %v1172
        %v1247 = vpop.permute.xlu0 %1246
        %1250 = vset.pattern.permute.xlu0 0
        %1251 = vperm.xlu0 %1250, %v1173
        %v1252 = vpop.permute.xlu0 %1251
        %1255 = vset.pattern.permute.xlu0 0
        %1256 = vperm.xlu0 %1255, %v1174
        %v1257 = vpop.permute.xlu0 %1256
        %1260 = vset.pattern.permute.xlu0 0
        %1261 = vperm.xlu0 %1260, %v1175
        %v1262 = vpop.permute.xlu0 %1261
        %1265 = vset.pattern.permute.xlu0 0
        %1266 = vperm.xlu0 %1265, %v1176
        %v1267 = vpop.permute.xlu0 %1266
        %1270 = vset.pattern.permute.xlu0 0
        %1271 = vperm.xlu0 %1270, %v1177
        %v1272 = vpop.permute.xlu0 %1271
        %1275 = vset.pattern.permute.xlu0 0
        %1276 = vperm.xlu0 %1275, %v1178
        %v1277 = vpop.permute.xlu0 %1276
        %1280 = vset.pattern.permute.xlu0 0
        %1281 = vperm.xlu0 %1280, %v1179
        %v1282 = vpop.permute.xlu0 %1281
        %1285 = vset.pattern.permute.xlu0 0
        %1286 = vperm.xlu0 %1285, %v1180
        %v1287 = vpop.permute.xlu0 %1286
        %1290 = vset.pattern.permute.xlu0 0
        %1291 = vperm.xlu0 %1290, %v1181
        %v1292 = vpop.permute.xlu0 %1291
        %1295 = vset.pattern.permute.xlu0 0
        %1296 = vperm.xlu0 %1295, %v1182
        %v1297 = vpop.permute.xlu0 %1296
        %1300 = vset.pattern.permute.xlu0 0
        %1301 = vperm.xlu0 %1300, %v1183
        %v1302 = vpop.permute.xlu0 %1301
        %1305 = vset.pattern.permute.xlu0 0
        %1306 = vperm.xlu0 %1305, %v1184
        %v1307 = vpop.permute.xlu0 %1306
        %1310 = vset.pattern.permute.xlu0 0
        %1311 = vperm.xlu0 %1310, %v1185
        %v1312 = vpop.permute.xlu0 %1311
        %1315 = vset.pattern.permute.xlu0 0
        %1316 = vperm.xlu0 %1315, %v1186
        %v1317 = vpop.permute.xlu0 %1316
        %1320 = vset.pattern.permute.xlu0 0
        %1321 = vperm.xlu0 %1320, %v1187
        %v1322 = vpop.permute.xlu0 %1321
        %1325 = vset.pattern.permute.xlu0 0
        %1326 = vperm.xlu0 %1325, %v1188
        %v1327 = vpop.permute.xlu0 %1326
        %1330 = vset.pattern.permute.xlu0 0
        %1331 = vperm.xlu0 %1330, %v1189
        %v1332 = vpop.permute.xlu0 %1331
        %1335 = vset.pattern.permute.xlu0 0
        %1336 = vperm.xlu0 %1335, %v1190
        %v1337 = vpop.permute.xlu0 %1336
        %1340 = vset.pattern.permute.xlu0 0
        %1341 = vperm.xlu0 %1340, %v1191
        %v1342 = vpop.permute.xlu0 %1341
        %1345 = vset.pattern.permute.xlu0 0
        %1346 = vperm.xlu0 %1345, %v1192
        %v1347 = vpop.permute.xlu0 %1346
        %1350 = vset.pattern.permute.xlu0 0
        %1351 = vperm.xlu0 %1350, %v1193
        %v1352 = vpop.permute.xlu0 %1351
        %1355 = vset.pattern.permute.xlu0 0
        %1356 = vperm.xlu0 %1355, %v1194
        %v1357 = vpop.permute.xlu0 %1356
        %1360 = vset.pattern.permute.xlu0 0
        %1361 = vperm.xlu0 %1360, %v1195
        %v1362 = vpop.permute.xlu0 %1361
        %1365 = vset.pattern.permute.xlu0 0
        %1366 = vperm.xlu0 %1365, %v1196
        %v1367 = vpop.permute.xlu0 %1366
        %1370 = vset.pattern.permute.xlu0 0
        %1371 = vperm.xlu0 %1370, %v1197
        %v1372 = vpop.permute.xlu0 %1371
        %1375 = vset.pattern.permute.xlu0 0
        %1376 = vperm.xlu0 %1375, %v1198
        %v1377 = vpop.permute.xlu0 %1376
        %1380 = vset.pattern.permute.xlu0 0
        %1381 = vperm.xlu0 %1380, %v1199
        %v1382 = vpop.permute.xlu0 %1381
        %1385 = vset.pattern.permute.xlu0 0
        %1386 = vperm.xlu0 %1385, %v1200
        %v1387 = vpop.permute.xlu0 %1386
        %1390 = vset.pattern.permute.xlu0 0
        %1391 = vperm.xlu0 %1390, %v1201
        %v1392 = vpop.permute.xlu0 %1391
        %1395 = vset.pattern.permute.xlu0 0
        %1396 = vperm.xlu0 %1395, %v1202
        %v1397 = vpop.permute.xlu0 %1396
        %1400 = vset.pattern.permute.xlu0 0
        %1401 = vperm.xlu0 %1400, %v1203
        %v1402 = vpop.permute.xlu0 %1401
        %1405 = vset.pattern.permute.xlu0 0
        %1406 = vperm.xlu0 %1405, %v1204
        %v1407 = vpop.permute.xlu0 %1406
        %1410 = vset.pattern.permute.xlu0 0
        %1411 = vperm.xlu0 %1410, %v1205
        %v1412 = vpop.permute.xlu0 %1411
        %1415 = vset.pattern.permute.xlu0 0
        %1416 = vperm.xlu0 %1415, %v1206
        %v1417 = vpop.permute.xlu0 %1416
        %1420 = vset.pattern.permute.xlu0 0
        %1421 = vperm.xlu0 %1420, %v1207
        %v1422 = vpop.permute.xlu0 %1421
        %1425 = vset.pattern.permute.xlu0 0
        %1426 = vperm.xlu0 %1425, %v1208
        %v1427 = vpop.permute.xlu0 %1426
        %1430 = vset.pattern.permute.xlu0 0
        %1431 = vperm.xlu0 %1430, %v1209
        %v1432 = vpop.permute.xlu0 %1431
        %1435 = vset.pattern.permute.xlu0 0
        %1436 = vperm.xlu0 %1435, %v1210
        %v1437 = vpop.permute.xlu0 %1436
        %1440 = vset.pattern.permute.xlu0 0
        %1441 = vperm.xlu0 %1440, %v1211
        %v1442 = vpop.permute.xlu0 %1441
        %1445 = vset.pattern.permute.xlu0 0
        %1446 = vperm.xlu0 %1445, %v1212
        %v1447 = vpop.permute.xlu0 %1446
        %1450 = vset.pattern.permute.xlu0 0
        %1451 = vperm.xlu0 %1450, %v1213
        %v1452 = vpop.permute.xlu0 %1451
        %1455 = vset.pattern.permute.xlu0 0
        %1456 = vperm.xlu0 %1455, %v1214
        %v1457 = vpop.permute.xlu0 %1456
        %1460 = vset.pattern.permute.xlu0 0
        %1461 = vperm.xlu0 %1460, %v1215
        %v1462 = vpop.permute.xlu0 %1461
        %1465 = vset.pattern.permute.xlu0 0
        %1466 = vperm.xlu0 %1465, %v1216
        %v1467 = vpop.permute.xlu0 %1466
        %1470 = vset.pattern.permute.xlu0 0
        %1471 = vperm.xlu0 %1470, %v1217
        %v1472 = vpop.permute.xlu0 %1471
        %1475 = vset.pattern.permute.xlu0 0
        %1476 = vperm.xlu0 %1475, %v1218
        %v1477 = vpop.permute.xlu0 %1476
        %1480 = vset.pattern.permute.xlu0 0
        %1481 = vperm.xlu0 %1480, %v1219
        %v1482 = vpop.permute.xlu0 %1481
        %1485 = vset.pattern.permute.xlu0 0
        %1486 = vperm.xlu0 %1485, %v1220
        %v1487 = vpop.permute.xlu0 %1486
        %1490 = vset.pattern.permute.xlu0 0
        %1491 = vperm.xlu0 %1490, %v1221
        %v1492 = vpop.permute.xlu0 %1491
        %1495 = vset.pattern.permute.xlu0 0
        %1496 = vperm.xlu0 %1495, %v1222
        %v1497 = vpop.permute.xlu0 %1496
        %1500 = vset.pattern.permute.xlu0 0
        %1501 = vperm.xlu0 %1500, %v1223
        %v1502 = vpop.permute.xlu0 %1501
        %v1504 = vmul.f32 %v1112, %v1227
        %v1505 = vmul.f32 %v1113, %v1232
        %v1506 = vmul.f32 %v1114, %v1237
        %v1507 = vmul.f32 %v1115, %v1242
        %v1508 = vmul.f32 %v1116, %v1247
        %v1509 = vmul.f32 %v1117, %v1252
        %v1510 = vmul.f32 %v1118, %v1257
        %v1511 = vmul.f32 %v1119, %v1262
        %v1512 = vmul.f32 %v1120, %v1267
        %v1513 = vmul.f32 %v1121, %v1272
        %v1514 = vmul.f32 %v1122, %v1277
        %v1515 = vmul.f32 %v1123, %v1282
        %v1516 = vmul.f32 %v1124, %v1287
        %v1517 = vmul.f32 %v1125, %v1292
        %v1518 = vmul.f32 %v1126, %v1297
        %v1519 = vmul.f32 %v1127, %v1302
        %v1520 = vmul.f32 %v1128, %v1307
        %v1521 = vmul.f32 %v1129, %v1312
        %v1522 = vmul.f32 %v1130, %v1317
        %v1523 = vmul.f32 %v1131, %v1322
        %v1524 = vmul.f32 %v1132, %v1327
        %v1525 = vmul.f32 %v1133, %v1332
        %v1526 = vmul.f32 %v1134, %v1337
        %v1527 = vmul.f32 %v1135, %v1342
        %v1528 = vmul.f32 %v1136, %v1347
        %v1529 = vmul.f32 %v1137, %v1352
        %v1530 = vmul.f32 %v1138, %v1357
        %v1531 = vmul.f32 %v1139, %v1362
        %v1532 = vmul.f32 %v1140, %v1367
        %v1533 = vmul.f32 %v1141, %v1372
        %v1534 = vmul.f32 %v1142, %v1377
        %v1535 = vmul.f32 %v1143, %v1382
        %v1536 = vmul.f32 %v1144, %v1387
        %v1537 = vmul.f32 %v1145, %v1392
        %v1538 = vmul.f32 %v1146, %v1397
        %v1539 = vmul.f32 %v1147, %v1402
        %v1540 = vmul.f32 %v1148, %v1407
        %v1541 = vmul.f32 %v1149, %v1412
        %v1542 = vmul.f32 %v1150, %v1417
        %v1543 = vmul.f32 %v1151, %v1422
        %v1544 = vmul.f32 %v1152, %v1427
        %v1545 = vmul.f32 %v1153, %v1432
        %v1546 = vmul.f32 %v1154, %v1437
        %v1547 = vmul.f32 %v1155, %v1442
        %v1548 = vmul.f32 %v1156, %v1447
        %v1549 = vmul.f32 %v1157, %v1452
        %v1550 = vmul.f32 %v1158, %v1457
        %v1551 = vmul.f32 %v1159, %v1462
        %v1552 = vmul.f32 %v1160, %v1467
        %v1553 = vmul.f32 %v1161, %v1472
        %v1554 = vmul.f32 %v1162, %v1477
        %v1555 = vmul.f32 %v1163, %v1482
        %v1556 = vmul.f32 %v1164, %v1487
        %v1557 = vmul.f32 %v1165, %v1492
        %v1558 = vmul.f32 %v1166, %v1497
        %v1559 = vmul.f32 %v1167, %v1502
        %v1560 = vpack.c.bf16 %v1504, %v1504
        %v1561 = vpack.c.bf16 %v1505, %v1505
        %v1562 = vpack.c.bf16 %v1506, %v1506
        %v1563 = vpack.c.bf16 %v1507, %v1507
        %v1564 = vpack.c.bf16 %v1508, %v1508
        %v1565 = vpack.c.bf16 %v1509, %v1509
        %v1566 = vpack.c.bf16 %v1510, %v1510
        %v1567 = vpack.c.bf16 %v1511, %v1511
        %v1568 = vpack.c.bf16 %v1512, %v1512
        %v1569 = vpack.c.bf16 %v1513, %v1513
        %v1570 = vpack.c.bf16 %v1514, %v1514
        %v1571 = vpack.c.bf16 %v1515, %v1515
        %v1572 = vpack.c.bf16 %v1516, %v1516
        %v1573 = vpack.c.bf16 %v1517, %v1517
        %v1574 = vpack.c.bf16 %v1518, %v1518
        %v1575 = vpack.c.bf16 %v1519, %v1519
        %v1576 = vpack.c.bf16 %v1520, %v1520
        %v1577 = vpack.c.bf16 %v1521, %v1521
        %v1578 = vpack.c.bf16 %v1522, %v1522
        %v1579 = vpack.c.bf16 %v1523, %v1523
        %v1580 = vpack.c.bf16 %v1524, %v1524
        %v1581 = vpack.c.bf16 %v1525, %v1525
        %v1582 = vpack.c.bf16 %v1526, %v1526
        %v1583 = vpack.c.bf16 %v1527, %v1527
        %v1584 = vpack.c.bf16 %v1528, %v1528
        %v1585 = vpack.c.bf16 %v1529, %v1529
        %v1586 = vpack.c.bf16 %v1530, %v1530
        %v1587 = vpack.c.bf16 %v1531, %v1531
        %v1588 = vpack.c.bf16 %v1532, %v1532
        %v1589 = vpack.c.bf16 %v1533, %v1533
        %v1590 = vpack.c.bf16 %v1534, %v1534
        %v1591 = vpack.c.bf16 %v1535, %v1535
        %v1592 = vpack.c.bf16 %v1536, %v1536
        %v1593 = vpack.c.bf16 %v1537, %v1537
        %v1594 = vpack.c.bf16 %v1538, %v1538
        %v1595 = vpack.c.bf16 %v1539, %v1539
        %v1596 = vpack.c.bf16 %v1540, %v1540
        %v1597 = vpack.c.bf16 %v1541, %v1541
        %v1598 = vpack.c.bf16 %v1542, %v1542
        %v1599 = vpack.c.bf16 %v1543, %v1543
        %v1600 = vpack.c.bf16 %v1544, %v1544
        %v1601 = vpack.c.bf16 %v1545, %v1545
        %v1602 = vpack.c.bf16 %v1546, %v1546
        %v1603 = vpack.c.bf16 %v1547, %v1547
        %v1604 = vpack.c.bf16 %v1548, %v1548
        %v1605 = vpack.c.bf16 %v1549, %v1549
        %v1606 = vpack.c.bf16 %v1550, %v1550
        %v1607 = vpack.c.bf16 %v1551, %v1551
        %v1608 = vpack.c.bf16 %v1552, %v1552
        %v1609 = vpack.c.bf16 %v1553, %v1553
        %v1610 = vpack.c.bf16 %v1554, %v1554
        %v1611 = vpack.c.bf16 %v1555, %v1555
        %v1612 = vpack.c.bf16 %v1556, %v1556
        %v1613 = vpack.c.bf16 %v1557, %v1557
        %v1614 = vpack.c.bf16 %v1558, %v1558
        %v1615 = vpack.c.bf16 %v1559, %v1559
        %v1616 = vld [vmem:[#allocation5] sm:$0xf]
        %v1617 = vld [vmem:[#allocation5 + $0x4] sm:$0xf]
        %v1618 = vld [vmem:[#allocation5 + $0x8] sm:$0xf]
        %v1619 = vld [vmem:[#allocation5 + $0xc] sm:$0xf]
        %v1620 = vld [vmem:[#allocation5 + $0x10] sm:$0xf]
        %v1621 = vld [vmem:[#allocation5 + $0x14] sm:$0xf]
        %v1622 = vld [vmem:[#allocation5 + $0x18] sm:$0xf]
        %v1623 = vld [vmem:[#allocation5 + $0x1c] sm:$0xf]
        %v1624 = vld [vmem:[#allocation5 + $0x20] sm:$0xf]
        %v1625 = vld [vmem:[#allocation5 + $0x24] sm:$0xf]
        %v1626 = vld [vmem:[#allocation5 + $0x28] sm:$0xf]
        %v1627 = vld [vmem:[#allocation5 + $0x2c] sm:$0xf]
        %v1628 = vld [vmem:[#allocation5 + $0x30] sm:$0xf]
        %v1629 = vld [vmem:[#allocation5 + $0x34] sm:$0xf]
        %v1630 = vld [vmem:[#allocation5 + $0x38] sm:$0xf]
        %v1631 = vld [vmem:[#allocation5 + $0x3c] sm:$0xf]
        %s1632 = scalar_lea.vmem [#allocation5], 192
        %v1633 = vld [vmem:[%s1632] sm:$0xf]
        %v1634 = vld [vmem:[%s1632 + $0x4] sm:$0xf]
        %v1635 = vld [vmem:[%s1632 + $0x8] sm:$0xf]
        %v1636 = vld [vmem:[%s1632 + $0xc] sm:$0xf]
        %v1637 = vld [vmem:[%s1632 + $0x10] sm:$0xf]
        %v1638 = vld [vmem:[%s1632 + $0x14] sm:$0xf]
        %v1639 = vld [vmem:[%s1632 + $0x18] sm:$0xf]
        %v1640 = vld [vmem:[%s1632 + $0x1c] sm:$0xf]
        %v1641 = vld [vmem:[%s1632 + $0x20] sm:$0xf]
        %v1642 = vld [vmem:[%s1632 + $0x24] sm:$0xf]
        %v1643 = vld [vmem:[%s1632 + $0x28] sm:$0xf]
        %v1644 = vld [vmem:[%s1632 + $0x2c] sm:$0xf]
        %v1645 = vld [vmem:[%s1632 + $0x30] sm:$0xf]
        %v1646 = vld [vmem:[%s1632 + $0x34] sm:$0xf]
        %v1647 = vld [vmem:[%s1632 + $0x38] sm:$0xf]
        %v1648 = vld [vmem:[%s1632 + $0x3c] sm:$0xf]
        %v1698 = vunpack.c.l.b16 %v1563
        %v1699 = vunpack.c.l.b16 %v1564
        %v1700 = vunpack.c.l.b16 %v1565
        %v1701 = vunpack.c.l.b16 %v1566
        %v1702 = vunpack.c.l.b16 %v1567
        %v1703 = vunpack.c.l.b16 %v1568
        %v1704 = vunpack.c.l.b16 %v1569
        %v1705 = vunpack.c.l.b16 %v1570
        %v1706 = vunpack.c.l.b16 %v1571
        %v1707 = vunpack.c.l.b16 %v1572
        %v1708 = vunpack.c.l.b16 %v1573
        %v1709 = vunpack.c.l.b16 %v1574
        %v1710 = vunpack.c.l.b16 %v1575
        %v1711 = vunpack.c.l.b16 %v1576
        %v1712 = vunpack.c.l.b16 %v1577
        %v1713 = vunpack.c.l.b16 %v1578
        %v1714 = vunpack.c.l.b16 %v1579
        %v1715 = vunpack.c.l.b16 %v1580
        %v1716 = vunpack.c.l.b16 %v1581
        %v1717 = vunpack.c.l.b16 %v1582
        %v1718 = vunpack.c.l.b16 %v1583
        %v1719 = vunpack.c.l.b16 %v1584
        %v1720 = vunpack.c.l.b16 %v1585
        %v1721 = vunpack.c.l.b16 %v1586
        %v1722 = vunpack.c.l.b16 %v1587
        %v1723 = vunpack.c.l.b16 %v1588
        %v1724 = vunpack.c.l.b16 %v1589
        %v1725 = vunpack.c.l.b16 %v1590
        %v1726 = vunpack.c.l.b16 %v1591
        %v1727 = vunpack.c.l.b16 %v1592
        %v1728 = vunpack.c.l.b16 %v1593
        %v1729 = vunpack.c.l.b16 %v1594
        %v1730 = vunpack.c.l.b16 %v1595
        %v1731 = vunpack.c.l.b16 %v1596
        %v1732 = vunpack.c.l.b16 %v1597
        %v1733 = vunpack.c.l.b16 %v1598
        %v1734 = vunpack.c.l.b16 %v1599
        %v1735 = vunpack.c.l.b16 %v1600
        %v1736 = vunpack.c.l.b16 %v1601
        %v1737 = vunpack.c.l.b16 %v1602
        %v1738 = vunpack.c.l.b16 %v1603
        %v1739 = vunpack.c.l.b16 %v1604
        %v1740 = vunpack.c.l.b16 %v1605
        %v1741 = vunpack.c.l.b16 %v1606
        %v1742 = vunpack.c.l.b16 %v1607
        %v1743 = vunpack.c.l.b16 %v1608
        %v1744 = vunpack.c.l.b16 %v1609
        %v1745 = vunpack.c.l.b16 %v1610
        %v1746 = vunpack.c.l.b16 %v1611
        %v1747 = vpack.c.b16 %v1699, %v1698
        %v1748 = vpack.c.b16 %v1701, %v1700
        %v1749 = vpack.c.b16 %v1703, %v1702
        %v1750 = vpack.c.b16 %v1705, %v1704
        %v1751 = vpack.c.b16 %v1707, %v1706
        %v1752 = vpack.c.b16 %v1709, %v1708
        %v1753 = vpack.c.b16 %v1711, %v1710
        %v1754 = vpack.c.b16 %v1713, %v1712
        %v1755 = vpack.c.b16 %v1715, %v1714
        %v1756 = vpack.c.b16 %v1717, %v1716
        %v1757 = vpack.c.b16 %v1719, %v1718
        %v1758 = vpack.c.b16 %v1721, %v1720
        %v1759 = vpack.c.b16 %v1723, %v1722
        %v1760 = vpack.c.b16 %v1725, %v1724
        %v1761 = vpack.c.b16 %v1727, %v1726
        %v1762 = vpack.c.b16 %v1729, %v1728
        %v1763 = vpack.c.b16 %v1731, %v1730
        %v1764 = vpack.c.b16 %v1733, %v1732
        %v1765 = vpack.c.b16 %v1735, %v1734
        %v1766 = vpack.c.b16 %v1737, %v1736
        %v1767 = vpack.c.b16 %v1739, %v1738
        %v1768 = vpack.c.b16 %v1741, %v1740
        %v1769 = vpack.c.b16 %v1743, %v1742
        %v1770 = vpack.c.b16 %v1745, %v1744
        %v1771 = vpack.c.b16 %v1746, %v1746
        %vm1772 = vsmask.f32 4352
        %v1774 = vshrl.u32 %v1747, 16
        %v1776 = vrot.slane %v1774, 3
        %v1777 = vshll.u32 %v1747, 16
        %v1779 = vrot.slane %v1777, 4
        %v1780 = vor.u32 %v1776, %v1779
        %v1782 = vshrl.u32 %v1748, 16
        %v1784 = vrot.slane %v1782, 3
        %v1785 = vshll.u32 %v1748, 16
        %v1787 = vrot.slane %v1785, 4
        %v1788 = vor.u32 %v1784, %v1787
        %v1789 = vsel %vm1772, %v1780, %v1788
        %v1791 = vshrl.u32 %v1749, 16
        %v1793 = vrot.slane %v1791, 3
        %v1794 = vshll.u32 %v1749, 16
        %v1796 = vrot.slane %v1794, 4
        %v1797 = vor.u32 %v1793, %v1796
        %v1798 = vsel %vm1772, %v1788, %v1797
        %v1800 = vshrl.u32 %v1750, 16
        %v1802 = vrot.slane %v1800, 3
        %v1803 = vshll.u32 %v1750, 16
        %v1805 = vrot.slane %v1803, 4
        %v1806 = vor.u32 %v1802, %v1805
        %v1807 = vsel %vm1772, %v1797, %v1806
        %v1809 = vshrl.u32 %v1751, 16
        %v1811 = vrot.slane %v1809, 3
        %v1812 = vshll.u32 %v1751, 16
        %v1814 = vrot.slane %v1812, 4
        %v1815 = vor.u32 %v1811, %v1814
        %v1816 = vsel %vm1772, %v1806, %v1815
        %v1818 = vshrl.u32 %v1752, 16
        %v1820 = vrot.slane %v1818, 3
        %v1821 = vshll.u32 %v1752, 16
        %v1823 = vrot.slane %v1821, 4
        %v1824 = vor.u32 %v1820, %v1823
        %v1825 = vsel %vm1772, %v1815, %v1824
        %v1827 = vshrl.u32 %v1753, 16
        %v1829 = vrot.slane %v1827, 3
        %v1830 = vshll.u32 %v1753, 16
        %v1832 = vrot.slane %v1830, 4
        %v1833 = vor.u32 %v1829, %v1832
        %v1834 = vsel %vm1772, %v1824, %v1833
        %v1836 = vshrl.u32 %v1754, 16
        %v1838 = vrot.slane %v1836, 3
        %v1839 = vshll.u32 %v1754, 16
        %v1841 = vrot.slane %v1839, 4
        %v1842 = vor.u32 %v1838, %v1841
        %v1843 = vsel %vm1772, %v1833, %v1842
        %v1845 = vshrl.u32 %v1755, 16
        %v1847 = vrot.slane %v1845, 3
        %v1848 = vshll.u32 %v1755, 16
        %v1850 = vrot.slane %v1848, 4
        %v1851 = vor.u32 %v1847, %v1850
        %v1852 = vsel %vm1772, %v1842, %v1851
        %v1854 = vshrl.u32 %v1756, 16
        %v1856 = vrot.slane %v1854, 3
        %v1857 = vshll.u32 %v1756, 16
        %v1859 = vrot.slane %v1857, 4
        %v1860 = vor.u32 %v1856, %v1859
        %v1861 = vsel %vm1772, %v1851, %v1860
        %v1863 = vshrl.u32 %v1757, 16
        %v1865 = vrot.slane %v1863, 3
        %v1866 = vshll.u32 %v1757, 16
        %v1868 = vrot.slane %v1866, 4
        %v1869 = vor.u32 %v1865, %v1868
        %v1870 = vsel %vm1772, %v1860, %v1869
        %v1872 = vshrl.u32 %v1758, 16
        %v1874 = vrot.slane %v1872, 3
        %v1875 = vshll.u32 %v1758, 16
        %v1877 = vrot.slane %v1875, 4
        %v1878 = vor.u32 %v1874, %v1877
        %v1879 = vsel %vm1772, %v1869, %v1878
        %v1881 = vshrl.u32 %v1759, 16
        %v1883 = vrot.slane %v1881, 3
        %v1884 = vshll.u32 %v1759, 16
        %v1886 = vrot.slane %v1884, 4
        %v1887 = vor.u32 %v1883, %v1886
        %v1888 = vsel %vm1772, %v1878, %v1887
        %v1890 = vshrl.u32 %v1760, 16
        %v1892 = vrot.slane %v1890, 3
        %v1893 = vshll.u32 %v1760, 16
        %v1895 = vrot.slane %v1893, 4
        %v1896 = vor.u32 %v1892, %v1895
        %v1897 = vsel %vm1772, %v1887, %v1896
        %v1899 = vshrl.u32 %v1761, 16
        %v1901 = vrot.slane %v1899, 3
        %v1902 = vshll.u32 %v1761, 16
        %v1904 = vrot.slane %v1902, 4
        %v1905 = vor.u32 %v1901, %v1904
        %v1906 = vsel %vm1772, %v1896, %v1905
        %v1908 = vshrl.u32 %v1762, 16
        %v1910 = vrot.slane %v1908, 3
        %v1911 = vshll.u32 %v1762, 16
        %v1913 = vrot.slane %v1911, 4
        %v1914 = vor.u32 %v1910, %v1913
        %v1915 = vsel %vm1772, %v1905, %v1914
        %v1917 = vshrl.u32 %v1763, 16
        %v1919 = vrot.slane %v1917, 3
        %v1920 = vshll.u32 %v1763, 16
        %v1922 = vrot.slane %v1920, 4
        %v1923 = vor.u32 %v1919, %v1922
        %v1924 = vsel %vm1772, %v1914, %v1923
        %v1926 = vshrl.u32 %v1764, 16
        %v1928 = vrot.slane %v1926, 3
        %v1929 = vshll.u32 %v1764, 16
        %v1931 = vrot.slane %v1929, 4
        %v1932 = vor.u32 %v1928, %v1931
        %v1933 = vsel %vm1772, %v1923, %v1932
        %v1935 = vshrl.u32 %v1765, 16
        %v1937 = vrot.slane %v1935, 3
        %v1938 = vshll.u32 %v1765, 16
        %v1940 = vrot.slane %v1938, 4
        %v1941 = vor.u32 %v1937, %v1940
        %v1942 = vsel %vm1772, %v1932, %v1941
        %v1944 = vshrl.u32 %v1766, 16
        %v1946 = vrot.slane %v1944, 3
        %v1947 = vshll.u32 %v1766, 16
        %v1949 = vrot.slane %v1947, 4
        %v1950 = vor.u32 %v1946, %v1949
        %v1951 = vsel %vm1772, %v1941, %v1950
        %v1953 = vshrl.u32 %v1767, 16
        %v1955 = vrot.slane %v1953, 3
        %v1956 = vshll.u32 %v1767, 16
        %v1958 = vrot.slane %v1956, 4
        %v1959 = vor.u32 %v1955, %v1958
        %v1960 = vsel %vm1772, %v1950, %v1959
        %v1962 = vshrl.u32 %v1768, 16
        %v1964 = vrot.slane %v1962, 3
        %v1965 = vshll.u32 %v1768, 16
        %v1967 = vrot.slane %v1965, 4
        %v1968 = vor.u32 %v1964, %v1967
        %v1969 = vsel %vm1772, %v1959, %v1968
        %v1971 = vshrl.u32 %v1769, 16
        %v1973 = vrot.slane %v1971, 3
        %v1974 = vshll.u32 %v1769, 16
        %v1976 = vrot.slane %v1974, 4
        %v1977 = vor.u32 %v1973, %v1976
        %v1978 = vsel %vm1772, %v1968, %v1977
        %v1980 = vshrl.u32 %v1770, 16
        %v1982 = vrot.slane %v1980, 3
        %v1983 = vshll.u32 %v1770, 16
        %v1985 = vrot.slane %v1983, 4
        %v1986 = vor.u32 %v1982, %v1985
        %v1987 = vsel %vm1772, %v1977, %v1986
        %v1989 = vshrl.u32 %v1771, 16
        %v1991 = vrot.slane %v1989, 3
        %v1992 = vshll.u32 %v1771, 16
        %v1994 = vrot.slane %v1992, 4
        %v1995 = vor.u32 %v1991, %v1994
        %v1996 = vsel %vm1772, %v1986, %v1995
        %v2037 = vunpack.c.l.b16 %v1633
        %v2038 = vunpack.c.l.b16 %v1634
        %v2039 = vunpack.c.l.b16 %v1635
        %v2040 = vunpack.c.l.b16 %v1636
        %v2041 = vunpack.c.l.b16 %v1637
        %v2042 = vunpack.c.l.b16 %v1638
        %v2043 = vunpack.c.l.b16 %v1639
        %v2044 = vunpack.c.l.b16 %v1640
        %v2045 = vunpack.c.l.b16 %v1641
        %v2046 = vunpack.c.l.b16 %v1642
        %v2047 = vunpack.c.l.b16 %v1643
        %v2048 = vunpack.c.l.b16 %v1644
        %v2049 = vunpack.c.l.b16 %v1645
        %v2050 = vunpack.c.l.b16 %v1646
        %v2051 = vunpack.c.l.b16 %v1647
        %v2052 = vunpack.c.l.b16 %v1648
        %v2053 = vpack.c.b16 %v2038, %v2037
        %v2054 = vpack.c.b16 %v2040, %v2039
        %v2055 = vpack.c.b16 %v2042, %v2041
        %v2056 = vpack.c.b16 %v2044, %v2043
        %v2057 = vpack.c.b16 %v2046, %v2045
        %v2058 = vpack.c.b16 %v2048, %v2047
        %v2059 = vpack.c.b16 %v2050, %v2049
        %v2060 = vpack.c.b16 %v2052, %v2051
        %2069 = vmatpush.bf16.msra.mxu0 %v2060
        %2070 = vmatpush.bf16.msra.mxu0 %v2059
        %2071 = vmatpush.bf16.msra.mxu0 %v2058
        %2072 = vmatpush.bf16.msra.mxu0 %v2057
        %2073 = vmatpush.bf16.msra.mxu0 %v2056
        %2074 = vmatpush.bf16.msra.mxu0 %v2055
        %2075 = vmatpush.bf16.msra.mxu0 %v2054
        %2076 = vmatpush.bf16.msra.mxu0 %v2053
        %2077 = vmatmul.bf16.gmra.mxu0 %v1789
        %v2078 = vpop.f32.mrf.mxu0
        %v2079 = vadd.f32 0.0, %v2078
        %v2080 = vpop.f32.mrf.mxu0
        %v2081 = vadd.f32 0.0, %v2080
        %2082 = vmatmul.bf16.gmra.mxu0 %v1798
        %v2083 = vpop.f32.mrf.mxu0
        %v2084 = vadd.f32 0.0, %v2083
        %v2085 = vpop.f32.mrf.mxu0
        %v2086 = vadd.f32 0.0, %v2085
        %2087 = vmatmul.bf16.gmra.mxu0 %v1807
        %v2088 = vpop.f32.mrf.mxu0
        %v2089 = vadd.f32 0.0, %v2088
        %v2090 = vpop.f32.mrf.mxu0
        %v2091 = vadd.f32 0.0, %v2090
        %2092 = vmatmul.bf16.gmra.mxu0 %v1816
        %v2093 = vpop.f32.mrf.mxu0
        %v2094 = vadd.f32 0.0, %v2093
        %v2095 = vpop.f32.mrf.mxu0
        %v2096 = vadd.f32 0.0, %v2095
        %2097 = vmatmul.bf16.gmra.mxu0 %v1825
        %v2098 = vpop.f32.mrf.mxu0
        %v2099 = vadd.f32 0.0, %v2098
        %v2100 = vpop.f32.mrf.mxu0
        %v2101 = vadd.f32 0.0, %v2100
        %2102 = vmatmul.bf16.gmra.mxu0 %v1834
        %v2103 = vpop.f32.mrf.mxu0
        %v2104 = vadd.f32 0.0, %v2103
        %v2105 = vpop.f32.mrf.mxu0
        %v2106 = vadd.f32 0.0, %v2105
        %2107 = vmatmul.bf16.gmra.mxu0 %v1843
        %v2108 = vpop.f32.mrf.mxu0
        %v2109 = vadd.f32 0.0, %v2108
        %v2110 = vpop.f32.mrf.mxu0
        %v2111 = vadd.f32 0.0, %v2110
        %2112 = vmatmul.bf16.gmra.mxu0 %v1852
        %v2113 = vpop.f32.mrf.mxu0
        %v2114 = vadd.f32 0.0, %v2113
        %v2115 = vpop.f32.mrf.mxu0
        %v2116 = vadd.f32 0.0, %v2115
        %2117 = vmatmul.bf16.gmra.mxu0 %v1861
        %v2118 = vpop.f32.mrf.mxu0
        %v2119 = vadd.f32 0.0, %v2118
        %v2120 = vpop.f32.mrf.mxu0
        %v2121 = vadd.f32 0.0, %v2120
        %2122 = vmatmul.bf16.gmra.mxu0 %v1870
        %v2123 = vpop.f32.mrf.mxu0
        %v2124 = vadd.f32 0.0, %v2123
        %v2125 = vpop.f32.mrf.mxu0
        %v2126 = vadd.f32 0.0, %v2125
        %2127 = vmatmul.bf16.gmra.mxu0 %v1879
        %v2128 = vpop.f32.mrf.mxu0
        %v2129 = vadd.f32 0.0, %v2128
        %v2130 = vpop.f32.mrf.mxu0
        %v2131 = vadd.f32 0.0, %v2130
        %2132 = vmatmul.bf16.gmra.mxu0 %v1888
        %v2133 = vpop.f32.mrf.mxu0
        %v2134 = vadd.f32 0.0, %v2133
        %v2135 = vpop.f32.mrf.mxu0
        %v2136 = vadd.f32 0.0, %v2135
        %2137 = vmatmul.bf16.gmra.mxu0 %v1897
        %v2138 = vpop.f32.mrf.mxu0
        %v2139 = vadd.f32 0.0, %v2138
        %v2140 = vpop.f32.mrf.mxu0
        %v2141 = vadd.f32 0.0, %v2140
        %2142 = vmatmul.bf16.gmra.mxu0 %v1906
        %v2143 = vpop.f32.mrf.mxu0
        %v2144 = vadd.f32 0.0, %v2143
        %v2145 = vpop.f32.mrf.mxu0
        %v2146 = vadd.f32 0.0, %v2145
        %2147 = vmatmul.bf16.gmra.mxu0 %v1915
        %v2148 = vpop.f32.mrf.mxu0
        %v2149 = vadd.f32 0.0, %v2148
        %v2150 = vpop.f32.mrf.mxu0
        %v2151 = vadd.f32 0.0, %v2150
        %2152 = vmatmul.bf16.gmra.mxu0 %v1924
        %v2153 = vpop.f32.mrf.mxu0
        %v2154 = vadd.f32 0.0, %v2153
        %v2155 = vpop.f32.mrf.mxu0
        %v2156 = vadd.f32 0.0, %v2155
        %2157 = vmatmul.bf16.gmra.mxu0 %v1933
        %v2158 = vpop.f32.mrf.mxu0
        %v2159 = vadd.f32 0.0, %v2158
        %v2160 = vpop.f32.mrf.mxu0
        %v2161 = vadd.f32 0.0, %v2160
        %2162 = vmatmul.bf16.gmra.mxu0 %v1942
        %v2163 = vpop.f32.mrf.mxu0
        %v2164 = vadd.f32 0.0, %v2163
        %v2165 = vpop.f32.mrf.mxu0
        %v2166 = vadd.f32 0.0, %v2165
        %2167 = vmatmul.bf16.gmra.mxu0 %v1951
        %v2168 = vpop.f32.mrf.mxu0
        %v2169 = vadd.f32 0.0, %v2168
        %v2170 = vpop.f32.mrf.mxu0
        %v2171 = vadd.f32 0.0, %v2170
        %2172 = vmatmul.bf16.gmra.mxu0 %v1960
        %v2173 = vpop.f32.mrf.mxu0
        %v2174 = vadd.f32 0.0, %v2173
        %v2175 = vpop.f32.mrf.mxu0
        %v2176 = vadd.f32 0.0, %v2175
        %2177 = vmatmul.bf16.gmra.mxu0 %v1969
        %v2178 = vpop.f32.mrf.mxu0
        %v2179 = vadd.f32 0.0, %v2178
        %v2180 = vpop.f32.mrf.mxu0
        %v2181 = vadd.f32 0.0, %v2180
        %2182 = vmatmul.bf16.gmra.mxu0 %v1978
        %v2183 = vpop.f32.mrf.mxu0
        %v2184 = vadd.f32 0.0, %v2183
        %v2185 = vpop.f32.mrf.mxu0
        %v2186 = vadd.f32 0.0, %v2185
        %2187 = vmatmul.bf16.gmra.mxu0 %v1987
        %v2188 = vpop.f32.mrf.mxu0
        %v2189 = vadd.f32 0.0, %v2188
        %v2190 = vpop.f32.mrf.mxu0
        %v2191 = vadd.f32 0.0, %v2190
        %2192 = vmatmul.bf16.gmra.mxu0 %v1996
        %v2193 = vpop.f32.mrf.mxu0
        %v2194 = vadd.f32 0.0, %v2193
        %v2195 = vpop.f32.mrf.mxu0
        %v2196 = vadd.f32 0.0, %v2195
        %2197 = vdwg.mxu0
        %v2201 = vunpack.c.l.b16 %v1560
        %v2202 = vunpack.c.l.b16 %v1561
        %v2203 = vunpack.c.l.b16 %v1562
        %v2204 = vpack.c.b16 %v2202, %v2201
        %v2205 = vpack.c.b16 %v1698, %v2203
        %v2206 = vpack.c.b16 %v1700, %v1699
        %v2207 = vpack.c.b16 %v1702, %v1701
        %v2208 = vpack.c.b16 %v1704, %v1703
        %v2209 = vpack.c.b16 %v1706, %v1705
        %v2210 = vpack.c.b16 %v1708, %v1707
        %v2211 = vpack.c.b16 %v1710, %v1709
        %v2212 = vpack.c.b16 %v1712, %v1711
        %v2213 = vpack.c.b16 %v1714, %v1713
        %v2214 = vpack.c.b16 %v1716, %v1715
        %v2215 = vpack.c.b16 %v1718, %v1717
        %v2216 = vpack.c.b16 %v1720, %v1719
        %v2217 = vpack.c.b16 %v1722, %v1721
        %v2218 = vpack.c.b16 %v1724, %v1723
        %v2219 = vpack.c.b16 %v1726, %v1725
        %v2220 = vpack.c.b16 %v1728, %v1727
        %v2221 = vpack.c.b16 %v1730, %v1729
        %v2222 = vpack.c.b16 %v1732, %v1731
        %v2223 = vpack.c.b16 %v1734, %v1733
        %v2224 = vpack.c.b16 %v1736, %v1735
        %v2225 = vpack.c.b16 %v1738, %v1737
        %v2226 = vpack.c.b16 %v1740, %v1739
        %v2227 = vpack.c.b16 %v1742, %v1741
        %v2228 = vpack.c.b16 %v1743, %v1743
        %v2230 = vshrl.u32 %v2204, 16
        %v2232 = vrot.slane %v2230, 3
        %v2233 = vshll.u32 %v2204, 16
        %v2235 = vrot.slane %v2233, 4
        %v2236 = vor.u32 %v2232, %v2235
        %v2238 = vshrl.u32 %v2205, 16
        %v2240 = vrot.slane %v2238, 3
        %v2241 = vshll.u32 %v2205, 16
        %v2243 = vrot.slane %v2241, 4
        %v2244 = vor.u32 %v2240, %v2243
        %v2245 = vsel %vm1772, %v2236, %v2244
        %v2247 = vshrl.u32 %v2206, 16
        %v2249 = vrot.slane %v2247, 3
        %v2250 = vshll.u32 %v2206, 16
        %v2252 = vrot.slane %v2250, 4
        %v2253 = vor.u32 %v2249, %v2252
        %v2254 = vsel %vm1772, %v2244, %v2253
        %v2256 = vshrl.u32 %v2207, 16
        %v2258 = vrot.slane %v2256, 3
        %v2259 = vshll.u32 %v2207, 16
        %v2261 = vrot.slane %v2259, 4
        %v2262 = vor.u32 %v2258, %v2261
        %v2263 = vsel %vm1772, %v2253, %v2262
        %v2265 = vshrl.u32 %v2208, 16
        %v2267 = vrot.slane %v2265, 3
        %v2268 = vshll.u32 %v2208, 16
        %v2270 = vrot.slane %v2268, 4
        %v2271 = vor.u32 %v2267, %v2270
        %v2272 = vsel %vm1772, %v2262, %v2271
        %v2274 = vshrl.u32 %v2209, 16
        %v2276 = vrot.slane %v2274, 3
        %v2277 = vshll.u32 %v2209, 16
        %v2279 = vrot.slane %v2277, 4
        %v2280 = vor.u32 %v2276, %v2279
        %v2281 = vsel %vm1772, %v2271, %v2280
        %v2283 = vshrl.u32 %v2210, 16
        %v2285 = vrot.slane %v2283, 3
        %v2286 = vshll.u32 %v2210, 16
        %v2288 = vrot.slane %v2286, 4
        %v2289 = vor.u32 %v2285, %v2288
        %v2290 = vsel %vm1772, %v2280, %v2289
        %v2292 = vshrl.u32 %v2211, 16
        %v2294 = vrot.slane %v2292, 3
        %v2295 = vshll.u32 %v2211, 16
        %v2297 = vrot.slane %v2295, 4
        %v2298 = vor.u32 %v2294, %v2297
        %v2299 = vsel %vm1772, %v2289, %v2298
        %v2301 = vshrl.u32 %v2212, 16
        %v2303 = vrot.slane %v2301, 3
        %v2304 = vshll.u32 %v2212, 16
        %v2306 = vrot.slane %v2304, 4
        %v2307 = vor.u32 %v2303, %v2306
        %v2308 = vsel %vm1772, %v2298, %v2307
        %v2310 = vshrl.u32 %v2213, 16
        %v2312 = vrot.slane %v2310, 3
        %v2313 = vshll.u32 %v2213, 16
        %v2315 = vrot.slane %v2313, 4
        %v2316 = vor.u32 %v2312, %v2315
        %v2317 = vsel %vm1772, %v2307, %v2316
        %v2319 = vshrl.u32 %v2214, 16
        %v2321 = vrot.slane %v2319, 3
        %v2322 = vshll.u32 %v2214, 16
        %v2324 = vrot.slane %v2322, 4
        %v2325 = vor.u32 %v2321, %v2324
        %v2326 = vsel %vm1772, %v2316, %v2325
        %v2328 = vshrl.u32 %v2215, 16
        %v2330 = vrot.slane %v2328, 3
        %v2331 = vshll.u32 %v2215, 16
        %v2333 = vrot.slane %v2331, 4
        %v2334 = vor.u32 %v2330, %v2333
        %v2335 = vsel %vm1772, %v2325, %v2334
        %v2337 = vshrl.u32 %v2216, 16
        %v2339 = vrot.slane %v2337, 3
        %v2340 = vshll.u32 %v2216, 16
        %v2342 = vrot.slane %v2340, 4
        %v2343 = vor.u32 %v2339, %v2342
        %v2344 = vsel %vm1772, %v2334, %v2343
        %v2346 = vshrl.u32 %v2217, 16
        %v2348 = vrot.slane %v2346, 3
        %v2349 = vshll.u32 %v2217, 16
        %v2351 = vrot.slane %v2349, 4
        %v2352 = vor.u32 %v2348, %v2351
        %v2353 = vsel %vm1772, %v2343, %v2352
        %v2355 = vshrl.u32 %v2218, 16
        %v2357 = vrot.slane %v2355, 3
        %v2358 = vshll.u32 %v2218, 16
        %v2360 = vrot.slane %v2358, 4
        %v2361 = vor.u32 %v2357, %v2360
        %v2362 = vsel %vm1772, %v2352, %v2361
        %v2364 = vshrl.u32 %v2219, 16
        %v2366 = vrot.slane %v2364, 3
        %v2367 = vshll.u32 %v2219, 16
        %v2369 = vrot.slane %v2367, 4
        %v2370 = vor.u32 %v2366, %v2369
        %v2371 = vsel %vm1772, %v2361, %v2370
        %v2373 = vshrl.u32 %v2220, 16
        %v2375 = vrot.slane %v2373, 3
        %v2376 = vshll.u32 %v2220, 16
        %v2378 = vrot.slane %v2376, 4
        %v2379 = vor.u32 %v2375, %v2378
        %v2380 = vsel %vm1772, %v2370, %v2379
        %v2382 = vshrl.u32 %v2221, 16
        %v2384 = vrot.slane %v2382, 3
        %v2385 = vshll.u32 %v2221, 16
        %v2387 = vrot.slane %v2385, 4
        %v2388 = vor.u32 %v2384, %v2387
        %v2389 = vsel %vm1772, %v2379, %v2388
        %v2391 = vshrl.u32 %v2222, 16
        %v2393 = vrot.slane %v2391, 3
        %v2394 = vshll.u32 %v2222, 16
        %v2396 = vrot.slane %v2394, 4
        %v2397 = vor.u32 %v2393, %v2396
        %v2398 = vsel %vm1772, %v2388, %v2397
        %v2400 = vshrl.u32 %v2223, 16
        %v2402 = vrot.slane %v2400, 3
        %v2403 = vshll.u32 %v2223, 16
        %v2405 = vrot.slane %v2403, 4
        %v2406 = vor.u32 %v2402, %v2405
        %v2407 = vsel %vm1772, %v2397, %v2406
        %v2409 = vshrl.u32 %v2224, 16
        %v2411 = vrot.slane %v2409, 3
        %v2412 = vshll.u32 %v2224, 16
        %v2414 = vrot.slane %v2412, 4
        %v2415 = vor.u32 %v2411, %v2414
        %v2416 = vsel %vm1772, %v2406, %v2415
        %v2418 = vshrl.u32 %v2225, 16
        %v2420 = vrot.slane %v2418, 3
        %v2421 = vshll.u32 %v2225, 16
        %v2423 = vrot.slane %v2421, 4
        %v2424 = vor.u32 %v2420, %v2423
        %v2425 = vsel %vm1772, %v2415, %v2424
        %v2427 = vshrl.u32 %v2226, 16
        %v2429 = vrot.slane %v2427, 3
        %v2430 = vshll.u32 %v2226, 16
        %v2432 = vrot.slane %v2430, 4
        %v2433 = vor.u32 %v2429, %v2432
        %v2434 = vsel %vm1772, %v2424, %v2433
        %v2436 = vshrl.u32 %v2227, 16
        %v2438 = vrot.slane %v2436, 3
        %v2439 = vshll.u32 %v2227, 16
        %v2441 = vrot.slane %v2439, 4
        %v2442 = vor.u32 %v2438, %v2441
        %v2443 = vsel %vm1772, %v2433, %v2442
        %v2445 = vshrl.u32 %v2228, 16
        %v2447 = vrot.slane %v2445, 3
        %v2448 = vshll.u32 %v2228, 16
        %v2450 = vrot.slane %v2448, 4
        %v2451 = vor.u32 %v2447, %v2450
        %v2452 = vsel %vm1772, %v2442, %v2451
        %v2493 = vunpack.c.l.b16 %v1616
        %v2494 = vunpack.c.l.b16 %v1617
        %v2495 = vunpack.c.l.b16 %v1618
        %v2496 = vunpack.c.l.b16 %v1619
        %v2497 = vunpack.c.l.b16 %v1620
        %v2498 = vunpack.c.l.b16 %v1621
        %v2499 = vunpack.c.l.b16 %v1622
        %v2500 = vunpack.c.l.b16 %v1623
        %v2501 = vunpack.c.l.b16 %v1624
        %v2502 = vunpack.c.l.b16 %v1625
        %v2503 = vunpack.c.l.b16 %v1626
        %v2504 = vunpack.c.l.b16 %v1627
        %v2505 = vunpack.c.l.b16 %v1628
        %v2506 = vunpack.c.l.b16 %v1629
        %v2507 = vunpack.c.l.b16 %v1630
        %v2508 = vunpack.c.l.b16 %v1631
        %v2509 = vpack.c.b16 %v2494, %v2493
        %v2510 = vpack.c.b16 %v2496, %v2495
        %v2511 = vpack.c.b16 %v2498, %v2497
        %v2512 = vpack.c.b16 %v2500, %v2499
        %v2513 = vpack.c.b16 %v2502, %v2501
        %v2514 = vpack.c.b16 %v2504, %v2503
        %v2515 = vpack.c.b16 %v2506, %v2505
        %v2516 = vpack.c.b16 %v2508, %v2507
        %2525 = vmatpush.bf16.msra.mxu0 %v2516
        %2526 = vmatpush.bf16.msra.mxu0 %v2515
        %2527 = vmatpush.bf16.msra.mxu0 %v2514
        %2528 = vmatpush.bf16.msra.mxu0 %v2513
        %2529 = vmatpush.bf16.msra.mxu0 %v2512
        %2530 = vmatpush.bf16.msra.mxu0 %v2511
        %2531 = vmatpush.bf16.msra.mxu0 %v2510
        %2532 = vmatpush.bf16.msra.mxu0 %v2509
        %2533 = vmatmul.bf16.gmra.mxu0 %v2245
        %v2534 = vpop.f32.mrf.mxu0
        %v2535 = vadd.f32 %v2079, %v2534
        %v2536 = vpop.f32.mrf.mxu0
        %v2537 = vadd.f32 %v2081, %v2536
        %2538 = vmatmul.bf16.gmra.mxu0 %v2254
        %v2539 = vpop.f32.mrf.mxu0
        %v2540 = vadd.f32 %v2084, %v2539
        %v2541 = vpop.f32.mrf.mxu0
        %v2542 = vadd.f32 %v2086, %v2541
        %2543 = vmatmul.bf16.gmra.mxu0 %v2263
        %v2544 = vpop.f32.mrf.mxu0
        %v2545 = vadd.f32 %v2089, %v2544
        %v2546 = vpop.f32.mrf.mxu0
        %v2547 = vadd.f32 %v2091, %v2546
        %2548 = vmatmul.bf16.gmra.mxu0 %v2272
        %v2549 = vpop.f32.mrf.mxu0
        %v2550 = vadd.f32 %v2094, %v2549
        %v2551 = vpop.f32.mrf.mxu0
        %v2552 = vadd.f32 %v2096, %v2551
        %2553 = vmatmul.bf16.gmra.mxu0 %v2281
        %v2554 = vpop.f32.mrf.mxu0
        %v2555 = vadd.f32 %v2099, %v2554
        %v2556 = vpop.f32.mrf.mxu0
        %v2557 = vadd.f32 %v2101, %v2556
        %2558 = vmatmul.bf16.gmra.mxu0 %v2290
        %v2559 = vpop.f32.mrf.mxu0
        %v2560 = vadd.f32 %v2104, %v2559
        %v2561 = vpop.f32.mrf.mxu0
        %v2562 = vadd.f32 %v2106, %v2561
        %2563 = vmatmul.bf16.gmra.mxu0 %v2299
        %v2564 = vpop.f32.mrf.mxu0
        %v2565 = vadd.f32 %v2109, %v2564
        %v2566 = vpop.f32.mrf.mxu0
        %v2567 = vadd.f32 %v2111, %v2566
        %2568 = vmatmul.bf16.gmra.mxu0 %v2308
        %v2569 = vpop.f32.mrf.mxu0
        %v2570 = vadd.f32 %v2114, %v2569
        %v2571 = vpop.f32.mrf.mxu0
        %v2572 = vadd.f32 %v2116, %v2571
        %2573 = vmatmul.bf16.gmra.mxu0 %v2317
        %v2574 = vpop.f32.mrf.mxu0
        %v2575 = vadd.f32 %v2119, %v2574
        %v2576 = vpop.f32.mrf.mxu0
        %v2577 = vadd.f32 %v2121, %v2576
        %2578 = vmatmul.bf16.gmra.mxu0 %v2326
        %v2579 = vpop.f32.mrf.mxu0
        %v2580 = vadd.f32 %v2124, %v2579
        %v2581 = vpop.f32.mrf.mxu0
        %v2582 = vadd.f32 %v2126, %v2581
        %2583 = vmatmul.bf16.gmra.mxu0 %v2335
        %v2584 = vpop.f32.mrf.mxu0
        %v2585 = vadd.f32 %v2129, %v2584
        %v2586 = vpop.f32.mrf.mxu0
        %v2587 = vadd.f32 %v2131, %v2586
        %2588 = vmatmul.bf16.gmra.mxu0 %v2344
        %v2589 = vpop.f32.mrf.mxu0
        %v2590 = vadd.f32 %v2134, %v2589
        %v2591 = vpop.f32.mrf.mxu0
        %v2592 = vadd.f32 %v2136, %v2591
        %2593 = vmatmul.bf16.gmra.mxu0 %v2353
        %v2594 = vpop.f32.mrf.mxu0
        %v2595 = vadd.f32 %v2139, %v2594
        %v2596 = vpop.f32.mrf.mxu0
        %v2597 = vadd.f32 %v2141, %v2596
        %2598 = vmatmul.bf16.gmra.mxu0 %v2362
        %v2599 = vpop.f32.mrf.mxu0
        %v2600 = vadd.f32 %v2144, %v2599
        %v2601 = vpop.f32.mrf.mxu0
        %v2602 = vadd.f32 %v2146, %v2601
        %2603 = vmatmul.bf16.gmra.mxu0 %v2371
        %v2604 = vpop.f32.mrf.mxu0
        %v2605 = vadd.f32 %v2149, %v2604
        %v2606 = vpop.f32.mrf.mxu0
        %v2607 = vadd.f32 %v2151, %v2606
        %2608 = vmatmul.bf16.gmra.mxu0 %v2380
        %v2609 = vpop.f32.mrf.mxu0
        %v2610 = vadd.f32 %v2154, %v2609
        %v2611 = vpop.f32.mrf.mxu0
        %v2612 = vadd.f32 %v2156, %v2611
        %2613 = vmatmul.bf16.gmra.mxu0 %v2389
        %v2614 = vpop.f32.mrf.mxu0
        %v2615 = vadd.f32 %v2159, %v2614
        %v2616 = vpop.f32.mrf.mxu0
        %v2617 = vadd.f32 %v2161, %v2616
        %2618 = vmatmul.bf16.gmra.mxu0 %v2398
        %v2619 = vpop.f32.mrf.mxu0
        %v2620 = vadd.f32 %v2164, %v2619
        %v2621 = vpop.f32.mrf.mxu0
        %v2622 = vadd.f32 %v2166, %v2621
        %2623 = vmatmul.bf16.gmra.mxu0 %v2407
        %v2624 = vpop.f32.mrf.mxu0
        %v2625 = vadd.f32 %v2169, %v2624
        %v2626 = vpop.f32.mrf.mxu0
        %v2627 = vadd.f32 %v2171, %v2626
        %2628 = vmatmul.bf16.gmra.mxu0 %v2416
        %v2629 = vpop.f32.mrf.mxu0
        %v2630 = vadd.f32 %v2174, %v2629
        %v2631 = vpop.f32.mrf.mxu0
        %v2632 = vadd.f32 %v2176, %v2631
        %2633 = vmatmul.bf16.gmra.mxu0 %v2425
        %v2634 = vpop.f32.mrf.mxu0
        %v2635 = vadd.f32 %v2179, %v2634
        %v2636 = vpop.f32.mrf.mxu0
        %v2637 = vadd.f32 %v2181, %v2636
        %2638 = vmatmul.bf16.gmra.mxu0 %v2434
        %v2639 = vpop.f32.mrf.mxu0
        %v2640 = vadd.f32 %v2184, %v2639
        %v2641 = vpop.f32.mrf.mxu0
        %v2642 = vadd.f32 %v2186, %v2641
        %2643 = vmatmul.bf16.gmra.mxu0 %v2443
        %v2644 = vpop.f32.mrf.mxu0
        %v2645 = vadd.f32 %v2189, %v2644
        %v2646 = vpop.f32.mrf.mxu0
        %v2647 = vadd.f32 %v2191, %v2646
        %2648 = vmatmul.bf16.gmra.mxu0 %v2452
        %v2649 = vpop.f32.mrf.mxu0
        %v2650 = vadd.f32 %v2194, %v2649
        %v2651 = vpop.f32.mrf.mxu0
        %v2652 = vadd.f32 %v2196, %v2651
        %2653 = vdwg.mxu0
        %s2654 = scalar_lea.vmem [#allocation5], 384
        %v2655 = vld [vmem:[%s2654] sm:$0xf]
        %v2656 = vld [vmem:[%s2654 + $0x4] sm:$0xf]
        %v2657 = vld [vmem:[%s2654 + $0x8] sm:$0xf]
        %v2658 = vld [vmem:[%s2654 + $0xc] sm:$0xf]
        %v2659 = vld [vmem:[%s2654 + $0x10] sm:$0xf]
        %v2660 = vld [vmem:[%s2654 + $0x14] sm:$0xf]
        %v2661 = vld [vmem:[%s2654 + $0x18] sm:$0xf]
        %v2662 = vld [vmem:[%s2654 + $0x1c] sm:$0xf]
        %v2663 = vld [vmem:[%s2654 + $0x20] sm:$0xf]
        %v2664 = vld [vmem:[%s2654 + $0x24] sm:$0xf]
        %v2665 = vld [vmem:[%s2654 + $0x28] sm:$0xf]
        %v2666 = vld [vmem:[%s2654 + $0x2c] sm:$0xf]
        %v2667 = vld [vmem:[%s2654 + $0x30] sm:$0xf]
        %v2668 = vld [vmem:[%s2654 + $0x34] sm:$0xf]
        %v2669 = vld [vmem:[%s2654 + $0x38] sm:$0xf]
        %v2670 = vld [vmem:[%s2654 + $0x3c] sm:$0xf]
        %v2674 = vunpack.c.l.b16 %v1612
        %v2675 = vunpack.c.l.b16 %v1613
        %v2676 = vunpack.c.l.b16 %v1614
        %v2677 = vpack.c.b16 %v1744, %v1743
        %v2678 = vpack.c.b16 %v1746, %v1745
        %v2679 = vpack.c.b16 %v2675, %v2674
        %v2680 = vpack.c.b16 %v2676, %v2676
        %v2682 = vshrl.u32 %v2677, 16
        %v2684 = vrot.slane %v2682, 3
        %v2685 = vshll.u32 %v2677, 16
        %v2687 = vrot.slane %v2685, 4
        %v2688 = vor.u32 %v2684, %v2687
        %v2689 = vsel %vm1772, %v2442, %v2688
        %v2691 = vshrl.u32 %v2678, 16
        %v2693 = vrot.slane %v2691, 3
        %v2694 = vshll.u32 %v2678, 16
        %v2696 = vrot.slane %v2694, 4
        %v2697 = vor.u32 %v2693, %v2696
        %v2698 = vsel %vm1772, %v2688, %v2697
        %v2700 = vshrl.u32 %v2679, 16
        %v2702 = vrot.slane %v2700, 3
        %v2703 = vshll.u32 %v2679, 16
        %v2705 = vrot.slane %v2703, 4
        %v2706 = vor.u32 %v2702, %v2705
        %v2707 = vsel %vm1772, %v2697, %v2706
        %v2709 = vshrl.u32 %v2680, 16
        %v2711 = vrot.slane %v2709, 3
        %v2712 = vshll.u32 %v2680, 16
        %v2714 = vrot.slane %v2712, 4
        %v2715 = vor.u32 %v2711, %v2714
        %v2716 = vsel %vm1772, %v2706, %v2715
        %v2737 = vunpack.c.l.b16 %v2655
        %v2738 = vunpack.c.l.b16 %v2656
        %v2739 = vunpack.c.l.b16 %v2657
        %v2740 = vunpack.c.l.b16 %v2658
        %v2741 = vunpack.c.l.b16 %v2659
        %v2742 = vunpack.c.l.b16 %v2660
        %v2743 = vunpack.c.l.b16 %v2661
        %v2744 = vunpack.c.l.b16 %v2662
        %v2745 = vunpack.c.l.b16 %v2663
        %v2746 = vunpack.c.l.b16 %v2664
        %v2747 = vunpack.c.l.b16 %v2665
        %v2748 = vunpack.c.l.b16 %v2666
        %v2749 = vunpack.c.l.b16 %v2667
        %v2750 = vunpack.c.l.b16 %v2668
        %v2751 = vunpack.c.l.b16 %v2669
        %v2752 = vunpack.c.l.b16 %v2670
        %v2753 = vpack.c.b16 %v2738, %v2737
        %v2754 = vpack.c.b16 %v2740, %v2739
        %v2755 = vpack.c.b16 %v2742, %v2741
        %v2756 = vpack.c.b16 %v2744, %v2743
        %v2757 = vpack.c.b16 %v2746, %v2745
        %v2758 = vpack.c.b16 %v2748, %v2747
        %v2759 = vpack.c.b16 %v2750, %v2749
        %v2760 = vpack.c.b16 %v2752, %v2751
        %2769 = vmatpush.bf16.msra.mxu0 %v2760
        %2770 = vmatpush.bf16.msra.mxu0 %v2759
        %2771 = vmatpush.bf16.msra.mxu0 %v2758
        %2772 = vmatpush.bf16.msra.mxu0 %v2757
        %2773 = vmatpush.bf16.msra.mxu0 %v2756
        %2774 = vmatpush.bf16.msra.mxu0 %v2755
        %2775 = vmatpush.bf16.msra.mxu0 %v2754
        %2776 = vmatpush.bf16.msra.mxu0 %v2753
        %2777 = vmatmul.bf16.gmra.mxu0 %v2272
        %v2778 = vpop.f32.mrf.mxu0
        %v2779 = vadd.f32 0.0, %v2778
        %v2780 = vpop.f32.mrf.mxu0
        %v2781 = vadd.f32 0.0, %v2780
        %2782 = vmatmul.bf16.gmra.mxu0 %v2281
        %v2783 = vpop.f32.mrf.mxu0
        %v2784 = vadd.f32 0.0, %v2783
        %v2785 = vpop.f32.mrf.mxu0
        %v2786 = vadd.f32 0.0, %v2785
        %2787 = vmatmul.bf16.gmra.mxu0 %v2290
        %v2788 = vpop.f32.mrf.mxu0
        %v2789 = vadd.f32 0.0, %v2788
        %v2790 = vpop.f32.mrf.mxu0
        %v2791 = vadd.f32 0.0, %v2790
        %2792 = vmatmul.bf16.gmra.mxu0 %v2299
        %v2793 = vpop.f32.mrf.mxu0
        %v2794 = vadd.f32 0.0, %v2793
        %v2795 = vpop.f32.mrf.mxu0
        %v2796 = vadd.f32 0.0, %v2795
        %2797 = vmatmul.bf16.gmra.mxu0 %v2308
        %v2798 = vpop.f32.mrf.mxu0
        %v2799 = vadd.f32 0.0, %v2798
        %v2800 = vpop.f32.mrf.mxu0
        %v2801 = vadd.f32 0.0, %v2800
        %2802 = vmatmul.bf16.gmra.mxu0 %v2317
        %v2803 = vpop.f32.mrf.mxu0
        %v2804 = vadd.f32 0.0, %v2803
        %v2805 = vpop.f32.mrf.mxu0
        %v2806 = vadd.f32 0.0, %v2805
        %2807 = vmatmul.bf16.gmra.mxu0 %v2326
        %v2808 = vpop.f32.mrf.mxu0
        %v2809 = vadd.f32 0.0, %v2808
        %v2810 = vpop.f32.mrf.mxu0
        %v2811 = vadd.f32 0.0, %v2810
        %2812 = vmatmul.bf16.gmra.mxu0 %v2335
        %v2813 = vpop.f32.mrf.mxu0
        %v2814 = vadd.f32 0.0, %v2813
        %v2815 = vpop.f32.mrf.mxu0
        %v2816 = vadd.f32 0.0, %v2815
        %2817 = vmatmul.bf16.gmra.mxu0 %v2344
        %v2818 = vpop.f32.mrf.mxu0
        %v2819 = vadd.f32 0.0, %v2818
        %v2820 = vpop.f32.mrf.mxu0
        %v2821 = vadd.f32 0.0, %v2820
        %2822 = vmatmul.bf16.gmra.mxu0 %v2353
        %v2823 = vpop.f32.mrf.mxu0
        %v2824 = vadd.f32 0.0, %v2823
        %v2825 = vpop.f32.mrf.mxu0
        %v2826 = vadd.f32 0.0, %v2825
        %2827 = vmatmul.bf16.gmra.mxu0 %v2362
        %v2828 = vpop.f32.mrf.mxu0
        %v2829 = vadd.f32 0.0, %v2828
        %v2830 = vpop.f32.mrf.mxu0
        %v2831 = vadd.f32 0.0, %v2830
        %2832 = vmatmul.bf16.gmra.mxu0 %v2371
        %v2833 = vpop.f32.mrf.mxu0
        %v2834 = vadd.f32 0.0, %v2833
        %v2835 = vpop.f32.mrf.mxu0
        %v2836 = vadd.f32 0.0, %v2835
        %2837 = vmatmul.bf16.gmra.mxu0 %v2380
        %v2838 = vpop.f32.mrf.mxu0
        %v2839 = vadd.f32 0.0, %v2838
        %v2840 = vpop.f32.mrf.mxu0
        %v2841 = vadd.f32 0.0, %v2840
        %2842 = vmatmul.bf16.gmra.mxu0 %v2389
        %v2843 = vpop.f32.mrf.mxu0
        %v2844 = vadd.f32 0.0, %v2843
        %v2845 = vpop.f32.mrf.mxu0
        %v2846 = vadd.f32 0.0, %v2845
        %2847 = vmatmul.bf16.gmra.mxu0 %v2398
        %v2848 = vpop.f32.mrf.mxu0
        %v2849 = vadd.f32 0.0, %v2848
        %v2850 = vpop.f32.mrf.mxu0
        %v2851 = vadd.f32 0.0, %v2850
        %2852 = vmatmul.bf16.gmra.mxu0 %v2407
        %v2853 = vpop.f32.mrf.mxu0
        %v2854 = vadd.f32 0.0, %v2853
        %v2855 = vpop.f32.mrf.mxu0
        %v2856 = vadd.f32 0.0, %v2855
        %2857 = vmatmul.bf16.gmra.mxu0 %v2416
        %v2858 = vpop.f32.mrf.mxu0
        %v2859 = vadd.f32 0.0, %v2858
        %v2860 = vpop.f32.mrf.mxu0
        %v2861 = vadd.f32 0.0, %v2860
        %2862 = vmatmul.bf16.gmra.mxu0 %v2425
        %v2863 = vpop.f32.mrf.mxu0
        %v2864 = vadd.f32 0.0, %v2863
        %v2865 = vpop.f32.mrf.mxu0
        %v2866 = vadd.f32 0.0, %v2865
        %2867 = vmatmul.bf16.gmra.mxu0 %v2434
        %v2868 = vpop.f32.mrf.mxu0
        %v2869 = vadd.f32 0.0, %v2868
        %v2870 = vpop.f32.mrf.mxu0
        %v2871 = vadd.f32 0.0, %v2870
        %2872 = vmatmul.bf16.gmra.mxu0 %v2443
        %v2873 = vpop.f32.mrf.mxu0
        %v2874 = vadd.f32 0.0, %v2873
        %v2875 = vpop.f32.mrf.mxu0
        %v2876 = vadd.f32 0.0, %v2875
        %2877 = vmatmul.bf16.gmra.mxu0 %v2689
        %v2878 = vpop.f32.mrf.mxu0
        %v2879 = vadd.f32 0.0, %v2878
        %v2880 = vpop.f32.mrf.mxu0
        %v2881 = vadd.f32 0.0, %v2880
        %2882 = vmatmul.bf16.gmra.mxu0 %v2698
        %v2883 = vpop.f32.mrf.mxu0
        %v2884 = vadd.f32 0.0, %v2883
        %v2885 = vpop.f32.mrf.mxu0
        %v2886 = vadd.f32 0.0, %v2885
        %2887 = vmatmul.bf16.gmra.mxu0 %v2707
        %v2888 = vpop.f32.mrf.mxu0
        %v2889 = vadd.f32 0.0, %v2888
        %v2890 = vpop.f32.mrf.mxu0
        %v2891 = vadd.f32 0.0, %v2890
        %2892 = vmatmul.bf16.gmra.mxu0 %v2716
        %v2893 = vpop.f32.mrf.mxu0
        %v2894 = vadd.f32 0.0, %v2893
        %v2895 = vpop.f32.mrf.mxu0
        %v2896 = vadd.f32 0.0, %v2895
        %2897 = vdwg.mxu0
        %v2898 = vadd.f32 %v2535, %v2779
        %v2899 = vadd.f32 %v2537, %v2781
        %v2900 = vadd.f32 %v2540, %v2784
        %v2901 = vadd.f32 %v2542, %v2786
        %v2902 = vadd.f32 %v2545, %v2789
        %v2903 = vadd.f32 %v2547, %v2791
        %v2904 = vadd.f32 %v2550, %v2794
        %v2905 = vadd.f32 %v2552, %v2796
        %v2906 = vadd.f32 %v2555, %v2799
        %v2907 = vadd.f32 %v2557, %v2801
        %v2908 = vadd.f32 %v2560, %v2804
        %v2909 = vadd.f32 %v2562, %v2806
        %v2910 = vadd.f32 %v2565, %v2809
        %v2911 = vadd.f32 %v2567, %v2811
        %v2912 = vadd.f32 %v2570, %v2814
        %v2913 = vadd.f32 %v2572, %v2816
        %v2914 = vadd.f32 %v2575, %v2819
        %v2915 = vadd.f32 %v2577, %v2821
        %v2916 = vadd.f32 %v2580, %v2824
        %v2917 = vadd.f32 %v2582, %v2826
        %v2918 = vadd.f32 %v2585, %v2829
        %v2919 = vadd.f32 %v2587, %v2831
        %v2920 = vadd.f32 %v2590, %v2834
        %v2921 = vadd.f32 %v2592, %v2836
        %v2922 = vadd.f32 %v2595, %v2839
        %v2923 = vadd.f32 %v2597, %v2841
        %v2924 = vadd.f32 %v2600, %v2844
        %v2925 = vadd.f32 %v2602, %v2846
        %v2926 = vadd.f32 %v2605, %v2849
        %v2927 = vadd.f32 %v2607, %v2851
        %v2928 = vadd.f32 %v2610, %v2854
        %v2929 = vadd.f32 %v2612, %v2856
        %v2930 = vadd.f32 %v2615, %v2859
        %v2931 = vadd.f32 %v2617, %v2861
        %v2932 = vadd.f32 %v2620, %v2864
        %v2933 = vadd.f32 %v2622, %v2866
        %v2934 = vadd.f32 %v2625, %v2869
        %v2935 = vadd.f32 %v2627, %v2871
        %v2936 = vadd.f32 %v2630, %v2874
        %v2937 = vadd.f32 %v2632, %v2876
        %v2938 = vadd.f32 %v2635, %v2879
        %v2939 = vadd.f32 %v2637, %v2881
        %v2940 = vadd.f32 %v2640, %v2884
        %v2941 = vadd.f32 %v2642, %v2886
        %v2942 = vadd.f32 %v2645, %v2889
        %v2943 = vadd.f32 %v2647, %v2891
        %v2944 = vadd.f32 %v2650, %v2894
        %v2945 = vadd.f32 %v2652, %v2896
        %s2946 = scalar_lea.vmem [#allocation5], 64
        %v2947 = vld [vmem:[%s2946] sm:$0xf]
        %v2948 = vld [vmem:[%s2946 + $0x4] sm:$0xf]
        %v2949 = vld [vmem:[%s2946 + $0x8] sm:$0xf]
        %v2950 = vld [vmem:[%s2946 + $0xc] sm:$0xf]
        %v2951 = vld [vmem:[%s2946 + $0x10] sm:$0xf]
        %v2952 = vld [vmem:[%s2946 + $0x14] sm:$0xf]
        %v2953 = vld [vmem:[%s2946 + $0x18] sm:$0xf]
        %v2954 = vld [vmem:[%s2946 + $0x1c] sm:$0xf]
        %v2955 = vld [vmem:[%s2946 + $0x20] sm:$0xf]
        %v2956 = vld [vmem:[%s2946 + $0x24] sm:$0xf]
        %v2957 = vld [vmem:[%s2946 + $0x28] sm:$0xf]
        %v2958 = vld [vmem:[%s2946 + $0x2c] sm:$0xf]
        %v2959 = vld [vmem:[%s2946 + $0x30] sm:$0xf]
        %v2960 = vld [vmem:[%s2946 + $0x34] sm:$0xf]
        %v2961 = vld [vmem:[%s2946 + $0x38] sm:$0xf]
        %v2962 = vld [vmem:[%s2946 + $0x3c] sm:$0xf]
        %v2963 = vpack.c.b16 %v2203, %v2202
        %v3004 = vunpack.c.l.b16 %v2947
        %v3005 = vunpack.c.l.b16 %v2948
        %v3006 = vunpack.c.l.b16 %v2949
        %v3007 = vunpack.c.l.b16 %v2950
        %v3008 = vunpack.c.l.b16 %v2951
        %v3009 = vunpack.c.l.b16 %v2952
        %v3010 = vunpack.c.l.b16 %v2953
        %v3011 = vunpack.c.l.b16 %v2954
        %v3012 = vunpack.c.l.b16 %v2955
        %v3013 = vunpack.c.l.b16 %v2956
        %v3014 = vunpack.c.l.b16 %v2957
        %v3015 = vunpack.c.l.b16 %v2958
        %v3016 = vunpack.c.l.b16 %v2959
        %v3017 = vunpack.c.l.b16 %v2960
        %v3018 = vunpack.c.l.b16 %v2961
        %v3019 = vunpack.c.l.b16 %v2962
        %v3020 = vpack.c.b16 %v3005, %v3004
        %v3021 = vpack.c.b16 %v3007, %v3006
        %v3022 = vpack.c.b16 %v3009, %v3008
        %v3023 = vpack.c.b16 %v3011, %v3010
        %v3024 = vpack.c.b16 %v3013, %v3012
        %v3025 = vpack.c.b16 %v3015, %v3014
        %v3026 = vpack.c.b16 %v3017, %v3016
        %v3027 = vpack.c.b16 %v3019, %v3018
        %3036 = vmatpush.bf16.msra.mxu0 %v3027
        %3037 = vmatpush.bf16.msra.mxu0 %v3026
        %3038 = vmatpush.bf16.msra.mxu0 %v3025
        %3039 = vmatpush.bf16.msra.mxu0 %v3024
        %3040 = vmatpush.bf16.msra.mxu0 %v3023
        %3041 = vmatpush.bf16.msra.mxu0 %v3022
        %3042 = vmatpush.bf16.msra.mxu0 %v3021
        %3043 = vmatpush.bf16.msra.mxu0 %v3020
        %3044 = vmatmul.bf16.gmra.mxu0 %v2963
        %v3045 = vpop.f32.mrf.mxu0
        %v3046 = vadd.f32 0.0, %v3045
        %v3047 = vpop.f32.mrf.mxu0
        %v3048 = vadd.f32 0.0, %v3047
        %3049 = vmatmul.bf16.gmra.mxu0 %v1747
        %v3050 = vpop.f32.mrf.mxu0
        %v3051 = vadd.f32 0.0, %v3050
        %v3052 = vpop.f32.mrf.mxu0
        %v3053 = vadd.f32 0.0, %v3052
        %3054 = vmatmul.bf16.gmra.mxu0 %v1748
        %v3055 = vpop.f32.mrf.mxu0
        %v3056 = vadd.f32 0.0, %v3055
        %v3057 = vpop.f32.mrf.mxu0
        %v3058 = vadd.f32 0.0, %v3057
        %3059 = vmatmul.bf16.gmra.mxu0 %v1749
        %v3060 = vpop.f32.mrf.mxu0
        %v3061 = vadd.f32 0.0, %v3060
        %v3062 = vpop.f32.mrf.mxu0
        %v3063 = vadd.f32 0.0, %v3062
        %3064 = vmatmul.bf16.gmra.mxu0 %v1750
        %v3065 = vpop.f32.mrf.mxu0
        %v3066 = vadd.f32 0.0, %v3065
        %v3067 = vpop.f32.mrf.mxu0
        %v3068 = vadd.f32 0.0, %v3067
        %3069 = vmatmul.bf16.gmra.mxu0 %v1751
        %v3070 = vpop.f32.mrf.mxu0
        %v3071 = vadd.f32 0.0, %v3070
        %v3072 = vpop.f32.mrf.mxu0
        %v3073 = vadd.f32 0.0, %v3072
        %3074 = vmatmul.bf16.gmra.mxu0 %v1752
        %v3075 = vpop.f32.mrf.mxu0
        %v3076 = vadd.f32 0.0, %v3075
        %v3077 = vpop.f32.mrf.mxu0
        %v3078 = vadd.f32 0.0, %v3077
        %3079 = vmatmul.bf16.gmra.mxu0 %v1753
        %v3080 = vpop.f32.mrf.mxu0
        %v3081 = vadd.f32 0.0, %v3080
        %v3082 = vpop.f32.mrf.mxu0
        %v3083 = vadd.f32 0.0, %v3082
        %3084 = vmatmul.bf16.gmra.mxu0 %v1754
        %v3085 = vpop.f32.mrf.mxu0
        %v3086 = vadd.f32 0.0, %v3085
        %v3087 = vpop.f32.mrf.mxu0
        %v3088 = vadd.f32 0.0, %v3087
        %3089 = vmatmul.bf16.gmra.mxu0 %v1755
        %v3090 = vpop.f32.mrf.mxu0
        %v3091 = vadd.f32 0.0, %v3090
        %v3092 = vpop.f32.mrf.mxu0
        %v3093 = vadd.f32 0.0, %v3092
        %3094 = vmatmul.bf16.gmra.mxu0 %v1756
        %v3095 = vpop.f32.mrf.mxu0
        %v3096 = vadd.f32 0.0, %v3095
        %v3097 = vpop.f32.mrf.mxu0
        %v3098 = vadd.f32 0.0, %v3097
        %3099 = vmatmul.bf16.gmra.mxu0 %v1757
        %v3100 = vpop.f32.mrf.mxu0
        %v3101 = vadd.f32 0.0, %v3100
        %v3102 = vpop.f32.mrf.mxu0
        %v3103 = vadd.f32 0.0, %v3102
        %3104 = vmatmul.bf16.gmra.mxu0 %v1758
        %v3105 = vpop.f32.mrf.mxu0
        %v3106 = vadd.f32 0.0, %v3105
        %v3107 = vpop.f32.mrf.mxu0
        %v3108 = vadd.f32 0.0, %v3107
        %3109 = vmatmul.bf16.gmra.mxu0 %v1759
        %v3110 = vpop.f32.mrf.mxu0
        %v3111 = vadd.f32 0.0, %v3110
        %v3112 = vpop.f32.mrf.mxu0
        %v3113 = vadd.f32 0.0, %v3112
        %3114 = vmatmul.bf16.gmra.mxu0 %v1760
        %v3115 = vpop.f32.mrf.mxu0
        %v3116 = vadd.f32 0.0, %v3115
        %v3117 = vpop.f32.mrf.mxu0
        %v3118 = vadd.f32 0.0, %v3117
        %3119 = vmatmul.bf16.gmra.mxu0 %v1761
        %v3120 = vpop.f32.mrf.mxu0
        %v3121 = vadd.f32 0.0, %v3120
        %v3122 = vpop.f32.mrf.mxu0
        %v3123 = vadd.f32 0.0, %v3122
        %3124 = vmatmul.bf16.gmra.mxu0 %v1762
        %v3125 = vpop.f32.mrf.mxu0
        %v3126 = vadd.f32 0.0, %v3125
        %v3127 = vpop.f32.mrf.mxu0
        %v3128 = vadd.f32 0.0, %v3127
        %3129 = vmatmul.bf16.gmra.mxu0 %v1763
        %v3130 = vpop.f32.mrf.mxu0
        %v3131 = vadd.f32 0.0, %v3130
        %v3132 = vpop.f32.mrf.mxu0
        %v3133 = vadd.f32 0.0, %v3132
        %3134 = vmatmul.bf16.gmra.mxu0 %v1764
        %v3135 = vpop.f32.mrf.mxu0
        %v3136 = vadd.f32 0.0, %v3135
        %v3137 = vpop.f32.mrf.mxu0
        %v3138 = vadd.f32 0.0, %v3137
        %3139 = vmatmul.bf16.gmra.mxu0 %v1765
        %v3140 = vpop.f32.mrf.mxu0
        %v3141 = vadd.f32 0.0, %v3140
        %v3142 = vpop.f32.mrf.mxu0
        %v3143 = vadd.f32 0.0, %v3142
        %3144 = vmatmul.bf16.gmra.mxu0 %v1766
        %v3145 = vpop.f32.mrf.mxu0
        %v3146 = vadd.f32 0.0, %v3145
        %v3147 = vpop.f32.mrf.mxu0
        %v3148 = vadd.f32 0.0, %v3147
        %3149 = vmatmul.bf16.gmra.mxu0 %v1767
        %v3150 = vpop.f32.mrf.mxu0
        %v3151 = vadd.f32 0.0, %v3150
        %v3152 = vpop.f32.mrf.mxu0
        %v3153 = vadd.f32 0.0, %v3152
        %3154 = vmatmul.bf16.gmra.mxu0 %v1768
        %v3155 = vpop.f32.mrf.mxu0
        %v3156 = vadd.f32 0.0, %v3155
        %v3157 = vpop.f32.mrf.mxu0
        %v3158 = vadd.f32 0.0, %v3157
        %3159 = vmatmul.bf16.gmra.mxu0 %v1769
        %v3160 = vpop.f32.mrf.mxu0
        %v3161 = vadd.f32 0.0, %v3160
        %v3162 = vpop.f32.mrf.mxu0
        %v3163 = vadd.f32 0.0, %v3162
        %3164 = vdwg.mxu0
        %v3165 = vadd.f32 %v2898, %v3046
        %v3166 = vadd.f32 %v2899, %v3048
        %v3167 = vadd.f32 %v2900, %v3051
        %v3168 = vadd.f32 %v2901, %v3053
        %v3169 = vadd.f32 %v2902, %v3056
        %v3170 = vadd.f32 %v2903, %v3058
        %v3171 = vadd.f32 %v2904, %v3061
        %v3172 = vadd.f32 %v2905, %v3063
        %v3173 = vadd.f32 %v2906, %v3066
        %v3174 = vadd.f32 %v2907, %v3068
        %v3175 = vadd.f32 %v2908, %v3071
        %v3176 = vadd.f32 %v2909, %v3073
        %v3177 = vadd.f32 %v2910, %v3076
        %v3178 = vadd.f32 %v2911, %v3078
        %v3179 = vadd.f32 %v2912, %v3081
        %v3180 = vadd.f32 %v2913, %v3083
        %v3181 = vadd.f32 %v2914, %v3086
        %v3182 = vadd.f32 %v2915, %v3088
        %v3183 = vadd.f32 %v2916, %v3091
        %v3184 = vadd.f32 %v2917, %v3093
        %v3185 = vadd.f32 %v2918, %v3096
        %v3186 = vadd.f32 %v2919, %v3098
        %v3187 = vadd.f32 %v2920, %v3101
        %v3188 = vadd.f32 %v2921, %v3103
        %v3189 = vadd.f32 %v2922, %v3106
        %v3190 = vadd.f32 %v2923, %v3108
        %v3191 = vadd.f32 %v2924, %v3111
        %v3192 = vadd.f32 %v2925, %v3113
        %v3193 = vadd.f32 %v2926, %v3116
        %v3194 = vadd.f32 %v2927, %v3118
        %v3195 = vadd.f32 %v2928, %v3121
        %v3196 = vadd.f32 %v2929, %v3123
        %v3197 = vadd.f32 %v2930, %v3126
        %v3198 = vadd.f32 %v2931, %v3128
        %v3199 = vadd.f32 %v2932, %v3131
        %v3200 = vadd.f32 %v2933, %v3133
        %v3201 = vadd.f32 %v2934, %v3136
        %v3202 = vadd.f32 %v2935, %v3138
        %v3203 = vadd.f32 %v2936, %v3141
        %v3204 = vadd.f32 %v2937, %v3143
        %v3205 = vadd.f32 %v2938, %v3146
        %v3206 = vadd.f32 %v2939, %v3148
        %v3207 = vadd.f32 %v2940, %v3151
        %v3208 = vadd.f32 %v2941, %v3153
        %v3209 = vadd.f32 %v2942, %v3156
        %v3210 = vadd.f32 %v2943, %v3158
        %v3211 = vadd.f32 %v2944, %v3161
        %v3212 = vadd.f32 %v2945, %v3163
        %s3213 = scalar_lea.vmem [#allocation5], 256
        %v3214 = vld [vmem:[%s3213] sm:$0xf]
        %v3215 = vld [vmem:[%s3213 + $0x4] sm:$0xf]
        %v3216 = vld [vmem:[%s3213 + $0x8] sm:$0xf]
        %v3217 = vld [vmem:[%s3213 + $0xc] sm:$0xf]
        %v3218 = vld [vmem:[%s3213 + $0x10] sm:$0xf]
        %v3219 = vld [vmem:[%s3213 + $0x14] sm:$0xf]
        %v3220 = vld [vmem:[%s3213 + $0x18] sm:$0xf]
        %v3221 = vld [vmem:[%s3213 + $0x1c] sm:$0xf]
        %v3222 = vld [vmem:[%s3213 + $0x20] sm:$0xf]
        %v3223 = vld [vmem:[%s3213 + $0x24] sm:$0xf]
        %v3224 = vld [vmem:[%s3213 + $0x28] sm:$0xf]
        %v3225 = vld [vmem:[%s3213 + $0x2c] sm:$0xf]
        %v3226 = vld [vmem:[%s3213 + $0x30] sm:$0xf]
        %v3227 = vld [vmem:[%s3213 + $0x34] sm:$0xf]
        %v3228 = vld [vmem:[%s3213 + $0x38] sm:$0xf]
        %v3229 = vld [vmem:[%s3213 + $0x3c] sm:$0xf]
        %v3270 = vunpack.c.l.b16 %v3214
        %v3271 = vunpack.c.l.b16 %v3215
        %v3272 = vunpack.c.l.b16 %v3216
        %v3273 = vunpack.c.l.b16 %v3217
        %v3274 = vunpack.c.l.b16 %v3218
        %v3275 = vunpack.c.l.b16 %v3219
        %v3276 = vunpack.c.l.b16 %v3220
        %v3277 = vunpack.c.l.b16 %v3221
        %v3278 = vunpack.c.l.b16 %v3222
        %v3279 = vunpack.c.l.b16 %v3223
        %v3280 = vunpack.c.l.b16 %v3224
        %v3281 = vunpack.c.l.b16 %v3225
        %v3282 = vunpack.c.l.b16 %v3226
        %v3283 = vunpack.c.l.b16 %v3227
        %v3284 = vunpack.c.l.b16 %v3228
        %v3285 = vunpack.c.l.b16 %v3229
        %v3286 = vpack.c.b16 %v3271, %v3270
        %v3287 = vpack.c.b16 %v3273, %v3272
        %v3288 = vpack.c.b16 %v3275, %v3274
        %v3289 = vpack.c.b16 %v3277, %v3276
        %v3290 = vpack.c.b16 %v3279, %v3278
        %v3291 = vpack.c.b16 %v3281, %v3280
        %v3292 = vpack.c.b16 %v3283, %v3282
        %v3293 = vpack.c.b16 %v3285, %v3284
        %3302 = vmatpush.bf16.msra.mxu0 %v3293
        %3303 = vmatpush.bf16.msra.mxu0 %v3292
        %3304 = vmatpush.bf16.msra.mxu0 %v3291
        %3305 = vmatpush.bf16.msra.mxu0 %v3290
        %3306 = vmatpush.bf16.msra.mxu0 %v3289
        %3307 = vmatpush.bf16.msra.mxu0 %v3288
        %3308 = vmatpush.bf16.msra.mxu0 %v3287
        %3309 = vmatpush.bf16.msra.mxu0 %v3286
        %3310 = vmatmul.bf16.gmra.mxu0 %v2206
        %v3311 = vpop.f32.mrf.mxu0
        %v3312 = vadd.f32 0.0, %v3311
        %v3313 = vpop.f32.mrf.mxu0
        %v3314 = vadd.f32 0.0, %v3313
        %3315 = vmatmul.bf16.gmra.mxu0 %v2207
        %v3316 = vpop.f32.mrf.mxu0
        %v3317 = vadd.f32 0.0, %v3316
        %v3318 = vpop.f32.mrf.mxu0
        %v3319 = vadd.f32 0.0, %v3318
        %3320 = vmatmul.bf16.gmra.mxu0 %v2208
        %v3321 = vpop.f32.mrf.mxu0
        %v3322 = vadd.f32 0.0, %v3321
        %v3323 = vpop.f32.mrf.mxu0
        %v3324 = vadd.f32 0.0, %v3323
        %3325 = vmatmul.bf16.gmra.mxu0 %v2209
        %v3326 = vpop.f32.mrf.mxu0
        %v3327 = vadd.f32 0.0, %v3326
        %v3328 = vpop.f32.mrf.mxu0
        %v3329 = vadd.f32 0.0, %v3328
        %3330 = vmatmul.bf16.gmra.mxu0 %v2210
        %v3331 = vpop.f32.mrf.mxu0
        %v3332 = vadd.f32 0.0, %v3331
        %v3333 = vpop.f32.mrf.mxu0
        %v3334 = vadd.f32 0.0, %v3333
        %3335 = vmatmul.bf16.gmra.mxu0 %v2211
        %v3336 = vpop.f32.mrf.mxu0
        %v3337 = vadd.f32 0.0, %v3336
        %v3338 = vpop.f32.mrf.mxu0
        %v3339 = vadd.f32 0.0, %v3338
        %3340 = vmatmul.bf16.gmra.mxu0 %v2212
        %v3341 = vpop.f32.mrf.mxu0
        %v3342 = vadd.f32 0.0, %v3341
        %v3343 = vpop.f32.mrf.mxu0
        %v3344 = vadd.f32 0.0, %v3343
        %3345 = vmatmul.bf16.gmra.mxu0 %v2213
        %v3346 = vpop.f32.mrf.mxu0
        %v3347 = vadd.f32 0.0, %v3346
        %v3348 = vpop.f32.mrf.mxu0
        %v3349 = vadd.f32 0.0, %v3348
        %3350 = vmatmul.bf16.gmra.mxu0 %v2214
        %v3351 = vpop.f32.mrf.mxu0
        %v3352 = vadd.f32 0.0, %v3351
        %v3353 = vpop.f32.mrf.mxu0
        %v3354 = vadd.f32 0.0, %v3353
        %3355 = vmatmul.bf16.gmra.mxu0 %v2215
        %v3356 = vpop.f32.mrf.mxu0
        %v3357 = vadd.f32 0.0, %v3356
        %v3358 = vpop.f32.mrf.mxu0
        %v3359 = vadd.f32 0.0, %v3358
        %3360 = vmatmul.bf16.gmra.mxu0 %v2216
        %v3361 = vpop.f32.mrf.mxu0
        %v3362 = vadd.f32 0.0, %v3361
        %v3363 = vpop.f32.mrf.mxu0
        %v3364 = vadd.f32 0.0, %v3363
        %3365 = vmatmul.bf16.gmra.mxu0 %v2217
        %v3366 = vpop.f32.mrf.mxu0
        %v3367 = vadd.f32 0.0, %v3366
        %v3368 = vpop.f32.mrf.mxu0
        %v3369 = vadd.f32 0.0, %v3368
        %3370 = vmatmul.bf16.gmra.mxu0 %v2218
        %v3371 = vpop.f32.mrf.mxu0
        %v3372 = vadd.f32 0.0, %v3371
        %v3373 = vpop.f32.mrf.mxu0
        %v3374 = vadd.f32 0.0, %v3373
        %3375 = vmatmul.bf16.gmra.mxu0 %v2219
        %v3376 = vpop.f32.mrf.mxu0
        %v3377 = vadd.f32 0.0, %v3376
        %v3378 = vpop.f32.mrf.mxu0
        %v3379 = vadd.f32 0.0, %v3378
        %3380 = vmatmul.bf16.gmra.mxu0 %v2220
        %v3381 = vpop.f32.mrf.mxu0
        %v3382 = vadd.f32 0.0, %v3381
        %v3383 = vpop.f32.mrf.mxu0
        %v3384 = vadd.f32 0.0, %v3383
        %3385 = vmatmul.bf16.gmra.mxu0 %v2221
        %v3386 = vpop.f32.mrf.mxu0
        %v3387 = vadd.f32 0.0, %v3386
        %v3388 = vpop.f32.mrf.mxu0
        %v3389 = vadd.f32 0.0, %v3388
        %3390 = vmatmul.bf16.gmra.mxu0 %v2222
        %v3391 = vpop.f32.mrf.mxu0
        %v3392 = vadd.f32 0.0, %v3391
        %v3393 = vpop.f32.mrf.mxu0
        %v3394 = vadd.f32 0.0, %v3393
        %3395 = vmatmul.bf16.gmra.mxu0 %v2223
        %v3396 = vpop.f32.mrf.mxu0
        %v3397 = vadd.f32 0.0, %v3396
        %v3398 = vpop.f32.mrf.mxu0
        %v3399 = vadd.f32 0.0, %v3398
        %3400 = vmatmul.bf16.gmra.mxu0 %v2224
        %v3401 = vpop.f32.mrf.mxu0
        %v3402 = vadd.f32 0.0, %v3401
        %v3403 = vpop.f32.mrf.mxu0
        %v3404 = vadd.f32 0.0, %v3403
        %3405 = vmatmul.bf16.gmra.mxu0 %v2225
        %v3406 = vpop.f32.mrf.mxu0
        %v3407 = vadd.f32 0.0, %v3406
        %v3408 = vpop.f32.mrf.mxu0
        %v3409 = vadd.f32 0.0, %v3408
        %3410 = vmatmul.bf16.gmra.mxu0 %v2226
        %v3411 = vpop.f32.mrf.mxu0
        %v3412 = vadd.f32 0.0, %v3411
        %v3413 = vpop.f32.mrf.mxu0
        %v3414 = vadd.f32 0.0, %v3413
        %3415 = vmatmul.bf16.gmra.mxu0 %v2227
        %v3416 = vpop.f32.mrf.mxu0
        %v3417 = vadd.f32 0.0, %v3416
        %v3418 = vpop.f32.mrf.mxu0
        %v3419 = vadd.f32 0.0, %v3418
        %3420 = vmatmul.bf16.gmra.mxu0 %v2677
        %v3421 = vpop.f32.mrf.mxu0
        %v3422 = vadd.f32 0.0, %v3421
        %v3423 = vpop.f32.mrf.mxu0
        %v3424 = vadd.f32 0.0, %v3423
        %3425 = vmatmul.bf16.gmra.mxu0 %v2678
        %v3426 = vpop.f32.mrf.mxu0
        %v3427 = vadd.f32 0.0, %v3426
        %v3428 = vpop.f32.mrf.mxu0
        %v3429 = vadd.f32 0.0, %v3428
        %3430 = vdwg.mxu0
        %v3431 = vadd.f32 %v3165, %v3312
        %v3432 = vadd.f32 %v3166, %v3314
        %v3433 = vadd.f32 %v3167, %v3317
        %v3434 = vadd.f32 %v3168, %v3319
        %v3435 = vadd.f32 %v3169, %v3322
        %v3436 = vadd.f32 %v3170, %v3324
        %v3437 = vadd.f32 %v3171, %v3327
        %v3438 = vadd.f32 %v3172, %v3329
        %v3439 = vadd.f32 %v3173, %v3332
        %v3440 = vadd.f32 %v3174, %v3334
        %v3441 = vadd.f32 %v3175, %v3337
        %v3442 = vadd.f32 %v3176, %v3339
        %v3443 = vadd.f32 %v3177, %v3342
        %v3444 = vadd.f32 %v3178, %v3344
        %v3445 = vadd.f32 %v3179, %v3347
        %v3446 = vadd.f32 %v3180, %v3349
        %v3447 = vadd.f32 %v3181, %v3352
        %v3448 = vadd.f32 %v3182, %v3354
        %v3449 = vadd.f32 %v3183, %v3357
        %v3450 = vadd.f32 %v3184, %v3359
        %v3451 = vadd.f32 %v3185, %v3362
        %v3452 = vadd.f32 %v3186, %v3364
        %v3453 = vadd.f32 %v3187, %v3367
        %v3454 = vadd.f32 %v3188, %v3369
        %v3455 = vadd.f32 %v3189, %v3372
        %v3456 = vadd.f32 %v3190, %v3374
        %v3457 = vadd.f32 %v3191, %v3377
        %v3458 = vadd.f32 %v3192, %v3379
        %v3459 = vadd.f32 %v3193, %v3382
        %v3460 = vadd.f32 %v3194, %v3384
        %v3461 = vadd.f32 %v3195, %v3387
        %v3462 = vadd.f32 %v3196, %v3389
        %v3463 = vadd.f32 %v3197, %v3392
        %v3464 = vadd.f32 %v3198, %v3394
        %v3465 = vadd.f32 %v3199, %v3397
        %v3466 = vadd.f32 %v3200, %v3399
        %v3467 = vadd.f32 %v3201, %v3402
        %v3468 = vadd.f32 %v3202, %v3404
        %v3469 = vadd.f32 %v3203, %v3407
        %v3470 = vadd.f32 %v3204, %v3409
        %v3471 = vadd.f32 %v3205, %v3412
        %v3472 = vadd.f32 %v3206, %v3414
        %v3473 = vadd.f32 %v3207, %v3417
        %v3474 = vadd.f32 %v3208, %v3419
        %v3475 = vadd.f32 %v3209, %v3422
        %v3476 = vadd.f32 %v3210, %v3424
        %v3477 = vadd.f32 %v3211, %v3427
        %v3478 = vadd.f32 %v3212, %v3429
        %s3479 = scalar_lea.vmem [#allocation5], 448
        %v3480 = vld [vmem:[%s3479] sm:$0xf]
        %v3481 = vld [vmem:[%s3479 + $0x4] sm:$0xf]
        %v3482 = vld [vmem:[%s3479 + $0x8] sm:$0xf]
        %v3483 = vld [vmem:[%s3479 + $0xc] sm:$0xf]
        %v3484 = vld [vmem:[%s3479 + $0x10] sm:$0xf]
        %v3485 = vld [vmem:[%s3479 + $0x14] sm:$0xf]
        %v3486 = vld [vmem:[%s3479 + $0x18] sm:$0xf]
        %v3487 = vld [vmem:[%s3479 + $0x1c] sm:$0xf]
        %v3488 = vld [vmem:[%s3479 + $0x20] sm:$0xf]
        %v3489 = vld [vmem:[%s3479 + $0x24] sm:$0xf]
        %v3490 = vld [vmem:[%s3479 + $0x28] sm:$0xf]
        %v3491 = vld [vmem:[%s3479 + $0x2c] sm:$0xf]
        %v3492 = vld [vmem:[%s3479 + $0x30] sm:$0xf]
        %v3493 = vld [vmem:[%s3479 + $0x34] sm:$0xf]
        %v3494 = vld [vmem:[%s3479 + $0x38] sm:$0xf]
        %v3495 = vld [vmem:[%s3479 + $0x3c] sm:$0xf]
        %v3496 = vpack.c.b16 %v2674, %v1746
        %v3497 = vpack.c.b16 %v2676, %v2675
        %v3517 = vunpack.c.l.b16 %v3480
        %v3518 = vunpack.c.l.b16 %v3481
        %v3519 = vunpack.c.l.b16 %v3482
        %v3520 = vunpack.c.l.b16 %v3483
        %v3521 = vunpack.c.l.b16 %v3484
        %v3522 = vunpack.c.l.b16 %v3485
        %v3523 = vunpack.c.l.b16 %v3486
        %v3524 = vunpack.c.l.b16 %v3487
        %v3525 = vunpack.c.l.b16 %v3488
        %v3526 = vunpack.c.l.b16 %v3489
        %v3527 = vunpack.c.l.b16 %v3490
        %v3528 = vunpack.c.l.b16 %v3491
        %v3529 = vunpack.c.l.b16 %v3492
        %v3530 = vunpack.c.l.b16 %v3493
        %v3531 = vunpack.c.l.b16 %v3494
        %v3532 = vunpack.c.l.b16 %v3495
        %v3533 = vpack.c.b16 %v3518, %v3517
        %v3534 = vpack.c.b16 %v3520, %v3519
        %v3535 = vpack.c.b16 %v3522, %v3521
        %v3536 = vpack.c.b16 %v3524, %v3523
        %v3537 = vpack.c.b16 %v3526, %v3525
        %v3538 = vpack.c.b16 %v3528, %v3527
        %v3539 = vpack.c.b16 %v3530, %v3529
        %v3540 = vpack.c.b16 %v3532, %v3531
        %3549 = vmatpush.bf16.msra.mxu0 %v3540
        %3550 = vmatpush.bf16.msra.mxu0 %v3539
        %3551 = vmatpush.bf16.msra.mxu0 %v3538
        %3552 = vmatpush.bf16.msra.mxu0 %v3537
        %3553 = vmatpush.bf16.msra.mxu0 %v3536
        %3554 = vmatpush.bf16.msra.mxu0 %v3535
        %3555 = vmatpush.bf16.msra.mxu0 %v3534
        %3556 = vmatpush.bf16.msra.mxu0 %v3533
        %3557 = vmatmul.bf16.gmra.mxu0 %v1749
        %v3558 = vpop.f32.mrf.mxu0
        %v3559 = vadd.f32 0.0, %v3558
        %v3560 = vpop.f32.mrf.mxu0
        %v3561 = vadd.f32 0.0, %v3560
        %3562 = vmatmul.bf16.gmra.mxu0 %v1750
        %v3563 = vpop.f32.mrf.mxu0
        %v3564 = vadd.f32 0.0, %v3563
        %v3565 = vpop.f32.mrf.mxu0
        %v3566 = vadd.f32 0.0, %v3565
        %3567 = vmatmul.bf16.gmra.mxu0 %v1751
        %v3568 = vpop.f32.mrf.mxu0
        %v3569 = vadd.f32 0.0, %v3568
        %v3570 = vpop.f32.mrf.mxu0
        %v3571 = vadd.f32 0.0, %v3570
        %3572 = vmatmul.bf16.gmra.mxu0 %v1752
        %v3573 = vpop.f32.mrf.mxu0
        %v3574 = vadd.f32 0.0, %v3573
        %v3575 = vpop.f32.mrf.mxu0
        %v3576 = vadd.f32 0.0, %v3575
        %3577 = vmatmul.bf16.gmra.mxu0 %v1753
        %v3578 = vpop.f32.mrf.mxu0
        %v3579 = vadd.f32 0.0, %v3578
        %v3580 = vpop.f32.mrf.mxu0
        %v3581 = vadd.f32 0.0, %v3580
        %3582 = vmatmul.bf16.gmra.mxu0 %v1754
        %v3583 = vpop.f32.mrf.mxu0
        %v3584 = vadd.f32 0.0, %v3583
        %v3585 = vpop.f32.mrf.mxu0
        %v3586 = vadd.f32 0.0, %v3585
        %3587 = vmatmul.bf16.gmra.mxu0 %v1755
        %v3588 = vpop.f32.mrf.mxu0
        %v3589 = vadd.f32 0.0, %v3588
        %v3590 = vpop.f32.mrf.mxu0
        %v3591 = vadd.f32 0.0, %v3590
        %3592 = vmatmul.bf16.gmra.mxu0 %v1756
        %v3593 = vpop.f32.mrf.mxu0
        %v3594 = vadd.f32 0.0, %v3593
        %v3595 = vpop.f32.mrf.mxu0
        %v3596 = vadd.f32 0.0, %v3595
        %3597 = vmatmul.bf16.gmra.mxu0 %v1757
        %v3598 = vpop.f32.mrf.mxu0
        %v3599 = vadd.f32 0.0, %v3598
        %v3600 = vpop.f32.mrf.mxu0
        %v3601 = vadd.f32 0.0, %v3600
        %3602 = vmatmul.bf16.gmra.mxu0 %v1758
        %v3603 = vpop.f32.mrf.mxu0
        %v3604 = vadd.f32 0.0, %v3603
        %v3605 = vpop.f32.mrf.mxu0
        %v3606 = vadd.f32 0.0, %v3605
        %3607 = vmatmul.bf16.gmra.mxu0 %v1759
        %v3608 = vpop.f32.mrf.mxu0
        %v3609 = vadd.f32 0.0, %v3608
        %v3610 = vpop.f32.mrf.mxu0
        %v3611 = vadd.f32 0.0, %v3610
        %3612 = vmatmul.bf16.gmra.mxu0 %v1760
        %v3613 = vpop.f32.mrf.mxu0
        %v3614 = vadd.f32 0.0, %v3613
        %v3615 = vpop.f32.mrf.mxu0
        %v3616 = vadd.f32 0.0, %v3615
        %3617 = vmatmul.bf16.gmra.mxu0 %v1761
        %v3618 = vpop.f32.mrf.mxu0
        %v3619 = vadd.f32 0.0, %v3618
        %v3620 = vpop.f32.mrf.mxu0
        %v3621 = vadd.f32 0.0, %v3620
        %3622 = vmatmul.bf16.gmra.mxu0 %v1762
        %v3623 = vpop.f32.mrf.mxu0
        %v3624 = vadd.f32 0.0, %v3623
        %v3625 = vpop.f32.mrf.mxu0
        %v3626 = vadd.f32 0.0, %v3625
        %3627 = vmatmul.bf16.gmra.mxu0 %v1763
        %v3628 = vpop.f32.mrf.mxu0
        %v3629 = vadd.f32 0.0, %v3628
        %v3630 = vpop.f32.mrf.mxu0
        %v3631 = vadd.f32 0.0, %v3630
        %3632 = vmatmul.bf16.gmra.mxu0 %v1764
        %v3633 = vpop.f32.mrf.mxu0
        %v3634 = vadd.f32 0.0, %v3633
        %v3635 = vpop.f32.mrf.mxu0
        %v3636 = vadd.f32 0.0, %v3635
        %3637 = vmatmul.bf16.gmra.mxu0 %v1765
        %v3638 = vpop.f32.mrf.mxu0
        %v3639 = vadd.f32 0.0, %v3638
        %v3640 = vpop.f32.mrf.mxu0
        %v3641 = vadd.f32 0.0, %v3640
        %3642 = vmatmul.bf16.gmra.mxu0 %v1766
        %v3643 = vpop.f32.mrf.mxu0
        %v3644 = vadd.f32 0.0, %v3643
        %v3645 = vpop.f32.mrf.mxu0
        %v3646 = vadd.f32 0.0, %v3645
        %3647 = vmatmul.bf16.gmra.mxu0 %v1767
        %v3648 = vpop.f32.mrf.mxu0
        %v3649 = vadd.f32 0.0, %v3648
        %v3650 = vpop.f32.mrf.mxu0
        %v3651 = vadd.f32 0.0, %v3650
        %3652 = vmatmul.bf16.gmra.mxu0 %v1768
        %v3653 = vpop.f32.mrf.mxu0
        %v3654 = vadd.f32 0.0, %v3653
        %v3655 = vpop.f32.mrf.mxu0
        %v3656 = vadd.f32 0.0, %v3655
        %3657 = vmatmul.bf16.gmra.mxu0 %v1769
        %v3658 = vpop.f32.mrf.mxu0
        %v3659 = vadd.f32 0.0, %v3658
        %v3660 = vpop.f32.mrf.mxu0
        %v3661 = vadd.f32 0.0, %v3660
        %3662 = vmatmul.bf16.gmra.mxu0 %v1770
        %v3663 = vpop.f32.mrf.mxu0
        %v3664 = vadd.f32 0.0, %v3663
        %v3665 = vpop.f32.mrf.mxu0
        %v3666 = vadd.f32 0.0, %v3665
        %3667 = vmatmul.bf16.gmra.mxu0 %v3496
        %v3668 = vpop.f32.mrf.mxu0
        %v3669 = vadd.f32 0.0, %v3668
        %v3670 = vpop.f32.mrf.mxu0
        %v3671 = vadd.f32 0.0, %v3670
        %3672 = vmatmul.bf16.gmra.mxu0 %v3497
        %v3673 = vpop.f32.mrf.mxu0
        %v3674 = vadd.f32 0.0, %v3673
        %v3675 = vpop.f32.mrf.mxu0
        %v3676 = vadd.f32 0.0, %v3675
        %3677 = vdwg.mxu0
        %v3678 = vadd.f32 %v3431, %v3559
        %v3679 = vadd.f32 %v3432, %v3561
        %v3680 = vadd.f32 %v3433, %v3564
        %v3681 = vadd.f32 %v3434, %v3566
        %v3682 = vadd.f32 %v3435, %v3569
        %v3683 = vadd.f32 %v3436, %v3571
        %v3684 = vadd.f32 %v3437, %v3574
        %v3685 = vadd.f32 %v3438, %v3576
        %v3686 = vadd.f32 %v3439, %v3579
        %v3687 = vadd.f32 %v3440, %v3581
        %v3688 = vadd.f32 %v3441, %v3584
        %v3689 = vadd.f32 %v3442, %v3586
        %v3690 = vadd.f32 %v3443, %v3589
        %v3691 = vadd.f32 %v3444, %v3591
        %v3692 = vadd.f32 %v3445, %v3594
        %v3693 = vadd.f32 %v3446, %v3596
        %v3694 = vadd.f32 %v3447, %v3599
        %v3695 = vadd.f32 %v3448, %v3601
        %v3696 = vadd.f32 %v3449, %v3604
        %v3697 = vadd.f32 %v3450, %v3606
        %v3698 = vadd.f32 %v3451, %v3609
        %v3699 = vadd.f32 %v3452, %v3611
        %v3700 = vadd.f32 %v3453, %v3614
        %v3701 = vadd.f32 %v3454, %v3616
        %v3702 = vadd.f32 %v3455, %v3619
        %v3703 = vadd.f32 %v3456, %v3621
        %v3704 = vadd.f32 %v3457, %v3624
        %v3705 = vadd.f32 %v3458, %v3626
        %v3706 = vadd.f32 %v3459, %v3629
        %v3707 = vadd.f32 %v3460, %v3631
        %v3708 = vadd.f32 %v3461, %v3634
        %v3709 = vadd.f32 %v3462, %v3636
        %v3710 = vadd.f32 %v3463, %v3639
        %v3711 = vadd.f32 %v3464, %v3641
        %v3712 = vadd.f32 %v3465, %v3644
        %v3713 = vadd.f32 %v3466, %v3646
        %v3714 = vadd.f32 %v3467, %v3649
        %v3715 = vadd.f32 %v3468, %v3651
        %v3716 = vadd.f32 %v3469, %v3654
        %v3717 = vadd.f32 %v3470, %v3656
        %v3718 = vadd.f32 %v3471, %v3659
        %v3719 = vadd.f32 %v3472, %v3661
        %v3720 = vadd.f32 %v3473, %v3664
        %v3721 = vadd.f32 %v3474, %v3666
        %v3722 = vadd.f32 %v3475, %v3669
        %v3723 = vadd.f32 %v3476, %v3671
        %v3724 = vadd.f32 %v3477, %v3674
        %v3725 = vadd.f32 %v3478, %v3676
        %s3726 = scalar_lea.vmem [#allocation5], 128
        %v3727 = vld [vmem:[%s3726] sm:$0xf]
        %v3728 = vld [vmem:[%s3726 + $0x4] sm:$0xf]
        %v3729 = vld [vmem:[%s3726 + $0x8] sm:$0xf]
        %v3730 = vld [vmem:[%s3726 + $0xc] sm:$0xf]
        %v3731 = vld [vmem:[%s3726 + $0x10] sm:$0xf]
        %v3732 = vld [vmem:[%s3726 + $0x14] sm:$0xf]
        %v3733 = vld [vmem:[%s3726 + $0x18] sm:$0xf]
        %v3734 = vld [vmem:[%s3726 + $0x1c] sm:$0xf]
        %v3735 = vld [vmem:[%s3726 + $0x20] sm:$0xf]
        %v3736 = vld [vmem:[%s3726 + $0x24] sm:$0xf]
        %v3737 = vld [vmem:[%s3726 + $0x28] sm:$0xf]
        %v3738 = vld [vmem:[%s3726 + $0x2c] sm:$0xf]
        %v3739 = vld [vmem:[%s3726 + $0x30] sm:$0xf]
        %v3740 = vld [vmem:[%s3726 + $0x34] sm:$0xf]
        %v3741 = vld [vmem:[%s3726 + $0x38] sm:$0xf]
        %v3742 = vld [vmem:[%s3726 + $0x3c] sm:$0xf]
        %v3743 = vpack.c.b16 %v1744, %v1744
        %vm3744 = vsmask.f32 7424
        %v3746 = vshrl.u32 %v2963, 16
        %v3748 = vshll.u32 %v2963, 16
        %v3750 = vrot.slane %v3748, 1
        %v3751 = vor.u32 %v3746, %v3750
        %v3752 = vrot.slane %v1777, 1
        %v3753 = vsel %vm3744, %v3751, %v3752
        %v3754 = vor.u32 %v1774, %v3752
        %v3755 = vrot.slane %v1785, 1
        %v3756 = vsel %vm3744, %v3754, %v3755
        %v3757 = vor.u32 %v1782, %v3755
        %v3758 = vrot.slane %v1794, 1
        %v3759 = vsel %vm3744, %v3757, %v3758
        %v3760 = vor.u32 %v1791, %v3758
        %v3761 = vrot.slane %v1803, 1
        %v3762 = vsel %vm3744, %v3760, %v3761
        %v3763 = vor.u32 %v1800, %v3761
        %v3764 = vrot.slane %v1812, 1
        %v3765 = vsel %vm3744, %v3763, %v3764
        %v3766 = vor.u32 %v1809, %v3764
        %v3767 = vrot.slane %v1821, 1
        %v3768 = vsel %vm3744, %v3766, %v3767
        %v3769 = vor.u32 %v1818, %v3767
        %v3770 = vrot.slane %v1830, 1
        %v3771 = vsel %vm3744, %v3769, %v3770
        %v3772 = vor.u32 %v1827, %v3770
        %v3773 = vrot.slane %v1839, 1
        %v3774 = vsel %vm3744, %v3772, %v3773
        %v3775 = vor.u32 %v1836, %v3773
        %v3776 = vrot.slane %v1848, 1
        %v3777 = vsel %vm3744, %v3775, %v3776
        %v3778 = vor.u32 %v1845, %v3776
        %v3779 = vrot.slane %v1857, 1
        %v3780 = vsel %vm3744, %v3778, %v3779
        %v3781 = vor.u32 %v1854, %v3779
        %v3782 = vrot.slane %v1866, 1
        %v3783 = vsel %vm3744, %v3781, %v3782
        %v3784 = vor.u32 %v1863, %v3782
        %v3785 = vrot.slane %v1875, 1
        %v3786 = vsel %vm3744, %v3784, %v3785
        %v3787 = vor.u32 %v1872, %v3785
        %v3788 = vrot.slane %v1884, 1
        %v3789 = vsel %vm3744, %v3787, %v3788
        %v3790 = vor.u32 %v1881, %v3788
        %v3791 = vrot.slane %v1893, 1
        %v3792 = vsel %vm3744, %v3790, %v3791
        %v3793 = vor.u32 %v1890, %v3791
        %v3794 = vrot.slane %v1902, 1
        %v3795 = vsel %vm3744, %v3793, %v3794
        %v3796 = vor.u32 %v1899, %v3794
        %v3797 = vrot.slane %v1911, 1
        %v3798 = vsel %vm3744, %v3796, %v3797
        %v3799 = vor.u32 %v1908, %v3797
        %v3800 = vrot.slane %v1920, 1
        %v3801 = vsel %vm3744, %v3799, %v3800
        %v3802 = vor.u32 %v1917, %v3800
        %v3803 = vrot.slane %v1929, 1
        %v3804 = vsel %vm3744, %v3802, %v3803
        %v3805 = vor.u32 %v1926, %v3803
        %v3806 = vrot.slane %v1938, 1
        %v3807 = vsel %vm3744, %v3805, %v3806
        %v3808 = vor.u32 %v1935, %v3806
        %v3809 = vrot.slane %v1947, 1
        %v3810 = vsel %vm3744, %v3808, %v3809
        %v3811 = vor.u32 %v1944, %v3809
        %v3812 = vrot.slane %v1956, 1
        %v3813 = vsel %vm3744, %v3811, %v3812
        %v3814 = vor.u32 %v1953, %v3812
        %v3815 = vrot.slane %v1965, 1
        %v3816 = vsel %vm3744, %v3814, %v3815
        %v3817 = vor.u32 %v1962, %v3815
        %v3818 = vrot.slane %v1974, 1
        %v3819 = vsel %vm3744, %v3817, %v3818
        %v3820 = vor.u32 %v1971, %v3818
        %v3822 = vshll.u32 %v3743, 16
        %v3824 = vrot.slane %v3822, 1
        %v3825 = vsel %vm3744, %v3820, %v3824
        %v3866 = vunpack.c.l.b16 %v3727
        %v3867 = vunpack.c.l.b16 %v3728
        %v3868 = vunpack.c.l.b16 %v3729
        %v3869 = vunpack.c.l.b16 %v3730
        %v3870 = vunpack.c.l.b16 %v3731
        %v3871 = vunpack.c.l.b16 %v3732
        %v3872 = vunpack.c.l.b16 %v3733
        %v3873 = vunpack.c.l.b16 %v3734
        %v3874 = vunpack.c.l.b16 %v3735
        %v3875 = vunpack.c.l.b16 %v3736
        %v3876 = vunpack.c.l.b16 %v3737
        %v3877 = vunpack.c.l.b16 %v3738
        %v3878 = vunpack.c.l.b16 %v3739
        %v3879 = vunpack.c.l.b16 %v3740
        %v3880 = vunpack.c.l.b16 %v3741
        %v3881 = vunpack.c.l.b16 %v3742
        %v3882 = vpack.c.b16 %v3867, %v3866
        %v3883 = vpack.c.b16 %v3869, %v3868
        %v3884 = vpack.c.b16 %v3871, %v3870
        %v3885 = vpack.c.b16 %v3873, %v3872
        %v3886 = vpack.c.b16 %v3875, %v3874
        %v3887 = vpack.c.b16 %v3877, %v3876
        %v3888 = vpack.c.b16 %v3879, %v3878
        %v3889 = vpack.c.b16 %v3881, %v3880
        %3898 = vmatpush.bf16.msra.mxu0 %v3889
        %3899 = vmatpush.bf16.msra.mxu0 %v3888
        %3900 = vmatpush.bf16.msra.mxu0 %v3887
        %3901 = vmatpush.bf16.msra.mxu0 %v3886
        %3902 = vmatpush.bf16.msra.mxu0 %v3885
        %3903 = vmatpush.bf16.msra.mxu0 %v3884
        %3904 = vmatpush.bf16.msra.mxu0 %v3883
        %3905 = vmatpush.bf16.msra.mxu0 %v3882
        %3906 = vmatmul.bf16.gmra.mxu0 %v3753
        %v3907 = vpop.f32.mrf.mxu0
        %v3908 = vadd.f32 0.0, %v3907
        %v3909 = vpop.f32.mrf.mxu0
        %v3910 = vadd.f32 0.0, %v3909
        %3911 = vmatmul.bf16.gmra.mxu0 %v3756
        %v3912 = vpop.f32.mrf.mxu0
        %v3913 = vadd.f32 0.0, %v3912
        %v3914 = vpop.f32.mrf.mxu0
        %v3915 = vadd.f32 0.0, %v3914
        %3916 = vmatmul.bf16.gmra.mxu0 %v3759
        %v3917 = vpop.f32.mrf.mxu0
        %v3918 = vadd.f32 0.0, %v3917
        %v3919 = vpop.f32.mrf.mxu0
        %v3920 = vadd.f32 0.0, %v3919
        %3921 = vmatmul.bf16.gmra.mxu0 %v3762
        %v3922 = vpop.f32.mrf.mxu0
        %v3923 = vadd.f32 0.0, %v3922
        %v3924 = vpop.f32.mrf.mxu0
        %v3925 = vadd.f32 0.0, %v3924
        %3926 = vmatmul.bf16.gmra.mxu0 %v3765
        %v3927 = vpop.f32.mrf.mxu0
        %v3928 = vadd.f32 0.0, %v3927
        %v3929 = vpop.f32.mrf.mxu0
        %v3930 = vadd.f32 0.0, %v3929
        %3931 = vmatmul.bf16.gmra.mxu0 %v3768
        %v3932 = vpop.f32.mrf.mxu0
        %v3933 = vadd.f32 0.0, %v3932
        %v3934 = vpop.f32.mrf.mxu0
        %v3935 = vadd.f32 0.0, %v3934
        %3936 = vmatmul.bf16.gmra.mxu0 %v3771
        %v3937 = vpop.f32.mrf.mxu0
        %v3938 = vadd.f32 0.0, %v3937
        %v3939 = vpop.f32.mrf.mxu0
        %v3940 = vadd.f32 0.0, %v3939
        %3941 = vmatmul.bf16.gmra.mxu0 %v3774
        %v3942 = vpop.f32.mrf.mxu0
        %v3943 = vadd.f32 0.0, %v3942
        %v3944 = vpop.f32.mrf.mxu0
        %v3945 = vadd.f32 0.0, %v3944
        %3946 = vmatmul.bf16.gmra.mxu0 %v3777
        %v3947 = vpop.f32.mrf.mxu0
        %v3948 = vadd.f32 0.0, %v3947
        %v3949 = vpop.f32.mrf.mxu0
        %v3950 = vadd.f32 0.0, %v3949
        %3951 = vmatmul.bf16.gmra.mxu0 %v3780
        %v3952 = vpop.f32.mrf.mxu0
        %v3953 = vadd.f32 0.0, %v3952
        %v3954 = vpop.f32.mrf.mxu0
        %v3955 = vadd.f32 0.0, %v3954
        %3956 = vmatmul.bf16.gmra.mxu0 %v3783
        %v3957 = vpop.f32.mrf.mxu0
        %v3958 = vadd.f32 0.0, %v3957
        %v3959 = vpop.f32.mrf.mxu0
        %v3960 = vadd.f32 0.0, %v3959
        %3961 = vmatmul.bf16.gmra.mxu0 %v3786
        %v3962 = vpop.f32.mrf.mxu0
        %v3963 = vadd.f32 0.0, %v3962
        %v3964 = vpop.f32.mrf.mxu0
        %v3965 = vadd.f32 0.0, %v3964
        %3966 = vmatmul.bf16.gmra.mxu0 %v3789
        %v3967 = vpop.f32.mrf.mxu0
        %v3968 = vadd.f32 0.0, %v3967
        %v3969 = vpop.f32.mrf.mxu0
        %v3970 = vadd.f32 0.0, %v3969
        %3971 = vmatmul.bf16.gmra.mxu0 %v3792
        %v3972 = vpop.f32.mrf.mxu0
        %v3973 = vadd.f32 0.0, %v3972
        %v3974 = vpop.f32.mrf.mxu0
        %v3975 = vadd.f32 0.0, %v3974
        %3976 = vmatmul.bf16.gmra.mxu0 %v3795
        %v3977 = vpop.f32.mrf.mxu0
        %v3978 = vadd.f32 0.0, %v3977
        %v3979 = vpop.f32.mrf.mxu0
        %v3980 = vadd.f32 0.0, %v3979
        %3981 = vmatmul.bf16.gmra.mxu0 %v3798
        %v3982 = vpop.f32.mrf.mxu0
        %v3983 = vadd.f32 0.0, %v3982
        %v3984 = vpop.f32.mrf.mxu0
        %v3985 = vadd.f32 0.0, %v3984
        %3986 = vmatmul.bf16.gmra.mxu0 %v3801
        %v3987 = vpop.f32.mrf.mxu0
        %v3988 = vadd.f32 0.0, %v3987
        %v3989 = vpop.f32.mrf.mxu0
        %v3990 = vadd.f32 0.0, %v3989
        %3991 = vmatmul.bf16.gmra.mxu0 %v3804
        %v3992 = vpop.f32.mrf.mxu0
        %v3993 = vadd.f32 0.0, %v3992
        %v3994 = vpop.f32.mrf.mxu0
        %v3995 = vadd.f32 0.0, %v3994
        %3996 = vmatmul.bf16.gmra.mxu0 %v3807
        %v3997 = vpop.f32.mrf.mxu0
        %v3998 = vadd.f32 0.0, %v3997
        %v3999 = vpop.f32.mrf.mxu0
        %v4000 = vadd.f32 0.0, %v3999
        %4001 = vmatmul.bf16.gmra.mxu0 %v3810
        %v4002 = vpop.f32.mrf.mxu0
        %v4003 = vadd.f32 0.0, %v4002
        %v4004 = vpop.f32.mrf.mxu0
        %v4005 = vadd.f32 0.0, %v4004
        %4006 = vmatmul.bf16.gmra.mxu0 %v3813
        %v4007 = vpop.f32.mrf.mxu0
        %v4008 = vadd.f32 0.0, %v4007
        %v4009 = vpop.f32.mrf.mxu0
        %v4010 = vadd.f32 0.0, %v4009
        %4011 = vmatmul.bf16.gmra.mxu0 %v3816
        %v4012 = vpop.f32.mrf.mxu0
        %v4013 = vadd.f32 0.0, %v4012
        %v4014 = vpop.f32.mrf.mxu0
        %v4015 = vadd.f32 0.0, %v4014
        %4016 = vmatmul.bf16.gmra.mxu0 %v3819
        %v4017 = vpop.f32.mrf.mxu0
        %v4018 = vadd.f32 0.0, %v4017
        %v4019 = vpop.f32.mrf.mxu0
        %v4020 = vadd.f32 0.0, %v4019
        %4021 = vmatmul.bf16.gmra.mxu0 %v3825
        %v4022 = vpop.f32.mrf.mxu0
        %v4023 = vadd.f32 0.0, %v4022
        %v4024 = vpop.f32.mrf.mxu0
        %v4025 = vadd.f32 0.0, %v4024
        %4026 = vdwg.mxu0
        %v4027 = vadd.f32 %v3678, %v3908
        %v4028 = vadd.f32 %v3679, %v3910
        %v4029 = vadd.f32 %v3680, %v3913
        %v4030 = vadd.f32 %v3681, %v3915
        %v4031 = vadd.f32 %v3682, %v3918
        %v4032 = vadd.f32 %v3683, %v3920
        %v4033 = vadd.f32 %v3684, %v3923
        %v4034 = vadd.f32 %v3685, %v3925
        %v4035 = vadd.f32 %v3686, %v3928
        %v4036 = vadd.f32 %v3687, %v3930
        %v4037 = vadd.f32 %v3688, %v3933
        %v4038 = vadd.f32 %v3689, %v3935
        %v4039 = vadd.f32 %v3690, %v3938
        %v4040 = vadd.f32 %v3691, %v3940
        %v4041 = vadd.f32 %v3692, %v3943
        %v4042 = vadd.f32 %v3693, %v3945
        %v4043 = vadd.f32 %v3694, %v3948
        %v4044 = vadd.f32 %v3695, %v3950
        %v4045 = vadd.f32 %v3696, %v3953
        %v4046 = vadd.f32 %v3697, %v3955
        %v4047 = vadd.f32 %v3698, %v3958
        %v4048 = vadd.f32 %v3699, %v3960
        %v4049 = vadd.f32 %v3700, %v3963
        %v4050 = vadd.f32 %v3701, %v3965
        %v4051 = vadd.f32 %v3702, %v3968
        %v4052 = vadd.f32 %v3703, %v3970
        %v4053 = vadd.f32 %v3704, %v3973
        %v4054 = vadd.f32 %v3705, %v3975
        %v4055 = vadd.f32 %v3706, %v3978
        %v4056 = vadd.f32 %v3707, %v3980
        %v4057 = vadd.f32 %v3708, %v3983
        %v4058 = vadd.f32 %v3709, %v3985
        %v4059 = vadd.f32 %v3710, %v3988
        %v4060 = vadd.f32 %v3711, %v3990
        %v4061 = vadd.f32 %v3712, %v3993
        %v4062 = vadd.f32 %v3713, %v3995
        %v4063 = vadd.f32 %v3714, %v3998
        %v4064 = vadd.f32 %v3715, %v4000
        %v4065 = vadd.f32 %v3716, %v4003
        %v4066 = vadd.f32 %v3717, %v4005
        %v4067 = vadd.f32 %v3718, %v4008
        %v4068 = vadd.f32 %v3719, %v4010
        %v4069 = vadd.f32 %v3720, %v4013
        %v4070 = vadd.f32 %v3721, %v4015
        %v4071 = vadd.f32 %v3722, %v4018
        %v4072 = vadd.f32 %v3723, %v4020
        %v4073 = vadd.f32 %v3724, %v4023
        %v4074 = vadd.f32 %v3725, %v4025
        %s4075 = scalar_lea.vmem [#allocation5], 320
        %v4076 = vld [vmem:[%s4075] sm:$0xf]
        %v4077 = vld [vmem:[%s4075 + $0x4] sm:$0xf]
        %v4078 = vld [vmem:[%s4075 + $0x8] sm:$0xf]
        %v4079 = vld [vmem:[%s4075 + $0xc] sm:$0xf]
        %v4080 = vld [vmem:[%s4075 + $0x10] sm:$0xf]
        %v4081 = vld [vmem:[%s4075 + $0x14] sm:$0xf]
        %v4082 = vld [vmem:[%s4075 + $0x18] sm:$0xf]
        %v4083 = vld [vmem:[%s4075 + $0x1c] sm:$0xf]
        %v4084 = vld [vmem:[%s4075 + $0x20] sm:$0xf]
        %v4085 = vld [vmem:[%s4075 + $0x24] sm:$0xf]
        %v4086 = vld [vmem:[%s4075 + $0x28] sm:$0xf]
        %v4087 = vld [vmem:[%s4075 + $0x2c] sm:$0xf]
        %v4088 = vld [vmem:[%s4075 + $0x30] sm:$0xf]
        %v4089 = vld [vmem:[%s4075 + $0x34] sm:$0xf]
        %v4090 = vld [vmem:[%s4075 + $0x38] sm:$0xf]
        %v4091 = vld [vmem:[%s4075 + $0x3c] sm:$0xf]
        %v4092 = vpack.c.b16 %v2674, %v2674
        %v4093 = vrot.slane %v2250, 1
        %v4094 = vor.u32 %v2247, %v4093
        %v4095 = vrot.slane %v2259, 1
        %v4096 = vsel %vm3744, %v4094, %v4095
        %v4097 = vor.u32 %v2256, %v4095
        %v4098 = vrot.slane %v2268, 1
        %v4099 = vsel %vm3744, %v4097, %v4098
        %v4100 = vor.u32 %v2265, %v4098
        %v4101 = vrot.slane %v2277, 1
        %v4102 = vsel %vm3744, %v4100, %v4101
        %v4103 = vor.u32 %v2274, %v4101
        %v4104 = vrot.slane %v2286, 1
        %v4105 = vsel %vm3744, %v4103, %v4104
        %v4106 = vor.u32 %v2283, %v4104
        %v4107 = vrot.slane %v2295, 1
        %v4108 = vsel %vm3744, %v4106, %v4107
        %v4109 = vor.u32 %v2292, %v4107
        %v4110 = vrot.slane %v2304, 1
        %v4111 = vsel %vm3744, %v4109, %v4110
        %v4112 = vor.u32 %v2301, %v4110
        %v4113 = vrot.slane %v2313, 1
        %v4114 = vsel %vm3744, %v4112, %v4113
        %v4115 = vor.u32 %v2310, %v4113
        %v4116 = vrot.slane %v2322, 1
        %v4117 = vsel %vm3744, %v4115, %v4116
        %v4118 = vor.u32 %v2319, %v4116
        %v4119 = vrot.slane %v2331, 1
        %v4120 = vsel %vm3744, %v4118, %v4119
        %v4121 = vor.u32 %v2328, %v4119
        %v4122 = vrot.slane %v2340, 1
        %v4123 = vsel %vm3744, %v4121, %v4122
        %v4124 = vor.u32 %v2337, %v4122
        %v4125 = vrot.slane %v2349, 1
        %v4126 = vsel %vm3744, %v4124, %v4125
        %v4127 = vor.u32 %v2346, %v4125
        %v4128 = vrot.slane %v2358, 1
        %v4129 = vsel %vm3744, %v4127, %v4128
        %v4130 = vor.u32 %v2355, %v4128
        %v4131 = vrot.slane %v2367, 1
        %v4132 = vsel %vm3744, %v4130, %v4131
        %v4133 = vor.u32 %v2364, %v4131
        %v4134 = vrot.slane %v2376, 1
        %v4135 = vsel %vm3744, %v4133, %v4134
        %v4136 = vor.u32 %v2373, %v4134
        %v4137 = vrot.slane %v2385, 1
        %v4138 = vsel %vm3744, %v4136, %v4137
        %v4139 = vor.u32 %v2382, %v4137
        %v4140 = vrot.slane %v2394, 1
        %v4141 = vsel %vm3744, %v4139, %v4140
        %v4142 = vor.u32 %v2391, %v4140
        %v4143 = vrot.slane %v2403, 1
        %v4144 = vsel %vm3744, %v4142, %v4143
        %v4145 = vor.u32 %v2400, %v4143
        %v4146 = vrot.slane %v2412, 1
        %v4147 = vsel %vm3744, %v4145, %v4146
        %v4148 = vor.u32 %v2409, %v4146
        %v4149 = vrot.slane %v2421, 1
        %v4150 = vsel %vm3744, %v4148, %v4149
        %v4151 = vor.u32 %v2418, %v4149
        %v4152 = vrot.slane %v2430, 1
        %v4153 = vsel %vm3744, %v4151, %v4152
        %v4154 = vor.u32 %v2427, %v4152
        %v4155 = vrot.slane %v2439, 1
        %v4156 = vsel %vm3744, %v4154, %v4155
        %v4157 = vor.u32 %v2436, %v4155
        %v4158 = vrot.slane %v2685, 1
        %v4159 = vsel %vm3744, %v4157, %v4158
        %v4160 = vor.u32 %v2682, %v4158
        %v4161 = vrot.slane %v2694, 1
        %v4162 = vsel %vm3744, %v4160, %v4161
        %v4163 = vor.u32 %v2691, %v4161
        %v4165 = vshll.u32 %v4092, 16
        %v4167 = vrot.slane %v4165, 1
        %v4168 = vsel %vm3744, %v4163, %v4167
        %v4209 = vunpack.c.l.b16 %v4076
        %v4210 = vunpack.c.l.b16 %v4077
        %v4211 = vunpack.c.l.b16 %v4078
        %v4212 = vunpack.c.l.b16 %v4079
        %v4213 = vunpack.c.l.b16 %v4080
        %v4214 = vunpack.c.l.b16 %v4081
        %v4215 = vunpack.c.l.b16 %v4082
        %v4216 = vunpack.c.l.b16 %v4083
        %v4217 = vunpack.c.l.b16 %v4084
        %v4218 = vunpack.c.l.b16 %v4085
        %v4219 = vunpack.c.l.b16 %v4086
        %v4220 = vunpack.c.l.b16 %v4087
        %v4221 = vunpack.c.l.b16 %v4088
        %v4222 = vunpack.c.l.b16 %v4089
        %v4223 = vunpack.c.l.b16 %v4090
        %v4224 = vunpack.c.l.b16 %v4091
        %v4225 = vpack.c.b16 %v4210, %v4209
        %v4226 = vpack.c.b16 %v4212, %v4211
        %v4227 = vpack.c.b16 %v4214, %v4213
        %v4228 = vpack.c.b16 %v4216, %v4215
        %v4229 = vpack.c.b16 %v4218, %v4217
        %v4230 = vpack.c.b16 %v4220, %v4219
        %v4231 = vpack.c.b16 %v4222, %v4221
        %v4232 = vpack.c.b16 %v4224, %v4223
        %4241 = vmatpush.bf16.msra.mxu0 %v4232
        %4242 = vmatpush.bf16.msra.mxu0 %v4231
        %4243 = vmatpush.bf16.msra.mxu0 %v4230
        %4244 = vmatpush.bf16.msra.mxu0 %v4229
        %4245 = vmatpush.bf16.msra.mxu0 %v4228
        %4246 = vmatpush.bf16.msra.mxu0 %v4227
        %4247 = vmatpush.bf16.msra.mxu0 %v4226
        %4248 = vmatpush.bf16.msra.mxu0 %v4225
        %4249 = vmatmul.bf16.gmra.mxu0 %v4096
        %v4250 = vpop.f32.mrf.mxu0
        %v4251 = vadd.f32 0.0, %v4250
        %v4252 = vpop.f32.mrf.mxu0
        %v4253 = vadd.f32 0.0, %v4252
        %4254 = vmatmul.bf16.gmra.mxu0 %v4099
        %v4255 = vpop.f32.mrf.mxu0
        %v4256 = vadd.f32 0.0, %v4255
        %v4257 = vpop.f32.mrf.mxu0
        %v4258 = vadd.f32 0.0, %v4257
        %4259 = vmatmul.bf16.gmra.mxu0 %v4102
        %v4260 = vpop.f32.mrf.mxu0
        %v4261 = vadd.f32 0.0, %v4260
        %v4262 = vpop.f32.mrf.mxu0
        %v4263 = vadd.f32 0.0, %v4262
        %4264 = vmatmul.bf16.gmra.mxu0 %v4105
        %v4265 = vpop.f32.mrf.mxu0
        %v4266 = vadd.f32 0.0, %v4265
        %v4267 = vpop.f32.mrf.mxu0
        %v4268 = vadd.f32 0.0, %v4267
        %4269 = vmatmul.bf16.gmra.mxu0 %v4108
        %v4270 = vpop.f32.mrf.mxu0
        %v4271 = vadd.f32 0.0, %v4270
        %v4272 = vpop.f32.mrf.mxu0
        %v4273 = vadd.f32 0.0, %v4272
        %4274 = vmatmul.bf16.gmra.mxu0 %v4111
        %v4275 = vpop.f32.mrf.mxu0
        %v4276 = vadd.f32 0.0, %v4275
        %v4277 = vpop.f32.mrf.mxu0
        %v4278 = vadd.f32 0.0, %v4277
        %4279 = vmatmul.bf16.gmra.mxu0 %v4114
        %v4280 = vpop.f32.mrf.mxu0
        %v4281 = vadd.f32 0.0, %v4280
        %v4282 = vpop.f32.mrf.mxu0
        %v4283 = vadd.f32 0.0, %v4282
        %4284 = vmatmul.bf16.gmra.mxu0 %v4117
        %v4285 = vpop.f32.mrf.mxu0
        %v4286 = vadd.f32 0.0, %v4285
        %v4287 = vpop.f32.mrf.mxu0
        %v4288 = vadd.f32 0.0, %v4287
        %4289 = vmatmul.bf16.gmra.mxu0 %v4120
        %v4290 = vpop.f32.mrf.mxu0
        %v4291 = vadd.f32 0.0, %v4290
        %v4292 = vpop.f32.mrf.mxu0
        %v4293 = vadd.f32 0.0, %v4292
        %4294 = vmatmul.bf16.gmra.mxu0 %v4123
        %v4295 = vpop.f32.mrf.mxu0
        %v4296 = vadd.f32 0.0, %v4295
        %v4297 = vpop.f32.mrf.mxu0
        %v4298 = vadd.f32 0.0, %v4297
        %4299 = vmatmul.bf16.gmra.mxu0 %v4126
        %v4300 = vpop.f32.mrf.mxu0
        %v4301 = vadd.f32 0.0, %v4300
        %v4302 = vpop.f32.mrf.mxu0
        %v4303 = vadd.f32 0.0, %v4302
        %4304 = vmatmul.bf16.gmra.mxu0 %v4129
        %v4305 = vpop.f32.mrf.mxu0
        %v4306 = vadd.f32 0.0, %v4305
        %v4307 = vpop.f32.mrf.mxu0
        %v4308 = vadd.f32 0.0, %v4307
        %4309 = vmatmul.bf16.gmra.mxu0 %v4132
        %v4310 = vpop.f32.mrf.mxu0
        %v4311 = vadd.f32 0.0, %v4310
        %v4312 = vpop.f32.mrf.mxu0
        %v4313 = vadd.f32 0.0, %v4312
        %4314 = vmatmul.bf16.gmra.mxu0 %v4135
        %v4315 = vpop.f32.mrf.mxu0
        %v4316 = vadd.f32 0.0, %v4315
        %v4317 = vpop.f32.mrf.mxu0
        %v4318 = vadd.f32 0.0, %v4317
        %4319 = vmatmul.bf16.gmra.mxu0 %v4138
        %v4320 = vpop.f32.mrf.mxu0
        %v4321 = vadd.f32 0.0, %v4320
        %v4322 = vpop.f32.mrf.mxu0
        %v4323 = vadd.f32 0.0, %v4322
        %4324 = vmatmul.bf16.gmra.mxu0 %v4141
        %v4325 = vpop.f32.mrf.mxu0
        %v4326 = vadd.f32 0.0, %v4325
        %v4327 = vpop.f32.mrf.mxu0
        %v4328 = vadd.f32 0.0, %v4327
        %4329 = vmatmul.bf16.gmra.mxu0 %v4144
        %v4330 = vpop.f32.mrf.mxu0
        %v4331 = vadd.f32 0.0, %v4330
        %v4332 = vpop.f32.mrf.mxu0
        %v4333 = vadd.f32 0.0, %v4332
        %4334 = vmatmul.bf16.gmra.mxu0 %v4147
        %v4335 = vpop.f32.mrf.mxu0
        %v4336 = vadd.f32 0.0, %v4335
        %v4337 = vpop.f32.mrf.mxu0
        %v4338 = vadd.f32 0.0, %v4337
        %4339 = vmatmul.bf16.gmra.mxu0 %v4150
        %v4340 = vpop.f32.mrf.mxu0
        %v4341 = vadd.f32 0.0, %v4340
        %v4342 = vpop.f32.mrf.mxu0
        %v4343 = vadd.f32 0.0, %v4342
        %4344 = vmatmul.bf16.gmra.mxu0 %v4153
        %v4345 = vpop.f32.mrf.mxu0
        %v4346 = vadd.f32 0.0, %v4345
        %v4347 = vpop.f32.mrf.mxu0
        %v4348 = vadd.f32 0.0, %v4347
        %4349 = vmatmul.bf16.gmra.mxu0 %v4156
        %v4350 = vpop.f32.mrf.mxu0
        %v4351 = vadd.f32 0.0, %v4350
        %v4352 = vpop.f32.mrf.mxu0
        %v4353 = vadd.f32 0.0, %v4352
        %4354 = vmatmul.bf16.gmra.mxu0 %v4159
        %v4355 = vpop.f32.mrf.mxu0
        %v4356 = vadd.f32 0.0, %v4355
        %v4357 = vpop.f32.mrf.mxu0
        %v4358 = vadd.f32 0.0, %v4357
        %4359 = vmatmul.bf16.gmra.mxu0 %v4162
        %v4360 = vpop.f32.mrf.mxu0
        %v4361 = vadd.f32 0.0, %v4360
        %v4362 = vpop.f32.mrf.mxu0
        %v4363 = vadd.f32 0.0, %v4362
        %4364 = vmatmul.bf16.gmra.mxu0 %v4168
        %v4365 = vpop.f32.mrf.mxu0
        %v4366 = vadd.f32 0.0, %v4365
        %v4367 = vpop.f32.mrf.mxu0
        %v4368 = vadd.f32 0.0, %v4367
        %4369 = vdwg.mxu0
        %v4370 = vadd.f32 %v4027, %v4251
        %v4371 = vadd.f32 %v4028, %v4253
        %v4372 = vadd.f32 %v4029, %v4256
        %v4373 = vadd.f32 %v4030, %v4258
        %v4374 = vadd.f32 %v4031, %v4261
        %v4375 = vadd.f32 %v4032, %v4263
        %v4376 = vadd.f32 %v4033, %v4266
        %v4377 = vadd.f32 %v4034, %v4268
        %v4378 = vadd.f32 %v4035, %v4271
        %v4379 = vadd.f32 %v4036, %v4273
        %v4380 = vadd.f32 %v4037, %v4276
        %v4381 = vadd.f32 %v4038, %v4278
        %v4382 = vadd.f32 %v4039, %v4281
        %v4383 = vadd.f32 %v4040, %v4283
        %v4384 = vadd.f32 %v4041, %v4286
        %v4385 = vadd.f32 %v4042, %v4288
        %v4386 = vadd.f32 %v4043, %v4291
        %v4387 = vadd.f32 %v4044, %v4293
        %v4388 = vadd.f32 %v4045, %v4296
        %v4389 = vadd.f32 %v4046, %v4298
        %v4390 = vadd.f32 %v4047, %v4301
        %v4391 = vadd.f32 %v4048, %v4303
        %v4392 = vadd.f32 %v4049, %v4306
        %v4393 = vadd.f32 %v4050, %v4308
        %v4394 = vadd.f32 %v4051, %v4311
        %v4395 = vadd.f32 %v4052, %v4313
        %v4396 = vadd.f32 %v4053, %v4316
        %v4397 = vadd.f32 %v4054, %v4318
        %v4398 = vadd.f32 %v4055, %v4321
        %v4399 = vadd.f32 %v4056, %v4323
        %v4400 = vadd.f32 %v4057, %v4326
        %v4401 = vadd.f32 %v4058, %v4328
        %v4402 = vadd.f32 %v4059, %v4331
        %v4403 = vadd.f32 %v4060, %v4333
        %v4404 = vadd.f32 %v4061, %v4336
        %v4405 = vadd.f32 %v4062, %v4338
        %v4406 = vadd.f32 %v4063, %v4341
        %v4407 = vadd.f32 %v4064, %v4343
        %v4408 = vadd.f32 %v4065, %v4346
        %v4409 = vadd.f32 %v4066, %v4348
        %v4410 = vadd.f32 %v4067, %v4351
        %v4411 = vadd.f32 %v4068, %v4353
        %v4412 = vadd.f32 %v4069, %v4356
        %v4413 = vadd.f32 %v4070, %v4358
        %v4414 = vadd.f32 %v4071, %v4361
        %v4415 = vadd.f32 %v4072, %v4363
        %v4416 = vadd.f32 %v4073, %v4366
        %v4417 = vadd.f32 %v4074, %v4368
        %s4418 = scalar_lea.vmem [#allocation5], 512
        %v4419 = vld [vmem:[%s4418] sm:$0xf]
        %v4420 = vld [vmem:[%s4418 + $0x4] sm:$0xf]
        %v4421 = vld [vmem:[%s4418 + $0x8] sm:$0xf]
        %v4422 = vld [vmem:[%s4418 + $0xc] sm:$0xf]
        %v4423 = vld [vmem:[%s4418 + $0x10] sm:$0xf]
        %v4424 = vld [vmem:[%s4418 + $0x14] sm:$0xf]
        %v4425 = vld [vmem:[%s4418 + $0x18] sm:$0xf]
        %v4426 = vld [vmem:[%s4418 + $0x1c] sm:$0xf]
        %v4427 = vld [vmem:[%s4418 + $0x20] sm:$0xf]
        %v4428 = vld [vmem:[%s4418 + $0x24] sm:$0xf]
        %v4429 = vld [vmem:[%s4418 + $0x28] sm:$0xf]
        %v4430 = vld [vmem:[%s4418 + $0x2c] sm:$0xf]
        %v4431 = vld [vmem:[%s4418 + $0x30] sm:$0xf]
        %v4432 = vld [vmem:[%s4418 + $0x34] sm:$0xf]
        %v4433 = vld [vmem:[%s4418 + $0x38] sm:$0xf]
        %v4434 = vld [vmem:[%s4418 + $0x3c] sm:$0xf]
        %v4436 = vunpack.c.l.b16 %v1615
        %v4437 = vpack.c.b16 %v4436, %v4436
        %v4438 = vrot.slane %v1983, 1
        %v4439 = vsel %vm3744, %v3820, %v4438
        %v4440 = vor.u32 %v1980, %v4438
        %v4442 = vshll.u32 %v3496, 16
        %v4444 = vrot.slane %v4442, 1
        %v4445 = vsel %vm3744, %v4440, %v4444
        %v4446 = vshrl.u32 %v3496, 16
        %v4448 = vor.u32 %v4446, %v4444
        %v4450 = vshll.u32 %v3497, 16
        %v4452 = vrot.slane %v4450, 1
        %v4453 = vsel %vm3744, %v4448, %v4452
        %v4454 = vshrl.u32 %v3497, 16
        %v4456 = vor.u32 %v4454, %v4452
        %v4458 = vshll.u32 %v4437, 16
        %v4460 = vrot.slane %v4458, 1
        %v4461 = vsel %vm3744, %v4456, %v4460
        %v4482 = vunpack.c.l.b16 %v4419
        %v4483 = vunpack.c.l.b16 %v4420
        %v4484 = vunpack.c.l.b16 %v4421
        %v4485 = vunpack.c.l.b16 %v4422
        %v4486 = vunpack.c.l.b16 %v4423
        %v4487 = vunpack.c.l.b16 %v4424
        %v4488 = vunpack.c.l.b16 %v4425
        %v4489 = vunpack.c.l.b16 %v4426
        %v4490 = vunpack.c.l.b16 %v4427
        %v4491 = vunpack.c.l.b16 %v4428
        %v4492 = vunpack.c.l.b16 %v4429
        %v4493 = vunpack.c.l.b16 %v4430
        %v4494 = vunpack.c.l.b16 %v4431
        %v4495 = vunpack.c.l.b16 %v4432
        %v4496 = vunpack.c.l.b16 %v4433
        %v4497 = vunpack.c.l.b16 %v4434
        %v4498 = vpack.c.b16 %v4483, %v4482
        %v4499 = vpack.c.b16 %v4485, %v4484
        %v4500 = vpack.c.b16 %v4487, %v4486
        %v4501 = vpack.c.b16 %v4489, %v4488
        %v4502 = vpack.c.b16 %v4491, %v4490
        %v4503 = vpack.c.b16 %v4493, %v4492
        %v4504 = vpack.c.b16 %v4495, %v4494
        %v4505 = vpack.c.b16 %v4497, %v4496
        %4514 = vmatpush.bf16.msra.mxu0 %v4505
        %4515 = vmatpush.bf16.msra.mxu0 %v4504
        %4516 = vmatpush.bf16.msra.mxu0 %v4503
        %4517 = vmatpush.bf16.msra.mxu0 %v4502
        %4518 = vmatpush.bf16.msra.mxu0 %v4501
        %4519 = vmatpush.bf16.msra.mxu0 %v4500
        %4520 = vmatpush.bf16.msra.mxu0 %v4499
        %4521 = vmatpush.bf16.msra.mxu0 %v4498
        %4522 = vmatmul.bf16.gmra.mxu0 %v3762
        %v4523 = vpop.f32.mrf.mxu0
        %v4524 = vadd.f32 0.0, %v4523
        %v4525 = vpop.f32.mrf.mxu0
        %v4526 = vadd.f32 0.0, %v4525
        %4527 = vmatmul.bf16.gmra.mxu0 %v3765
        %v4528 = vpop.f32.mrf.mxu0
        %v4529 = vadd.f32 0.0, %v4528
        %v4530 = vpop.f32.mrf.mxu0
        %v4531 = vadd.f32 0.0, %v4530
        %4532 = vmatmul.bf16.gmra.mxu0 %v3768
        %v4533 = vpop.f32.mrf.mxu0
        %v4534 = vadd.f32 0.0, %v4533
        %v4535 = vpop.f32.mrf.mxu0
        %v4536 = vadd.f32 0.0, %v4535
        %4537 = vmatmul.bf16.gmra.mxu0 %v3771
        %v4538 = vpop.f32.mrf.mxu0
        %v4539 = vadd.f32 0.0, %v4538
        %v4540 = vpop.f32.mrf.mxu0
        %v4541 = vadd.f32 0.0, %v4540
        %4542 = vmatmul.bf16.gmra.mxu0 %v3774
        %v4543 = vpop.f32.mrf.mxu0
        %v4544 = vadd.f32 0.0, %v4543
        %v4545 = vpop.f32.mrf.mxu0
        %v4546 = vadd.f32 0.0, %v4545
        %4547 = vmatmul.bf16.gmra.mxu0 %v3777
        %v4548 = vpop.f32.mrf.mxu0
        %v4549 = vadd.f32 0.0, %v4548
        %v4550 = vpop.f32.mrf.mxu0
        %v4551 = vadd.f32 0.0, %v4550
        %4552 = vmatmul.bf16.gmra.mxu0 %v3780
        %v4553 = vpop.f32.mrf.mxu0
        %v4554 = vadd.f32 0.0, %v4553
        %v4555 = vpop.f32.mrf.mxu0
        %v4556 = vadd.f32 0.0, %v4555
        %4557 = vmatmul.bf16.gmra.mxu0 %v3783
        %v4558 = vpop.f32.mrf.mxu0
        %v4559 = vadd.f32 0.0, %v4558
        %v4560 = vpop.f32.mrf.mxu0
        %v4561 = vadd.f32 0.0, %v4560
        %4562 = vmatmul.bf16.gmra.mxu0 %v3786
        %v4563 = vpop.f32.mrf.mxu0
        %v4564 = vadd.f32 0.0, %v4563
        %v4565 = vpop.f32.mrf.mxu0
        %v4566 = vadd.f32 0.0, %v4565
        %4567 = vmatmul.bf16.gmra.mxu0 %v3789
        %v4568 = vpop.f32.mrf.mxu0
        %v4569 = vadd.f32 0.0, %v4568
        %v4570 = vpop.f32.mrf.mxu0
        %v4571 = vadd.f32 0.0, %v4570
        %4572 = vmatmul.bf16.gmra.mxu0 %v3792
        %v4573 = vpop.f32.mrf.mxu0
        %v4574 = vadd.f32 0.0, %v4573
        %v4575 = vpop.f32.mrf.mxu0
        %v4576 = vadd.f32 0.0, %v4575
        %4577 = vmatmul.bf16.gmra.mxu0 %v3795
        %v4578 = vpop.f32.mrf.mxu0
        %v4579 = vadd.f32 0.0, %v4578
        %v4580 = vpop.f32.mrf.mxu0
        %v4581 = vadd.f32 0.0, %v4580
        %4582 = vmatmul.bf16.gmra.mxu0 %v3798
        %v4583 = vpop.f32.mrf.mxu0
        %v4584 = vadd.f32 0.0, %v4583
        %v4585 = vpop.f32.mrf.mxu0
        %v4586 = vadd.f32 0.0, %v4585
        %4587 = vmatmul.bf16.gmra.mxu0 %v3801
        %v4588 = vpop.f32.mrf.mxu0
        %v4589 = vadd.f32 0.0, %v4588
        %v4590 = vpop.f32.mrf.mxu0
        %v4591 = vadd.f32 0.0, %v4590
        %4592 = vmatmul.bf16.gmra.mxu0 %v3804
        %v4593 = vpop.f32.mrf.mxu0
        %v4594 = vadd.f32 0.0, %v4593
        %v4595 = vpop.f32.mrf.mxu0
        %v4596 = vadd.f32 0.0, %v4595
        %4597 = vmatmul.bf16.gmra.mxu0 %v3807
        %v4598 = vpop.f32.mrf.mxu0
        %v4599 = vadd.f32 0.0, %v4598
        %v4600 = vpop.f32.mrf.mxu0
        %v4601 = vadd.f32 0.0, %v4600
        %4602 = vmatmul.bf16.gmra.mxu0 %v3810
        %v4603 = vpop.f32.mrf.mxu0
        %v4604 = vadd.f32 0.0, %v4603
        %v4605 = vpop.f32.mrf.mxu0
        %v4606 = vadd.f32 0.0, %v4605
        %4607 = vmatmul.bf16.gmra.mxu0 %v3813
        %v4608 = vpop.f32.mrf.mxu0
        %v4609 = vadd.f32 0.0, %v4608
        %v4610 = vpop.f32.mrf.mxu0
        %v4611 = vadd.f32 0.0, %v4610
        %4612 = vmatmul.bf16.gmra.mxu0 %v3816
        %v4613 = vpop.f32.mrf.mxu0
        %v4614 = vadd.f32 0.0, %v4613
        %v4615 = vpop.f32.mrf.mxu0
        %v4616 = vadd.f32 0.0, %v4615
        %4617 = vmatmul.bf16.gmra.mxu0 %v3819
        %v4618 = vpop.f32.mrf.mxu0
        %v4619 = vadd.f32 0.0, %v4618
        %v4620 = vpop.f32.mrf.mxu0
        %v4621 = vadd.f32 0.0, %v4620
        %4622 = vmatmul.bf16.gmra.mxu0 %v4439
        %v4623 = vpop.f32.mrf.mxu0
        %v4624 = vadd.f32 0.0, %v4623
        %v4625 = vpop.f32.mrf.mxu0
        %v4626 = vadd.f32 0.0, %v4625
        %4627 = vmatmul.bf16.gmra.mxu0 %v4445
        %v4628 = vpop.f32.mrf.mxu0
        %v4629 = vadd.f32 0.0, %v4628
        %v4630 = vpop.f32.mrf.mxu0
        %v4631 = vadd.f32 0.0, %v4630
        %4632 = vmatmul.bf16.gmra.mxu0 %v4453
        %v4633 = vpop.f32.mrf.mxu0
        %v4634 = vadd.f32 0.0, %v4633
        %v4635 = vpop.f32.mrf.mxu0
        %v4636 = vadd.f32 0.0, %v4635
        %4637 = vmatmul.bf16.gmra.mxu0 %v4461
        %v4638 = vpop.f32.mrf.mxu0
        %v4639 = vadd.f32 0.0, %v4638
        %v4640 = vpop.f32.mrf.mxu0
        %v4641 = vadd.f32 0.0, %v4640
        %4642 = vdwg.mxu0
        %v4643 = vadd.f32 %v4370, %v4524
        %v4644 = vadd.f32 %v4371, %v4526
        %v4645 = vadd.f32 %v4372, %v4529
        %v4646 = vadd.f32 %v4373, %v4531
        %v4647 = vadd.f32 %v4374, %v4534
        %v4648 = vadd.f32 %v4375, %v4536
        %v4649 = vadd.f32 %v4376, %v4539
        %v4650 = vadd.f32 %v4377, %v4541
        %v4651 = vadd.f32 %v4378, %v4544
        %v4652 = vadd.f32 %v4379, %v4546
        %v4653 = vadd.f32 %v4380, %v4549
        %v4654 = vadd.f32 %v4381, %v4551
        %v4655 = vadd.f32 %v4382, %v4554
        %v4656 = vadd.f32 %v4383, %v4556
        %v4657 = vadd.f32 %v4384, %v4559
        %v4658 = vadd.f32 %v4385, %v4561
        %v4659 = vadd.f32 %v4386, %v4564
        %v4660 = vadd.f32 %v4387, %v4566
        %v4661 = vadd.f32 %v4388, %v4569
        %v4662 = vadd.f32 %v4389, %v4571
        %v4663 = vadd.f32 %v4390, %v4574
        %v4664 = vadd.f32 %v4391, %v4576
        %v4665 = vadd.f32 %v4392, %v4579
        %v4666 = vadd.f32 %v4393, %v4581
        %v4667 = vadd.f32 %v4394, %v4584
        %v4668 = vadd.f32 %v4395, %v4586
        %v4669 = vadd.f32 %v4396, %v4589
        %v4670 = vadd.f32 %v4397, %v4591
        %v4671 = vadd.f32 %v4398, %v4594
        %v4672 = vadd.f32 %v4399, %v4596
        %v4673 = vadd.f32 %v4400, %v4599
        %v4674 = vadd.f32 %v4401, %v4601
        %v4675 = vadd.f32 %v4402, %v4604
        %v4676 = vadd.f32 %v4403, %v4606
        %v4677 = vadd.f32 %v4404, %v4609
        %v4678 = vadd.f32 %v4405, %v4611
        %v4679 = vadd.f32 %v4406, %v4614
        %v4680 = vadd.f32 %v4407, %v4616
        %v4681 = vadd.f32 %v4408, %v4619
        %v4682 = vadd.f32 %v4409, %v4621
        %v4683 = vadd.f32 %v4410, %v4624
        %v4684 = vadd.f32 %v4411, %v4626
        %v4685 = vadd.f32 %v4412, %v4629
        %v4686 = vadd.f32 %v4413, %v4631
        %v4687 = vadd.f32 %v4414, %v4634
        %v4688 = vadd.f32 %v4415, %v4636
        %v4689 = vadd.f32 %v4416, %v4639
        %v4690 = vadd.f32 %v4417, %v4641
        %v4691 = vld [vmem:[%s6] sm:$0x1]
        %v4693 = vperm.slane %v4691, 0
        %v4695 = vmul.f32 %v4643, %v4693
        %v4696 = vmul.f32 %v4644, %v4693
        %v4697 = vmul.f32 %v4645, %v4693
        %v4698 = vmul.f32 %v4646, %v4693
        %v4699 = vmul.f32 %v4647, %v4693
        %v4700 = vmul.f32 %v4648, %v4693
        %v4701 = vmul.f32 %v4649, %v4693
        %v4702 = vmul.f32 %v4650, %v4693
        %v4703 = vmul.f32 %v4651, %v4693
        %v4704 = vmul.f32 %v4652, %v4693
        %v4705 = vmul.f32 %v4653, %v4693
        %v4706 = vmul.f32 %v4654, %v4693
        %v4707 = vmul.f32 %v4655, %v4693
        %v4708 = vmul.f32 %v4656, %v4693
        %v4709 = vmul.f32 %v4657, %v4693
        %v4710 = vmul.f32 %v4658, %v4693
        %v4711 = vmul.f32 %v4659, %v4693
        %v4712 = vmul.f32 %v4660, %v4693
        %v4713 = vmul.f32 %v4661, %v4693
        %v4714 = vmul.f32 %v4662, %v4693
        %v4715 = vmul.f32 %v4663, %v4693
        %v4716 = vmul.f32 %v4664, %v4693
        %v4717 = vmul.f32 %v4665, %v4693
        %v4718 = vmul.f32 %v4666, %v4693
        %v4719 = vmul.f32 %v4667, %v4693
        %v4720 = vmul.f32 %v4668, %v4693
        %v4721 = vmul.f32 %v4669, %v4693
        %v4722 = vmul.f32 %v4670, %v4693
        %v4723 = vmul.f32 %v4671, %v4693
        %v4724 = vmul.f32 %v4672, %v4693
        %v4725 = vmul.f32 %v4673, %v4693
        %v4726 = vmul.f32 %v4674, %v4693
        %v4727 = vmul.f32 %v4675, %v4693
        %v4728 = vmul.f32 %v4676, %v4693
        %v4729 = vmul.f32 %v4677, %v4693
        %v4730 = vmul.f32 %v4678, %v4693
        %v4731 = vmul.f32 %v4679, %v4693
        %v4732 = vmul.f32 %v4680, %v4693
        %v4733 = vmul.f32 %v4681, %v4693
        %v4734 = vmul.f32 %v4682, %v4693
        %v4735 = vmul.f32 %v4683, %v4693
        %v4736 = vmul.f32 %v4684, %v4693
        %v4737 = vmul.f32 %v4685, %v4693
        %v4738 = vmul.f32 %v4686, %v4693
        %v4739 = vmul.f32 %v4687, %v4693
        %v4740 = vmul.f32 %v4688, %v4693
        %v4741 = vmul.f32 %v4689, %v4693
        %v4742 = vmul.f32 %v4690, %v4693
        %v4743 = vld [vmem:[%s7] sm:$0x1]
        %v4745 = vperm.slane %v4743, 0
        %v4747 = vadd.f32 %v4695, %v4745
        %v4748 = vadd.f32 %v4696, %v4745
        %v4749 = vadd.f32 %v4697, %v4745
        %v4750 = vadd.f32 %v4698, %v4745
        %v4751 = vadd.f32 %v4699, %v4745
        %v4752 = vadd.f32 %v4700, %v4745
        %v4753 = vadd.f32 %v4701, %v4745
        %v4754 = vadd.f32 %v4702, %v4745
        %v4755 = vadd.f32 %v4703, %v4745
        %v4756 = vadd.f32 %v4704, %v4745
        %v4757 = vadd.f32 %v4705, %v4745
        %v4758 = vadd.f32 %v4706, %v4745
        %v4759 = vadd.f32 %v4707, %v4745
        %v4760 = vadd.f32 %v4708, %v4745
        %v4761 = vadd.f32 %v4709, %v4745
        %v4762 = vadd.f32 %v4710, %v4745
        %v4763 = vadd.f32 %v4711, %v4745
        %v4764 = vadd.f32 %v4712, %v4745
        %v4765 = vadd.f32 %v4713, %v4745
        %v4766 = vadd.f32 %v4714, %v4745
        %v4767 = vadd.f32 %v4715, %v4745
        %v4768 = vadd.f32 %v4716, %v4745
        %v4769 = vadd.f32 %v4717, %v4745
        %v4770 = vadd.f32 %v4718, %v4745
        %v4771 = vadd.f32 %v4719, %v4745
        %v4772 = vadd.f32 %v4720, %v4745
        %v4773 = vadd.f32 %v4721, %v4745
        %v4774 = vadd.f32 %v4722, %v4745
        %v4775 = vadd.f32 %v4723, %v4745
        %v4776 = vadd.f32 %v4724, %v4745
        %v4777 = vadd.f32 %v4725, %v4745
        %v4778 = vadd.f32 %v4726, %v4745
        %v4779 = vadd.f32 %v4727, %v4745
        %v4780 = vadd.f32 %v4728, %v4745
        %v4781 = vadd.f32 %v4729, %v4745
        %v4782 = vadd.f32 %v4730, %v4745
        %v4783 = vadd.f32 %v4731, %v4745
        %v4784 = vadd.f32 %v4732, %v4745
        %v4785 = vadd.f32 %v4733, %v4745
        %v4786 = vadd.f32 %v4734, %v4745
        %v4787 = vadd.f32 %v4735, %v4745
        %v4788 = vadd.f32 %v4736, %v4745
        %v4789 = vadd.f32 %v4737, %v4745
        %v4790 = vadd.f32 %v4738, %v4745
        %v4791 = vadd.f32 %v4739, %v4745
        %v4792 = vadd.f32 %v4740, %v4745
        %v4793 = vadd.f32 %v4741, %v4745
        %v4794 = vadd.f32 %v4742, %v4745
        %v4795 = vmax.f32 %v4747, 0.0
        %v4796 = vmax.f32 %v4748, 0.0
        %v4797 = vmax.f32 %v4749, 0.0
        %v4798 = vmax.f32 %v4750, 0.0
        %v4799 = vmax.f32 %v4751, 0.0
        %v4800 = vmax.f32 %v4752, 0.0
        %v4801 = vmax.f32 %v4753, 0.0
        %v4802 = vmax.f32 %v4754, 0.0
        %v4803 = vmax.f32 %v4755, 0.0
        %v4804 = vmax.f32 %v4756, 0.0
        %v4805 = vmax.f32 %v4757, 0.0
        %v4806 = vmax.f32 %v4758, 0.0
        %v4807 = vmax.f32 %v4759, 0.0
        %v4808 = vmax.f32 %v4760, 0.0
        %v4809 = vmax.f32 %v4761, 0.0
        %v4810 = vmax.f32 %v4762, 0.0
        %v4811 = vmax.f32 %v4763, 0.0
        %v4812 = vmax.f32 %v4764, 0.0
        %v4813 = vmax.f32 %v4765, 0.0
        %v4814 = vmax.f32 %v4766, 0.0
        %v4815 = vmax.f32 %v4767, 0.0
        %v4816 = vmax.f32 %v4768, 0.0
        %v4817 = vmax.f32 %v4769, 0.0
        %v4818 = vmax.f32 %v4770, 0.0
        %v4819 = vmax.f32 %v4771, 0.0
        %v4820 = vmax.f32 %v4772, 0.0
        %v4821 = vmax.f32 %v4773, 0.0
        %v4822 = vmax.f32 %v4774, 0.0
        %v4823 = vmax.f32 %v4775, 0.0
        %v4824 = vmax.f32 %v4776, 0.0
        %v4825 = vmax.f32 %v4777, 0.0
        %v4826 = vmax.f32 %v4778, 0.0
        %v4827 = vmax.f32 %v4779, 0.0
        %v4828 = vmax.f32 %v4780, 0.0
        %v4829 = vmax.f32 %v4781, 0.0
        %v4830 = vmax.f32 %v4782, 0.0
        %v4831 = vmax.f32 %v4783, 0.0
        %v4832 = vmax.f32 %v4784, 0.0
        %v4833 = vmax.f32 %v4785, 0.0
        %v4834 = vmax.f32 %v4786, 0.0
        %v4835 = vmax.f32 %v4787, 0.0
        %v4836 = vmax.f32 %v4788, 0.0
        %v4837 = vmax.f32 %v4789, 0.0
        %v4838 = vmax.f32 %v4790, 0.0
        %v4839 = vmax.f32 %v4791, 0.0
        %v4840 = vmax.f32 %v4792, 0.0
        %v4841 = vmax.f32 %v4793, 0.0
        %v4842 = vmax.f32 %v4794, 0.0
        %v4843 = vpack.c.bf16 %v4796, %v4795
        %v4844 = vpack.c.bf16 %v4798, %v4797
        %v4845 = vpack.c.bf16 %v4800, %v4799
        %v4846 = vpack.c.bf16 %v4802, %v4801
        %v4847 = vpack.c.bf16 %v4804, %v4803
        %v4848 = vpack.c.bf16 %v4806, %v4805
        %v4849 = vpack.c.bf16 %v4808, %v4807
        %v4850 = vpack.c.bf16 %v4810, %v4809
        %v4851 = vpack.c.bf16 %v4812, %v4811
        %v4852 = vpack.c.bf16 %v4814, %v4813
        %v4853 = vpack.c.bf16 %v4816, %v4815
        %v4854 = vpack.c.bf16 %v4818, %v4817
        %v4855 = vpack.c.bf16 %v4820, %v4819
        %v4856 = vpack.c.bf16 %v4822, %v4821
        %v4857 = vpack.c.bf16 %v4824, %v4823
        %v4858 = vpack.c.bf16 %v4826, %v4825
        %v4859 = vpack.c.bf16 %v4828, %v4827
        %v4860 = vpack.c.bf16 %v4830, %v4829
        %v4861 = vpack.c.bf16 %v4832, %v4831
        %v4862 = vpack.c.bf16 %v4834, %v4833
        %v4863 = vpack.c.bf16 %v4836, %v4835
        %v4864 = vpack.c.bf16 %v4838, %v4837
        %v4865 = vpack.c.bf16 %v4840, %v4839
        %v4866 = vpack.c.bf16 %v4842, %v4841
        %v4867 = vld [vmem:[#allocation7] sm:$0xf]
        %v4868 = vld [vmem:[#allocation7 + $0x4] sm:$0xf]
        %v4869 = vld [vmem:[#allocation7 + $0x8] sm:$0xf]
        %v4870 = vld [vmem:[#allocation7 + $0xc] sm:$0xf]
        %v4871 = vld [vmem:[#allocation7 + $0x10] sm:$0xf]
        %v4872 = vld [vmem:[#allocation7 + $0x14] sm:$0xf]
        %v4873 = vld [vmem:[#allocation7 + $0x18] sm:$0xf]
        %v4874 = vld [vmem:[#allocation7 + $0x1c] sm:$0xf]
        %v4875 = vld [vmem:[#allocation7 + $0x20] sm:$0xf]
        %v4876 = vld [vmem:[#allocation7 + $0x24] sm:$0xf]
        %v4877 = vld [vmem:[#allocation7 + $0x28] sm:$0xf]
        %v4878 = vld [vmem:[#allocation7 + $0x2c] sm:$0xf]
        %v4879 = vld [vmem:[#allocation7 + $0x30] sm:$0xf]
        %v4880 = vld [vmem:[#allocation7 + $0x34] sm:$0xf]
        %v4881 = vld [vmem:[#allocation7 + $0x38] sm:$0xf]
        %v4882 = vld [vmem:[#allocation7 + $0x3c] sm:$0xf]
        %v4899 = vunpack.c.l.b16 %v4867
        %v4900 = vunpack.c.l.b16 %v4868
        %v4901 = vunpack.c.l.b16 %v4869
        %v4902 = vunpack.c.l.b16 %v4870
        %v4903 = vunpack.c.l.b16 %v4871
        %v4904 = vunpack.c.l.b16 %v4872
        %v4905 = vunpack.c.l.b16 %v4873
        %v4906 = vunpack.c.l.b16 %v4874
        %v4907 = vunpack.c.l.b16 %v4875
        %v4908 = vunpack.c.l.b16 %v4876
        %v4909 = vunpack.c.l.b16 %v4877
        %v4910 = vunpack.c.l.b16 %v4878
        %v4911 = vunpack.c.l.b16 %v4879
        %v4912 = vunpack.c.l.b16 %v4880
        %v4913 = vunpack.c.l.b16 %v4881
        %v4914 = vunpack.c.l.b16 %v4882
        %v4915 = vpack.c.b16 %v4900, %v4899
        %v4916 = vpack.c.b16 %v4902, %v4901
        %v4917 = vpack.c.b16 %v4904, %v4903
        %v4918 = vpack.c.b16 %v4906, %v4905
        %v4919 = vpack.c.b16 %v4908, %v4907
        %v4920 = vpack.c.b16 %v4910, %v4909
        %v4921 = vpack.c.b16 %v4912, %v4911
        %v4922 = vpack.c.b16 %v4914, %v4913
        %4931 = vmatpush.bf16.msra.mxu0 %v4922
        %4932 = vmatpush.bf16.msra.mxu0 %v4921
        %4933 = vmatpush.bf16.msra.mxu0 %v4920
        %4934 = vmatpush.bf16.msra.mxu0 %v4919
        %4935 = vmatpush.bf16.msra.mxu0 %v4918
        %4936 = vmatpush.bf16.msra.mxu0 %v4917
        %4937 = vmatpush.bf16.msra.mxu0 %v4916
        %4938 = vmatpush.bf16.msra.mxu0 %v4915
        %4939 = vmatmul.bf16.gmra.mxu0 %v4843
        %v4940 = vpop.f32.mrf.mxu0
        %v4941 = vadd.f32 0.0, %v4940
        %v4942 = vpop.f32.mrf.mxu0
        %v4943 = vadd.f32 0.0, %v4942
        %4944 = vmatmul.bf16.gmra.mxu0 %v4844
        %v4945 = vpop.f32.mrf.mxu0
        %v4946 = vadd.f32 0.0, %v4945
        %v4947 = vpop.f32.mrf.mxu0
        %v4948 = vadd.f32 0.0, %v4947
        %4949 = vmatmul.bf16.gmra.mxu0 %v4845
        %v4950 = vpop.f32.mrf.mxu0
        %v4951 = vadd.f32 0.0, %v4950
        %v4952 = vpop.f32.mrf.mxu0
        %v4953 = vadd.f32 0.0, %v4952
        %4954 = vmatmul.bf16.gmra.mxu0 %v4846
        %v4955 = vpop.f32.mrf.mxu0
        %v4956 = vadd.f32 0.0, %v4955
        %v4957 = vpop.f32.mrf.mxu0
        %v4958 = vadd.f32 0.0, %v4957
        %4959 = vmatmul.bf16.gmra.mxu0 %v4847
        %v4960 = vpop.f32.mrf.mxu0
        %v4961 = vadd.f32 0.0, %v4960
        %v4962 = vpop.f32.mrf.mxu0
        %v4963 = vadd.f32 0.0, %v4962
        %4964 = vmatmul.bf16.gmra.mxu0 %v4848
        %v4965 = vpop.f32.mrf.mxu0
        %v4966 = vadd.f32 0.0, %v4965
        %v4967 = vpop.f32.mrf.mxu0
        %v4968 = vadd.f32 0.0, %v4967
        %4969 = vmatmul.bf16.gmra.mxu0 %v4849
        %v4970 = vpop.f32.mrf.mxu0
        %v4971 = vadd.f32 0.0, %v4970
        %v4972 = vpop.f32.mrf.mxu0
        %v4973 = vadd.f32 0.0, %v4972
        %4974 = vmatmul.bf16.gmra.mxu0 %v4850
        %v4975 = vpop.f32.mrf.mxu0
        %v4976 = vadd.f32 0.0, %v4975
        %v4977 = vpop.f32.mrf.mxu0
        %v4978 = vadd.f32 0.0, %v4977
        %4979 = vmatmul.bf16.gmra.mxu0 %v4851
        %v4980 = vpop.f32.mrf.mxu0
        %v4981 = vadd.f32 0.0, %v4980
        %v4982 = vpop.f32.mrf.mxu0
        %v4983 = vadd.f32 0.0, %v4982
        %4984 = vmatmul.bf16.gmra.mxu0 %v4852
        %v4985 = vpop.f32.mrf.mxu0
        %v4986 = vadd.f32 0.0, %v4985
        %v4987 = vpop.f32.mrf.mxu0
        %v4988 = vadd.f32 0.0, %v4987
        %4989 = vmatmul.bf16.gmra.mxu0 %v4853
        %v4990 = vpop.f32.mrf.mxu0
        %v4991 = vadd.f32 0.0, %v4990
        %v4992 = vpop.f32.mrf.mxu0
        %v4993 = vadd.f32 0.0, %v4992
        %4994 = vmatmul.bf16.gmra.mxu0 %v4854
        %v4995 = vpop.f32.mrf.mxu0
        %v4996 = vadd.f32 0.0, %v4995
        %v4997 = vpop.f32.mrf.mxu0
        %v4998 = vadd.f32 0.0, %v4997
        %4999 = vmatmul.bf16.gmra.mxu0 %v4855
        %v5000 = vpop.f32.mrf.mxu0
        %v5001 = vadd.f32 0.0, %v5000
        %v5002 = vpop.f32.mrf.mxu0
        %v5003 = vadd.f32 0.0, %v5002
        %5004 = vmatmul.bf16.gmra.mxu0 %v4856
        %v5005 = vpop.f32.mrf.mxu0
        %v5006 = vadd.f32 0.0, %v5005
        %v5007 = vpop.f32.mrf.mxu0
        %v5008 = vadd.f32 0.0, %v5007
        %5009 = vmatmul.bf16.gmra.mxu0 %v4857
        %v5010 = vpop.f32.mrf.mxu0
        %v5011 = vadd.f32 0.0, %v5010
        %v5012 = vpop.f32.mrf.mxu0
        %v5013 = vadd.f32 0.0, %v5012
        %5014 = vmatmul.bf16.gmra.mxu0 %v4858
        %v5015 = vpop.f32.mrf.mxu0
        %v5016 = vadd.f32 0.0, %v5015
        %v5017 = vpop.f32.mrf.mxu0
        %v5018 = vadd.f32 0.0, %v5017
        %5019 = vmatmul.bf16.gmra.mxu0 %v4859
        %v5020 = vpop.f32.mrf.mxu0
        %v5021 = vadd.f32 0.0, %v5020
        %v5022 = vpop.f32.mrf.mxu0
        %v5023 = vadd.f32 0.0, %v5022
        %5024 = vmatmul.bf16.gmra.mxu0 %v4860
        %v5025 = vpop.f32.mrf.mxu0
        %v5026 = vadd.f32 0.0, %v5025
        %v5027 = vpop.f32.mrf.mxu0
        %v5028 = vadd.f32 0.0, %v5027
        %5029 = vmatmul.bf16.gmra.mxu0 %v4861
        %v5030 = vpop.f32.mrf.mxu0
        %v5031 = vadd.f32 0.0, %v5030
        %v5032 = vpop.f32.mrf.mxu0
        %v5033 = vadd.f32 0.0, %v5032
        %5034 = vmatmul.bf16.gmra.mxu0 %v4862
        %v5035 = vpop.f32.mrf.mxu0
        %v5036 = vadd.f32 0.0, %v5035
        %v5037 = vpop.f32.mrf.mxu0
        %v5038 = vadd.f32 0.0, %v5037
        %5039 = vmatmul.bf16.gmra.mxu0 %v4863
        %v5040 = vpop.f32.mrf.mxu0
        %v5041 = vadd.f32 0.0, %v5040
        %v5042 = vpop.f32.mrf.mxu0
        %v5043 = vadd.f32 0.0, %v5042
        %5044 = vmatmul.bf16.gmra.mxu0 %v4864
        %v5045 = vpop.f32.mrf.mxu0
        %v5046 = vadd.f32 0.0, %v5045
        %v5047 = vpop.f32.mrf.mxu0
        %v5048 = vadd.f32 0.0, %v5047
        %5049 = vmatmul.bf16.gmra.mxu0 %v4865
        %v5050 = vpop.f32.mrf.mxu0
        %v5051 = vadd.f32 0.0, %v5050
        %v5052 = vpop.f32.mrf.mxu0
        %v5053 = vadd.f32 0.0, %v5052
        %5054 = vmatmul.bf16.gmra.mxu0 %v4866
        %v5055 = vpop.f32.mrf.mxu0
        %v5056 = vadd.f32 0.0, %v5055
        %v5057 = vpop.f32.mrf.mxu0
        %v5058 = vadd.f32 0.0, %v5057
        %5059 = vdwg.mxu0
        %v5060 = vld [vmem:[%s9] sm:$0x1]
        %v5062 = vperm.slane %v5060, 0
        %v5064 = vmul.f32 %v4941, %v5062
        %v5065 = vmul.f32 %v4943, %v5062
        %v5066 = vmul.f32 %v4946, %v5062
        %v5067 = vmul.f32 %v4948, %v5062
        %v5068 = vmul.f32 %v4951, %v5062
        %v5069 = vmul.f32 %v4953, %v5062
        %v5070 = vmul.f32 %v4956, %v5062
        %v5071 = vmul.f32 %v4958, %v5062
        %v5072 = vmul.f32 %v4961, %v5062
        %v5073 = vmul.f32 %v4963, %v5062
        %v5074 = vmul.f32 %v4966, %v5062
        %v5075 = vmul.f32 %v4968, %v5062
        %v5076 = vmul.f32 %v4971, %v5062
        %v5077 = vmul.f32 %v4973, %v5062
        %v5078 = vmul.f32 %v4976, %v5062
        %v5079 = vmul.f32 %v4978, %v5062
        %v5080 = vmul.f32 %v4981, %v5062
        %v5081 = vmul.f32 %v4983, %v5062
        %v5082 = vmul.f32 %v4986, %v5062
        %v5083 = vmul.f32 %v4988, %v5062
        %v5084 = vmul.f32 %v4991, %v5062
        %v5085 = vmul.f32 %v4993, %v5062
        %v5086 = vmul.f32 %v4996, %v5062
        %v5087 = vmul.f32 %v4998, %v5062
        %v5088 = vmul.f32 %v5001, %v5062
        %v5089 = vmul.f32 %v5003, %v5062
        %v5090 = vmul.f32 %v5006, %v5062
        %v5091 = vmul.f32 %v5008, %v5062
        %v5092 = vmul.f32 %v5011, %v5062
        %v5093 = vmul.f32 %v5013, %v5062
        %v5094 = vmul.f32 %v5016, %v5062
        %v5095 = vmul.f32 %v5018, %v5062
        %v5096 = vmul.f32 %v5021, %v5062
        %v5097 = vmul.f32 %v5023, %v5062
        %v5098 = vmul.f32 %v5026, %v5062
        %v5099 = vmul.f32 %v5028, %v5062
        %v5100 = vmul.f32 %v5031, %v5062
        %v5101 = vmul.f32 %v5033, %v5062
        %v5102 = vmul.f32 %v5036, %v5062
        %v5103 = vmul.f32 %v5038, %v5062
        %v5104 = vmul.f32 %v5041, %v5062
        %v5105 = vmul.f32 %v5043, %v5062
        %v5106 = vmul.f32 %v5046, %v5062
        %v5107 = vmul.f32 %v5048, %v5062
        %v5108 = vmul.f32 %v5051, %v5062
        %v5109 = vmul.f32 %v5053, %v5062
        %v5110 = vmul.f32 %v5056, %v5062
        %v5111 = vmul.f32 %v5058, %v5062
        %v5112 = vld [vmem:[%s10] sm:$0x1]
        %v5114 = vperm.slane %v5112, 0
        %v5116 = vadd.f32 %v5064, %v5114
        %v5117 = vadd.f32 %v5065, %v5114
        %v5118 = vadd.f32 %v5066, %v5114
        %v5119 = vadd.f32 %v5067, %v5114
        %v5120 = vadd.f32 %v5068, %v5114
        %v5121 = vadd.f32 %v5069, %v5114
        %v5122 = vadd.f32 %v5070, %v5114
        %v5123 = vadd.f32 %v5071, %v5114
        %v5124 = vadd.f32 %v5072, %v5114
        %v5125 = vadd.f32 %v5073, %v5114
        %v5126 = vadd.f32 %v5074, %v5114
        %v5127 = vadd.f32 %v5075, %v5114
        %v5128 = vadd.f32 %v5076, %v5114
        %v5129 = vadd.f32 %v5077, %v5114
        %v5130 = vadd.f32 %v5078, %v5114
        %v5131 = vadd.f32 %v5079, %v5114
        %v5132 = vadd.f32 %v5080, %v5114
        %v5133 = vadd.f32 %v5081, %v5114
        %v5134 = vadd.f32 %v5082, %v5114
        %v5135 = vadd.f32 %v5083, %v5114
        %v5136 = vadd.f32 %v5084, %v5114
        %v5137 = vadd.f32 %v5085, %v5114
        %v5138 = vadd.f32 %v5086, %v5114
        %v5139 = vadd.f32 %v5087, %v5114
        %v5140 = vadd.f32 %v5088, %v5114
        %v5141 = vadd.f32 %v5089, %v5114
        %v5142 = vadd.f32 %v5090, %v5114
        %v5143 = vadd.f32 %v5091, %v5114
        %v5144 = vadd.f32 %v5092, %v5114
        %v5145 = vadd.f32 %v5093, %v5114
        %v5146 = vadd.f32 %v5094, %v5114
        %v5147 = vadd.f32 %v5095, %v5114
        %v5148 = vadd.f32 %v5096, %v5114
        %v5149 = vadd.f32 %v5097, %v5114
        %v5150 = vadd.f32 %v5098, %v5114
        %v5151 = vadd.f32 %v5099, %v5114
        %v5152 = vadd.f32 %v5100, %v5114
        %v5153 = vadd.f32 %v5101, %v5114
        %v5154 = vadd.f32 %v5102, %v5114
        %v5155 = vadd.f32 %v5103, %v5114
        %v5156 = vadd.f32 %v5104, %v5114
        %v5157 = vadd.f32 %v5105, %v5114
        %v5158 = vadd.f32 %v5106, %v5114
        %v5159 = vadd.f32 %v5107, %v5114
        %v5160 = vadd.f32 %v5108, %v5114
        %v5161 = vadd.f32 %v5109, %v5114
        %v5162 = vadd.f32 %v5110, %v5114
        %v5163 = vadd.f32 %v5111, %v5114
        %v5164 = vld [vmem:[#allocation8] sm:$0xf]
        %v5165 = vld [vmem:[#allocation8 + $0x4] sm:$0xf]
        %v5166 = vld [vmem:[#allocation8 + $0x8] sm:$0xf]
        %v5167 = vld [vmem:[#allocation8 + $0xc] sm:$0xf]
        %v5168 = vld [vmem:[#allocation8 + $0x10] sm:$0xf]
        %v5169 = vld [vmem:[#allocation8 + $0x14] sm:$0xf]
        %v5170 = vld [vmem:[#allocation8 + $0x18] sm:$0xf]
        %v5171 = vld [vmem:[#allocation8 + $0x1c] sm:$0xf]
        %v5172 = vld [vmem:[#allocation8 + $0x20] sm:$0xf]
        %v5173 = vld [vmem:[#allocation8 + $0x24] sm:$0xf]
        %v5174 = vld [vmem:[#allocation8 + $0x28] sm:$0xf]
        %v5175 = vld [vmem:[#allocation8 + $0x2c] sm:$0xf]
        %v5176 = vld [vmem:[#allocation8 + $0x30] sm:$0xf]
        %v5177 = vld [vmem:[#allocation8 + $0x34] sm:$0xf]
        %v5178 = vld [vmem:[#allocation8 + $0x38] sm:$0xf]
        %v5179 = vld [vmem:[#allocation8 + $0x3c] sm:$0xf]
        %v5196 = vunpack.c.l.b16 %v5164
        %v5197 = vunpack.c.l.b16 %v5165
        %v5198 = vunpack.c.l.b16 %v5166
        %v5199 = vunpack.c.l.b16 %v5167
        %v5200 = vunpack.c.l.b16 %v5168
        %v5201 = vunpack.c.l.b16 %v5169
        %v5202 = vunpack.c.l.b16 %v5170
        %v5203 = vunpack.c.l.b16 %v5171
        %v5204 = vunpack.c.l.b16 %v5172
        %v5205 = vunpack.c.l.b16 %v5173
        %v5206 = vunpack.c.l.b16 %v5174
        %v5207 = vunpack.c.l.b16 %v5175
        %v5208 = vunpack.c.l.b16 %v5176
        %v5209 = vunpack.c.l.b16 %v5177
        %v5210 = vunpack.c.l.b16 %v5178
        %v5211 = vunpack.c.l.b16 %v5179
        %v5212 = vpack.c.b16 %v5197, %v5196
        %v5213 = vpack.c.b16 %v5199, %v5198
        %v5214 = vpack.c.b16 %v5201, %v5200
        %v5215 = vpack.c.b16 %v5203, %v5202
        %v5216 = vpack.c.b16 %v5205, %v5204
        %v5217 = vpack.c.b16 %v5207, %v5206
        %v5218 = vpack.c.b16 %v5209, %v5208
        %v5219 = vpack.c.b16 %v5211, %v5210
        %5228 = vmatpush.bf16.msra.mxu0 %v5219
        %5229 = vmatpush.bf16.msra.mxu0 %v5218
        %5230 = vmatpush.bf16.msra.mxu0 %v5217
        %5231 = vmatpush.bf16.msra.mxu0 %v5216
        %5232 = vmatpush.bf16.msra.mxu0 %v5215
        %5233 = vmatpush.bf16.msra.mxu0 %v5214
        %5234 = vmatpush.bf16.msra.mxu0 %v5213
        %5235 = vmatpush.bf16.msra.mxu0 %v5212
        %5236 = vmatmul.bf16.gmra.mxu0 %v732
        %v5237 = vpop.f32.mrf.mxu0
        %v5238 = vadd.f32 0.0, %v5237
        %v5239 = vpop.f32.mrf.mxu0
        %v5240 = vadd.f32 0.0, %v5239
        %5241 = vmatmul.bf16.gmra.mxu0 %v733
        %v5242 = vpop.f32.mrf.mxu0
        %v5243 = vadd.f32 0.0, %v5242
        %v5244 = vpop.f32.mrf.mxu0
        %v5245 = vadd.f32 0.0, %v5244
        %5246 = vmatmul.bf16.gmra.mxu0 %v734
        %v5247 = vpop.f32.mrf.mxu0
        %v5248 = vadd.f32 0.0, %v5247
        %v5249 = vpop.f32.mrf.mxu0
        %v5250 = vadd.f32 0.0, %v5249
        %5251 = vmatmul.bf16.gmra.mxu0 %v735
        %v5252 = vpop.f32.mrf.mxu0
        %v5253 = vadd.f32 0.0, %v5252
        %v5254 = vpop.f32.mrf.mxu0
        %v5255 = vadd.f32 0.0, %v5254
        %5256 = vmatmul.bf16.gmra.mxu0 %v736
        %v5257 = vpop.f32.mrf.mxu0
        %v5258 = vadd.f32 0.0, %v5257
        %v5259 = vpop.f32.mrf.mxu0
        %v5260 = vadd.f32 0.0, %v5259
        %5261 = vmatmul.bf16.gmra.mxu0 %v737
        %v5262 = vpop.f32.mrf.mxu0
        %v5263 = vadd.f32 0.0, %v5262
        %v5264 = vpop.f32.mrf.mxu0
        %v5265 = vadd.f32 0.0, %v5264
        %5266 = vmatmul.bf16.gmra.mxu0 %v738
        %v5267 = vpop.f32.mrf.mxu0
        %v5268 = vadd.f32 0.0, %v5267
        %v5269 = vpop.f32.mrf.mxu0
        %v5270 = vadd.f32 0.0, %v5269
        %5271 = vmatmul.bf16.gmra.mxu0 %v739
        %v5272 = vpop.f32.mrf.mxu0
        %v5273 = vadd.f32 0.0, %v5272
        %v5274 = vpop.f32.mrf.mxu0
        %v5275 = vadd.f32 0.0, %v5274
        %5276 = vmatmul.bf16.gmra.mxu0 %v740
        %v5277 = vpop.f32.mrf.mxu0
        %v5278 = vadd.f32 0.0, %v5277
        %v5279 = vpop.f32.mrf.mxu0
        %v5280 = vadd.f32 0.0, %v5279
        %5281 = vmatmul.bf16.gmra.mxu0 %v741
        %v5282 = vpop.f32.mrf.mxu0
        %v5283 = vadd.f32 0.0, %v5282
        %v5284 = vpop.f32.mrf.mxu0
        %v5285 = vadd.f32 0.0, %v5284
        %5286 = vmatmul.bf16.gmra.mxu0 %v742
        %v5287 = vpop.f32.mrf.mxu0
        %v5288 = vadd.f32 0.0, %v5287
        %v5289 = vpop.f32.mrf.mxu0
        %v5290 = vadd.f32 0.0, %v5289
        %5291 = vmatmul.bf16.gmra.mxu0 %v743
        %v5292 = vpop.f32.mrf.mxu0
        %v5293 = vadd.f32 0.0, %v5292
        %v5294 = vpop.f32.mrf.mxu0
        %v5295 = vadd.f32 0.0, %v5294
        %5296 = vmatmul.bf16.gmra.mxu0 %v744
        %v5297 = vpop.f32.mrf.mxu0
        %v5298 = vadd.f32 0.0, %v5297
        %v5299 = vpop.f32.mrf.mxu0
        %v5300 = vadd.f32 0.0, %v5299
        %5301 = vmatmul.bf16.gmra.mxu0 %v745
        %v5302 = vpop.f32.mrf.mxu0
        %v5303 = vadd.f32 0.0, %v5302
        %v5304 = vpop.f32.mrf.mxu0
        %v5305 = vadd.f32 0.0, %v5304
        %5306 = vmatmul.bf16.gmra.mxu0 %v746
        %v5307 = vpop.f32.mrf.mxu0
        %v5308 = vadd.f32 0.0, %v5307
        %v5309 = vpop.f32.mrf.mxu0
        %v5310 = vadd.f32 0.0, %v5309
        %5311 = vmatmul.bf16.gmra.mxu0 %v747
        %v5312 = vpop.f32.mrf.mxu0
        %v5313 = vadd.f32 0.0, %v5312
        %v5314 = vpop.f32.mrf.mxu0
        %v5315 = vadd.f32 0.0, %v5314
        %5316 = vmatmul.bf16.gmra.mxu0 %v748
        %v5317 = vpop.f32.mrf.mxu0
        %v5318 = vadd.f32 0.0, %v5317
        %v5319 = vpop.f32.mrf.mxu0
        %v5320 = vadd.f32 0.0, %v5319
        %5321 = vmatmul.bf16.gmra.mxu0 %v749
        %v5322 = vpop.f32.mrf.mxu0
        %v5323 = vadd.f32 0.0, %v5322
        %v5324 = vpop.f32.mrf.mxu0
        %v5325 = vadd.f32 0.0, %v5324
        %5326 = vmatmul.bf16.gmra.mxu0 %v750
        %v5327 = vpop.f32.mrf.mxu0
        %v5328 = vadd.f32 0.0, %v5327
        %v5329 = vpop.f32.mrf.mxu0
        %v5330 = vadd.f32 0.0, %v5329
        %5331 = vmatmul.bf16.gmra.mxu0 %v751
        %v5332 = vpop.f32.mrf.mxu0
        %v5333 = vadd.f32 0.0, %v5332
        %v5334 = vpop.f32.mrf.mxu0
        %v5335 = vadd.f32 0.0, %v5334
        %5336 = vmatmul.bf16.gmra.mxu0 %v752
        %v5337 = vpop.f32.mrf.mxu0
        %v5338 = vadd.f32 0.0, %v5337
        %v5339 = vpop.f32.mrf.mxu0
        %v5340 = vadd.f32 0.0, %v5339
        %5341 = vmatmul.bf16.gmra.mxu0 %v753
        %v5342 = vpop.f32.mrf.mxu0
        %v5343 = vadd.f32 0.0, %v5342
        %v5344 = vpop.f32.mrf.mxu0
        %v5345 = vadd.f32 0.0, %v5344
        %5346 = vmatmul.bf16.gmra.mxu0 %v754
        %v5347 = vpop.f32.mrf.mxu0
        %v5348 = vadd.f32 0.0, %v5347
        %v5349 = vpop.f32.mrf.mxu0
        %v5350 = vadd.f32 0.0, %v5349
        %5351 = vmatmul.bf16.gmra.mxu0 %v755
        %v5352 = vpop.f32.mrf.mxu0
        %v5353 = vadd.f32 0.0, %v5352
        %v5354 = vpop.f32.mrf.mxu0
        %v5355 = vadd.f32 0.0, %v5354
        %5356 = vdwg.mxu0
        %v5357 = vld [vmem:[%s12] sm:$0x1]
        %v5359 = vperm.slane %v5357, 0
        %v5361 = vmul.f32 %v5238, %v5359
        %v5362 = vmul.f32 %v5240, %v5359
        %v5363 = vmul.f32 %v5243, %v5359
        %v5364 = vmul.f32 %v5245, %v5359
        %v5365 = vmul.f32 %v5248, %v5359
        %v5366 = vmul.f32 %v5250, %v5359
        %v5367 = vmul.f32 %v5253, %v5359
        %v5368 = vmul.f32 %v5255, %v5359
        %v5369 = vmul.f32 %v5258, %v5359
        %v5370 = vmul.f32 %v5260, %v5359
        %v5371 = vmul.f32 %v5263, %v5359
        %v5372 = vmul.f32 %v5265, %v5359
        %v5373 = vmul.f32 %v5268, %v5359
        %v5374 = vmul.f32 %v5270, %v5359
        %v5375 = vmul.f32 %v5273, %v5359
        %v5376 = vmul.f32 %v5275, %v5359
        %v5377 = vmul.f32 %v5278, %v5359
        %v5378 = vmul.f32 %v5280, %v5359
        %v5379 = vmul.f32 %v5283, %v5359
        %v5380 = vmul.f32 %v5285, %v5359
        %v5381 = vmul.f32 %v5288, %v5359
        %v5382 = vmul.f32 %v5290, %v5359
        %v5383 = vmul.f32 %v5293, %v5359
        %v5384 = vmul.f32 %v5295, %v5359
        %v5385 = vmul.f32 %v5298, %v5359
        %v5386 = vmul.f32 %v5300, %v5359
        %v5387 = vmul.f32 %v5303, %v5359
        %v5388 = vmul.f32 %v5305, %v5359
        %v5389 = vmul.f32 %v5308, %v5359
        %v5390 = vmul.f32 %v5310, %v5359
        %v5391 = vmul.f32 %v5313, %v5359
        %v5392 = vmul.f32 %v5315, %v5359
        %v5393 = vmul.f32 %v5318, %v5359
        %v5394 = vmul.f32 %v5320, %v5359
        %v5395 = vmul.f32 %v5323, %v5359
        %v5396 = vmul.f32 %v5325, %v5359
        %v5397 = vmul.f32 %v5328, %v5359
        %v5398 = vmul.f32 %v5330, %v5359
        %v5399 = vmul.f32 %v5333, %v5359
        %v5400 = vmul.f32 %v5335, %v5359
        %v5401 = vmul.f32 %v5338, %v5359
        %v5402 = vmul.f32 %v5340, %v5359
        %v5403 = vmul.f32 %v5343, %v5359
        %v5404 = vmul.f32 %v5345, %v5359
        %v5405 = vmul.f32 %v5348, %v5359
        %v5406 = vmul.f32 %v5350, %v5359
        %v5407 = vmul.f32 %v5353, %v5359
        %v5408 = vmul.f32 %v5355, %v5359
        %v5409 = vld [vmem:[%s13] sm:$0x1]
        %v5411 = vperm.slane %v5409, 0
        %v5413 = vadd.f32 %v5361, %v5411
        %v5414 = vadd.f32 %v5362, %v5411
        %v5415 = vadd.f32 %v5363, %v5411
        %v5416 = vadd.f32 %v5364, %v5411
        %v5417 = vadd.f32 %v5365, %v5411
        %v5418 = vadd.f32 %v5366, %v5411
        %v5419 = vadd.f32 %v5367, %v5411
        %v5420 = vadd.f32 %v5368, %v5411
        %v5421 = vadd.f32 %v5369, %v5411
        %v5422 = vadd.f32 %v5370, %v5411
        %v5423 = vadd.f32 %v5371, %v5411
        %v5424 = vadd.f32 %v5372, %v5411
        %v5425 = vadd.f32 %v5373, %v5411
        %v5426 = vadd.f32 %v5374, %v5411
        %v5427 = vadd.f32 %v5375, %v5411
        %v5428 = vadd.f32 %v5376, %v5411
        %v5429 = vadd.f32 %v5377, %v5411
        %v5430 = vadd.f32 %v5378, %v5411
        %v5431 = vadd.f32 %v5379, %v5411
        %v5432 = vadd.f32 %v5380, %v5411
        %v5433 = vadd.f32 %v5381, %v5411
        %v5434 = vadd.f32 %v5382, %v5411
        %v5435 = vadd.f32 %v5383, %v5411
        %v5436 = vadd.f32 %v5384, %v5411
        %v5437 = vadd.f32 %v5385, %v5411
        %v5438 = vadd.f32 %v5386, %v5411
        %v5439 = vadd.f32 %v5387, %v5411
        %v5440 = vadd.f32 %v5388, %v5411
        %v5441 = vadd.f32 %v5389, %v5411
        %v5442 = vadd.f32 %v5390, %v5411
        %v5443 = vadd.f32 %v5391, %v5411
        %v5444 = vadd.f32 %v5392, %v5411
        %v5445 = vadd.f32 %v5393, %v5411
        %v5446 = vadd.f32 %v5394, %v5411
        %v5447 = vadd.f32 %v5395, %v5411
        %v5448 = vadd.f32 %v5396, %v5411
        %v5449 = vadd.f32 %v5397, %v5411
        %v5450 = vadd.f32 %v5398, %v5411
        %v5451 = vadd.f32 %v5399, %v5411
        %v5452 = vadd.f32 %v5400, %v5411
        %v5453 = vadd.f32 %v5401, %v5411
        %v5454 = vadd.f32 %v5402, %v5411
        %v5455 = vadd.f32 %v5403, %v5411
        %v5456 = vadd.f32 %v5404, %v5411
        %v5457 = vadd.f32 %v5405, %v5411
        %v5458 = vadd.f32 %v5406, %v5411
        %v5459 = vadd.f32 %v5407, %v5411
        %v5460 = vadd.f32 %v5408, %v5411
        %v5461 = vadd.f32 %v5116, %v5413
        %v5462 = vadd.f32 %v5117, %v5414
        %v5463 = vadd.f32 %v5118, %v5415
        %v5464 = vadd.f32 %v5119, %v5416
        %v5465 = vadd.f32 %v5120, %v5417
        %v5466 = vadd.f32 %v5121, %v5418
        %v5467 = vadd.f32 %v5122, %v5419
        %v5468 = vadd.f32 %v5123, %v5420
        %v5469 = vadd.f32 %v5124, %v5421
        %v5470 = vadd.f32 %v5125, %v5422
        %v5471 = vadd.f32 %v5126, %v5423
        %v5472 = vadd.f32 %v5127, %v5424
        %v5473 = vadd.f32 %v5128, %v5425
        %v5474 = vadd.f32 %v5129, %v5426
        %v5475 = vadd.f32 %v5130, %v5427
        %v5476 = vadd.f32 %v5131, %v5428
        %v5477 = vadd.f32 %v5132, %v5429
        %v5478 = vadd.f32 %v5133, %v5430
        %v5479 = vadd.f32 %v5134, %v5431
        %v5480 = vadd.f32 %v5135, %v5432
        %v5481 = vadd.f32 %v5136, %v5433
        %v5482 = vadd.f32 %v5137, %v5434
        %v5483 = vadd.f32 %v5138, %v5435
        %v5484 = vadd.f32 %v5139, %v5436
        %v5485 = vadd.f32 %v5140, %v5437
        %v5486 = vadd.f32 %v5141, %v5438
        %v5487 = vadd.f32 %v5142, %v5439
        %v5488 = vadd.f32 %v5143, %v5440
        %v5489 = vadd.f32 %v5144, %v5441
        %v5490 = vadd.f32 %v5145, %v5442
        %v5491 = vadd.f32 %v5146, %v5443
        %v5492 = vadd.f32 %v5147, %v5444
        %v5493 = vadd.f32 %v5148, %v5445
        %v5494 = vadd.f32 %v5149, %v5446
        %v5495 = vadd.f32 %v5150, %v5447
        %v5496 = vadd.f32 %v5151, %v5448
        %v5497 = vadd.f32 %v5152, %v5449
        %v5498 = vadd.f32 %v5153, %v5450
        %v5499 = vadd.f32 %v5154, %v5451
        %v5500 = vadd.f32 %v5155, %v5452
        %v5501 = vadd.f32 %v5156, %v5453
        %v5502 = vadd.f32 %v5157, %v5454
        %v5503 = vadd.f32 %v5158, %v5455
        %v5504 = vadd.f32 %v5159, %v5456
        %v5505 = vadd.f32 %v5160, %v5457
        %v5506 = vadd.f32 %v5161, %v5458
        %v5507 = vadd.f32 %v5162, %v5459
        %v5508 = vadd.f32 %v5163, %v5460
        %v5509 = vmax.f32 %v5461, 0.0
        %v5510 = vmax.f32 %v5462, 0.0
        %v5511 = vmax.f32 %v5463, 0.0
        %v5512 = vmax.f32 %v5464, 0.0
        %v5513 = vmax.f32 %v5465, 0.0
        %v5514 = vmax.f32 %v5466, 0.0
        %v5515 = vmax.f32 %v5467, 0.0
        %v5516 = vmax.f32 %v5468, 0.0
        %v5517 = vmax.f32 %v5469, 0.0
        %v5518 = vmax.f32 %v5470, 0.0
        %v5519 = vmax.f32 %v5471, 0.0
        %v5520 = vmax.f32 %v5472, 0.0
        %v5521 = vmax.f32 %v5473, 0.0
        %v5522 = vmax.f32 %v5474, 0.0
        %v5523 = vmax.f32 %v5475, 0.0
        %v5524 = vmax.f32 %v5476, 0.0
        %v5525 = vmax.f32 %v5477, 0.0
        %v5526 = vmax.f32 %v5478, 0.0
        %v5527 = vmax.f32 %v5479, 0.0
        %v5528 = vmax.f32 %v5480, 0.0
        %v5529 = vmax.f32 %v5481, 0.0
        %v5530 = vmax.f32 %v5482, 0.0
        %v5531 = vmax.f32 %v5483, 0.0
        %v5532 = vmax.f32 %v5484, 0.0
        %v5533 = vmax.f32 %v5485, 0.0
        %v5534 = vmax.f32 %v5486, 0.0
        %v5535 = vmax.f32 %v5487, 0.0
        %v5536 = vmax.f32 %v5488, 0.0
        %v5537 = vmax.f32 %v5489, 0.0
        %v5538 = vmax.f32 %v5490, 0.0
        %v5539 = vmax.f32 %v5491, 0.0
        %v5540 = vmax.f32 %v5492, 0.0
        %v5541 = vmax.f32 %v5493, 0.0
        %v5542 = vmax.f32 %v5494, 0.0
        %v5543 = vmax.f32 %v5495, 0.0
        %v5544 = vmax.f32 %v5496, 0.0
        %v5545 = vmax.f32 %v5497, 0.0
        %v5546 = vmax.f32 %v5498, 0.0
        %v5547 = vmax.f32 %v5499, 0.0
        %v5548 = vmax.f32 %v5500, 0.0
        %v5549 = vmax.f32 %v5501, 0.0
        %v5550 = vmax.f32 %v5502, 0.0
        %v5551 = vmax.f32 %v5503, 0.0
        %v5552 = vmax.f32 %v5504, 0.0
        %v5553 = vmax.f32 %v5505, 0.0
        %v5554 = vmax.f32 %v5506, 0.0
        %v5555 = vmax.f32 %v5507, 0.0
        %v5556 = vmax.f32 %v5508, 0.0
        %v5557 = vpack.c.bf16 %v5509, %v5509
        %v5558 = vpack.c.bf16 %v5510, %v5510
        %v5559 = vpack.c.bf16 %v5511, %v5511
        %v5560 = vpack.c.bf16 %v5512, %v5512
        %v5561 = vpack.c.bf16 %v5513, %v5513
        %v5562 = vpack.c.bf16 %v5514, %v5514
        %v5563 = vpack.c.bf16 %v5515, %v5515
        %v5564 = vpack.c.bf16 %v5516, %v5516
        %v5565 = vpack.c.bf16 %v5517, %v5517
        %v5566 = vpack.c.bf16 %v5518, %v5518
        %v5567 = vpack.c.bf16 %v5519, %v5519
        %v5568 = vpack.c.bf16 %v5520, %v5520
        %v5569 = vpack.c.bf16 %v5521, %v5521
        %v5570 = vpack.c.bf16 %v5522, %v5522
        %v5571 = vpack.c.bf16 %v5523, %v5523
        %v5572 = vpack.c.bf16 %v5524, %v5524
        %v5573 = vpack.c.bf16 %v5525, %v5525
        %v5574 = vpack.c.bf16 %v5526, %v5526
        %v5575 = vpack.c.bf16 %v5527, %v5527
        %v5576 = vpack.c.bf16 %v5528, %v5528
        %v5577 = vpack.c.bf16 %v5529, %v5529
        %v5578 = vpack.c.bf16 %v5530, %v5530
        %v5579 = vpack.c.bf16 %v5531, %v5531
        %v5580 = vpack.c.bf16 %v5532, %v5532
        %v5581 = vpack.c.bf16 %v5533, %v5533
        %v5582 = vpack.c.bf16 %v5534, %v5534
        %v5583 = vpack.c.bf16 %v5535, %v5535
        %v5584 = vpack.c.bf16 %v5536, %v5536
        %v5585 = vpack.c.bf16 %v5537, %v5537
        %v5586 = vpack.c.bf16 %v5538, %v5538
        %v5587 = vpack.c.bf16 %v5539, %v5539
        %v5588 = vpack.c.bf16 %v5540, %v5540
        %v5589 = vpack.c.bf16 %v5541, %v5541
        %v5590 = vpack.c.bf16 %v5542, %v5542
        %v5591 = vpack.c.bf16 %v5543, %v5543
        %v5592 = vpack.c.bf16 %v5544, %v5544
        %v5593 = vpack.c.bf16 %v5545, %v5545
        %v5594 = vpack.c.bf16 %v5546, %v5546
        %v5595 = vpack.c.bf16 %v5547, %v5547
        %v5596 = vpack.c.bf16 %v5548, %v5548
        %v5597 = vpack.c.bf16 %v5549, %v5549
        %v5598 = vpack.c.bf16 %v5550, %v5550
        %v5599 = vpack.c.bf16 %v5551, %v5551
        %v5600 = vpack.c.bf16 %v5552, %v5552
        %v5601 = vpack.c.bf16 %v5553, %v5553
        %v5602 = vpack.c.bf16 %v5554, %v5554
        %v5603 = vpack.c.bf16 %v5555, %v5555
        %v5604 = vpack.c.bf16 %v5556, %v5556
        %5605 = vst [vmem:[%s527] sm:$0xf] %v5557
        %5606 = vst [vmem:[%s527 + $0x4] sm:$0xf] %v5558
        %5607 = vst [vmem:[%s527 + $0x8] sm:$0xf] %v5559
        %5608 = vst [vmem:[%s527 + $0xc] sm:$0xf] %v5560
        %5609 = vst [vmem:[%s527 + $0x10] sm:$0xf] %v5561
        %5610 = vst [vmem:[%s527 + $0x14] sm:$0xf] %v5562
        %5611 = vst [vmem:[%s527 + $0x18] sm:$0xf] %v5563
        %5612 = vst [vmem:[%s527 + $0x1c] sm:$0xf] %v5564
        %5613 = vst [vmem:[%s527 + $0x20] sm:$0xf] %v5565
        %5614 = vst [vmem:[%s527 + $0x24] sm:$0xf] %v5566
        %5615 = vst [vmem:[%s527 + $0x28] sm:$0xf] %v5567
        %5616 = vst [vmem:[%s527 + $0x2c] sm:$0xf] %v5568
        %5617 = vst [vmem:[%s527 + $0x30] sm:$0xf] %v5569
        %5618 = vst [vmem:[%s527 + $0x34] sm:$0xf] %v5570
        %5619 = vst [vmem:[%s527 + $0x38] sm:$0xf] %v5571
        %5620 = vst [vmem:[%s527 + $0x3c] sm:$0xf] %v5572
        %5621 = vst [vmem:[%s527 + $0x40] sm:$0xf] %v5573
        %5622 = vst [vmem:[%s527 + $0x44] sm:$0xf] %v5574
        %5623 = vst [vmem:[%s527 + $0x48] sm:$0xf] %v5575
        %5624 = vst [vmem:[%s527 + $0x4c] sm:$0xf] %v5576
        %5625 = vst [vmem:[%s527 + $0x50] sm:$0xf] %v5577
        %5626 = vst [vmem:[%s527 + $0x54] sm:$0xf] %v5578
        %5627 = vst [vmem:[%s527 + $0x58] sm:$0xf] %v5579
        %5628 = vst [vmem:[%s527 + $0x5c] sm:$0xf] %v5580
        %5629 = vst [vmem:[%s527 + $0x60] sm:$0xf] %v5581
        %5630 = vst [vmem:[%s527 + $0x64] sm:$0xf] %v5582
        %5631 = vst [vmem:[%s527 + $0x68] sm:$0xf] %v5583
        %5632 = vst [vmem:[%s527 + $0x6c] sm:$0xf] %v5584
        %5633 = vst [vmem:[%s527 + $0x70] sm:$0xf] %v5585
        %5634 = vst [vmem:[%s527 + $0x74] sm:$0xf] %v5586
        %5635 = vst [vmem:[%s527 + $0x78] sm:$0xf] %v5587
        %5636 = vst [vmem:[%s527 + $0x7c] sm:$0xf] %v5588
        %5637 = vst [vmem:[%s527 + $0x80] sm:$0xf] %v5589
        %5638 = vst [vmem:[%s527 + $0x84] sm:$0xf] %v5590
        %5639 = vst [vmem:[%s527 + $0x88] sm:$0xf] %v5591
        %5640 = vst [vmem:[%s527 + $0x8c] sm:$0xf] %v5592
        %5641 = vst [vmem:[%s527 + $0x90] sm:$0xf] %v5593
        %5642 = vst [vmem:[%s527 + $0x94] sm:$0xf] %v5594
        %5643 = vst [vmem:[%s527 + $0x98] sm:$0xf] %v5595
        %5644 = vst [vmem:[%s527 + $0x9c] sm:$0xf] %v5596
        %5645 = vst [vmem:[%s527 + $0xa0] sm:$0xf] %v5597
        %5646 = vst [vmem:[%s527 + $0xa4] sm:$0xf] %v5598
        %5647 = vst [vmem:[%s527 + $0xa8] sm:$0xf] %v5599
        %5648 = vst [vmem:[%s527 + $0xac] sm:$0xf] %v5600
        %5649 = vst [vmem:[%s527 + $0xb0] sm:$0xf] %v5601
        %5650 = vst [vmem:[%s527 + $0xb4] sm:$0xf] %v5602
        %5651 = vst [vmem:[%s527 + $0xb8] sm:$0xf] %v5603
        %5652 = vst [vmem:[%s527 + $0xbc] sm:$0xf] %v5604
        %s5653 = sand.u32 %s338, 1
        %s5654 = scalar_lea.sflag [#allocation4], %s5653
        %s5655 = sand.u32 %s338, 1
        %s5656 = smul.addr %s5655, 192
        %s5657 = scalar_lea.vmem [#allocation10], %s5656
        // Predicated region
        $region93: #{tpu_custom_call.1} parent=75 // pred_check
          %p5658 = pneg %p348
        $region94: #{tpu_custom_call.1} parent=75 // pred_check_branch
          %5660 = sbr.rel (%p5658) target = $region96
        $region95: #{tpu_custom_call.1} parent=75 // pred_region
          %5662 = vsyncadd %s5654, 0
          %s5663 = smul.addr %s31, 48
          %s5664 = smul.addr %s5663, 4
          %s5665 = scalar_lea.hbm %s14, %s5664
          %s5666 = sshll.u32 %s5657, 4
          %s5667 = int_to_ptr.vmem [resolvable:$true] %s5666
          %s5668 = sshll.u32 %s5665, 4
          %s5669 = int_to_ptr.hbm [resolvable:$true] %s5668
          %5674 = dma.vmem_to_hbm [thread:$0]  %s5667, 3072, %s5669, %s5654, 64, 64, 4
        $region96: #{tpu_custom_call.1} parent=75 // pred_fallthru
          _
      $region76: #{tpu_custom_call.1} parent=5 // pred_fallthru
        _
      %p5675 = scmp.le.s32.totalorder 2, %s26
      // Predicated region
      $region97: #{tpu_custom_call.1} parent=5 // pred_check
        %p5676 = pneg %p5675
      $region98: #{tpu_custom_call.1} parent=5 // pred_check_branch
        %5678 = sbr.rel (%p5676) target = $region100
      $region99: #{tpu_custom_call.1} parent=5 // pred_region
        %s5679 = ssub.s32 %s26, 2
        // Predicated region
        $region101: #{tpu_custom_call.1} parent=99 // pred_check
          %p5680 = pneg %p354
        $region102: #{tpu_custom_call.1} parent=99 // pred_check_branch
          %5682 = sbr.rel (%p5680) target = $region104
        $region103: #{tpu_custom_call.1} parent=99 // pred_region
          %s5683 = sand.u32 %s339, 1
          %s5684 = scalar_lea.sflag [#allocation4], %s5683
          %s5685 = sand.u32 %s339, 1
          %s5686 = smul.addr %s5685, 192
          %s5687 = scalar_lea.vmem [#allocation10], %s5686
          %5689 = dma.done %s5684, 3072
        $region104: #{tpu_custom_call.1} parent=99 // pred_fallthru
          _
      $region100: #{tpu_custom_call.1} parent=5 // pred_fallthru
        _
    $region6: #{tpu_custom_call.1} parent=1 // loop_footer
      %s30 = sadd.s32 1, %s26
    $region7: #{tpu_custom_call.1} parent=1 // loop_footer_branch
      %25 = sbr.rel target = $region3
    $region8: #{tpu_custom_call.1} parent=1 // loop_exit
      _
    %5690 = vsyncpa [#allocation3], 1
    %s5691 = scalar_lea.sflag [#allocation3], 1
    %5692 = vsyncpa %s5691, 1
    %5693 = vsyncpa [#allocation6], 1
    %5694 = vsyncpa [#allocation9], 1
    %5695 = vsyncpa [#allocation4], 1
    %s5696 = scalar_lea.sflag [#allocation4], 1
    %5697 = vsyncpa %s5696, 1

</llo_original>
